<compile_context>
chip_gen: v6e
topology: v6e:2x2x1
jax: 0.10.0
libtpu: 0.0.40
codegen_flags: <defaults>
</compile_context>

<pallas_src>
import functools

import jax
import jax.numpy as jnp
import numpy as np
from jax import lax
from jax.experimental import pallas as pl
from jax.experimental.pallas import tpu as pltpu

SCALE_XY = 10.0   # = 1 / dboxes.scale_xy (= 1 / 0.1)
SCALE_WH = 5.0    # = 1 / dboxes.scale_wh (= 1 / 0.2)


def _smooth_l1(x):
    ax = jnp.abs(x)
    return jnp.where(ax < 1.0, 0.5 * x * x, ax - 0.5)


def _ssd_loss_kernel(ploc_ref, plabel_ref, gloc_ref, glabel_ref, dbp_ref,
                     out_ref, *, d_valid):
    # R batch rows per grid step.
    ploc = ploc_ref[...]      # (R, 4, Dp) f32
    plabel = plabel_ref[...]  # (R, C, Dp) f32
    gloc = gloc_ref[...]      # (R, 4, Dp) f32
    glabel = glabel_ref[...]  # (R, 1, Dp) i32
    dbp = dbp_ref[...]        # (1, 6, Dp) f32: [x, y, 1/w, 1/h, log w, log h]

    r, c, dp = plabel.shape
    w = dp // 8               # Dp is a multiple of 8*128, so w is lane aligned

    db_xy = dbp[:, 0:2, :]
    inv_wh = dbp[:, 2:4, :]
    log_wh = dbp[:, 4:6, :]

    mask = glabel > 0                                                   # (R,1,Dp)
    maskf = mask.astype(jnp.float32)
    pos_i = jnp.sum(mask.astype(jnp.int32), axis=2, keepdims=True)      # (R,1,1)
    pos_f = pos_i.astype(jnp.float32)

    # ---------------- localization target + SmoothL1 (positives only) -------
    gxy = SCALE_XY * (gloc[:, :2, :] - db_xy) * inv_wh                  # (R,2,Dp)
    gwh = SCALE_WH * (jnp.log(gloc[:, 2:, :]) - log_wh)                 # (R,2,Dp)
    sl1 = (jnp.sum(_smooth_l1(ploc[:, :2, :] - gxy), axis=1, keepdims=True)
           + jnp.sum(_smooth_l1(ploc[:, 2:, :] - gwh), axis=1, keepdims=True))
    sl1_sum = jnp.sum(maskf * sl1, axis=2, keepdims=True)               # (R,1,1)

    # ---------------- per-anchor cross entropy (fused one-hot pick) ---------
    mx = jnp.max(plabel, axis=1, keepdims=True)                         # (R,1,Dp)
    # Note: on v6e/v7x the exp below could run in bf16 for ~2x EUP throughput
    # (not on v5e); kept in f32 to stay generation-agnostic and bit-accurate.
    lse = jnp.log(jnp.sum(jnp.exp(plabel - mx), axis=1, keepdims=True)) + mx
    cls_iota = lax.broadcasted_iota(jnp.int32, (1, c, dp), 1)
    picked = jnp.sum(jnp.where(cls_iota == glabel, plabel, 0.0),
                     axis=1, keepdims=True)                             # (R,1,Dp)
    con = lse - picked                                                  # (R,1,Dp), >= 0

    # ---------------- hard negative mining ----------------------------------
    # Only the SUM of the top-k values of con_neg is needed (k = min(3*pos, D));
    # positives are covered by `mask` and their con_neg is 0.  Find the exact
    # k-th largest value with a bitwise threshold search on the f32 bit pattern
    # (valid because con_neg >= 0, so int ordering == float ordering).
    lane = lax.broadcasted_iota(jnp.int32, (1, 1, dp), 2)
    valid = lane < d_valid                                              # lane-padding mask
    con_neg = jnp.where(jnp.logical_and(valid, jnp.logical_not(mask)), con, 0.0)

    # One-time sublane-dense relayout: (R,1,Dp) -> (R,8,Dp/8) via 8 lane-aligned
    # slices, so the 16-level search below runs on fully packed vregs.
    dense = jnp.concatenate(
        [con_neg[:, :, j * w:(j + 1) * w] for j in range(8)], axis=1)   # (R,8,w)
    bits = jnp.maximum(pltpu.bitcast(dense, jnp.int32), 0)              # (R,8,w)
    k = jnp.minimum(3 * pos_i, jnp.int32(d_valid))                      # (R,1,1)

    def count_ge(cand):  # cand: (R,1,1) int32, always >= 1 so padded zeros never count
        ge = (bits >= cand).astype(jnp.int32)
        s = jnp.sum(ge, axis=2, keepdims=True)
        return jnp.sum(s, axis=1, keepdims=True)                        # (R,1,1)

    prefix = jnp.zeros((r, 1, 1), jnp.int32)
    # 15 radix-4 levels cover bits 30..1 (bit 31 is the sign bit, never set);
    # the 3 candidate counts per level are independent and pipeline in the XLU.
    for b in range(29, 0, -2):
        c1 = prefix | jnp.int32(1 << b)
        c2 = prefix | jnp.int32(2 << b)
        c3 = prefix | jnp.int32(3 << b)
        n1, n2, n3 = count_ge(c1), count_ge(c2), count_ge(c3)
        prefix = jnp.where(n3 >= k, c3,
                 jnp.where(n2 >= k, c2,
                 jnp.where(n1 >= k, c1, prefix)))
    c0 = prefix | jnp.int32(1)                                          # final bit 0
    prefix = jnp.where(count_ge(c0) >= k, c0, prefix)

    thresh = pltpu.bitcast(prefix, jnp.float32)                         # (R,1,1); NaN if k==0
    gt = dense > thresh
    cnt_gt = jnp.sum(jnp.sum(gt.astype(jnp.float32), axis=2, keepdims=True),
                     axis=1, keepdims=True)
    sum_gt = jnp.sum(jnp.sum(jnp.where(gt, dense, 0.0), axis=2, keepdims=True),
                     axis=1, keepdims=True)
    topk_sum = sum_gt + (k.astype(jnp.float32) - cnt_gt) * thresh
    # Keep this as a select (NOT arithmetic masking): thresh is NaN when k == 0.
    topk_sum = jnp.where(k > 0, topk_sum, 0.0)

    closs = jnp.sum(con * maskf, axis=2, keepdims=True) + topk_sum      # (R,1,1)

    # ---------------- combine ------------------------------------------------
    total = sl1_sum + closs
    num_mask = (pos_f > 0).astype(jnp.float32)
    per_row = total * num_mask / jnp.maximum(pos_f, 1e-6)               # (R,1,1)
    out_ref[...] = jnp.broadcast_to(per_row, (r, 1, 128))               # lane-dense out


def ssd_loss(ploc, plabel, gloc, glabel, dboxes, *, block_rows=2,
             vmem_limit_bytes=48 * 1024 * 1024):
    n, _, d = ploc.shape
    c = plabel.shape[1]

    r = max(1, int(block_rows))            # v7x: keep <= 2; v5e/v6e: 4-8 is fine
    dp = ((d + 1023) // 1024) * 1024       # pad D to a multiple of 8*128
    n_pad = -(-n // r) * r                 # pad N to a multiple of the row block

    def pad3(x, value):
        return jnp.pad(x.astype(jnp.float32),
                       ((0, n_pad - x.shape[0]), (0, 0), (0, dp - x.shape[2])),
                       constant_values=value)

    ploc_p = pad3(ploc, 0.0)
    plabel_p = pad3(plabel, 0.0)
    gloc_p = pad3(gloc, 1.0)               # 1.0 keeps log()/division finite in padding
    glabel_p = jnp.pad(glabel.astype(jnp.int32).reshape(n, 1, d),
                       ((0, n_pad - n), (0, 0), (0, dp - d)), constant_values=0)

    db = jnp.pad(dboxes.astype(jnp.float32), ((0, 0), (0, 0), (0, dp - d)),
                 constant_values=1.0)
    # Hoist constant dboxes math out of the per-row loop.
    dbp = jnp.concatenate([db[:, :2, :], 1.0 / db[:, 2:, :],
                           jnp.log(db[:, 2:, :])], axis=1)               # (1,6,Dp)

    kernel = functools.partial(_ssd_loss_kernel, d_valid=d)

    out = pl.pallas_call(
        kernel,
        out_shape=jax.ShapeDtypeStruct((n_pad, 1, 128), jnp.float32),
        grid=(n_pad // r,),
        in_specs=[
            pl.BlockSpec((r, 4, dp), lambda i: (i, 0, 0)),   # ploc
            pl.BlockSpec((r, c, dp), lambda i: (i, 0, 0)),   # plabel
            pl.BlockSpec((r, 4, dp), lambda i: (i, 0, 0)),   # gloc
            pl.BlockSpec((r, 1, dp), lambda i: (i, 0, 0)),   # glabel
            pl.BlockSpec((1, 6, dp), lambda i: (0, 0, 0)),   # dboxes pre-compute (shared)
        ],
        out_specs=pl.BlockSpec((r, 1, 128), lambda i: (i, 0, 0)),
        compiler_params=pltpu.CompilerParams(
            dimension_semantics=("parallel",),
            vmem_limit_bytes=vmem_limit_bytes),
    )(ploc_p, plabel_p, gloc_p, glabel_p, dbp)

    return jnp.mean(out[:n, 0, 0])


def ssd_loss_ref(ploc, plabel, gloc, glabel, dboxes):
    """Pure-JAX reference mirroring the PyTorch module (stable sort for ties)."""
    mask = glabel > 0
    maskf = mask.astype(jnp.float32)
    pos_num = jnp.sum(maskf, axis=1)
    gxy = SCALE_XY * (gloc[:, :2, :] - dboxes[:, :2, :]) / dboxes[:, 2:, :]
    gwh = SCALE_WH * jnp.log(gloc[:, 2:, :] / dboxes[:, 2:, :])
    vec_gd = jnp.concatenate([gxy, gwh], axis=1)
    diff = ploc - vec_gd
    ad = jnp.abs(diff)
    sl1 = jnp.where(ad < 1.0, 0.5 * diff * diff, ad - 0.5).sum(axis=1)
    sl1 = (maskf * sl1).sum(axis=1)
    logp = jax.nn.log_softmax(plabel, axis=1)
    con = -jnp.take_along_axis(logp, glabel[:, None, :], axis=1)[:, 0, :]
    con_neg = jnp.where(mask, 0.0, con)
    con_idx = jnp.argsort(-con_neg, axis=1)      # stable descending
    con_rank = jnp.argsort(con_idx, axis=1)
    neg_num = jnp.clip(3 * pos_num, max=mask.shape[1])[:, None]
    neg_mask = con_rank < neg_num
    closs = (con * jnp.logical_or(mask, neg_mask).astype(jnp.float32)).sum(axis=1)
    total = sl1 + closs
    num_mask = (pos_num > 0).astype(jnp.float32)
    pos_num = jnp.maximum(pos_num, 1e-6)
    return jnp.mean(total * num_mask / pos_num)


if __name__ == "__main__":
    N, C, D = 2, 8, 256   # batch, num classes, num default boxes (8732 in real SSD)
    key = jax.random.PRNGKey(0)
    k1, k2, k3, k4, k5, k6, k7, k8 = jax.random.split(key, 8)

    ploc = jax.random.normal(k1, (N, 4, D), jnp.float32)
    plabel = jax.random.normal(k2, (N, C, D), jnp.float32)

    # ground-truth boxes in xywh: xy in (0,1), wh strictly positive (log is taken)
    g_xy = jax.random.uniform(k3, (N, 2, D), jnp.float32, 0.05, 0.95)
    g_wh = jax.random.uniform(k4, (N, 2, D), jnp.float32, 0.05, 0.95)
    gloc = jnp.concatenate([g_xy, g_wh], axis=1)

    # sparse positives (~15%) so hard-negative mining actually selects a subset
    lbl = jax.random.randint(k5, (N, D), 1, C, jnp.int32)
    is_pos = jax.random.uniform(k6, (N, D)) < 0.15
    glabel = jnp.where(is_pos, lbl, 0).astype(jnp.int32)

    # deterministic synthetic default boxes (xywh), replaces dboxes(order='xywh')
    d_xy = jax.random.uniform(k7, (1, 2, D), jnp.float32, 0.05, 0.95)
    d_wh = jax.random.uniform(k8, (1, 2, D), jnp.float32, 0.05, 0.95)
    dboxes = jnp.concatenate([d_xy, d_wh], axis=1)

    loss = ssd_loss(ploc, plabel, gloc, glabel, dboxes)
    jax.block_until_ready(loss)
    ref = ssd_loss_ref(ploc, plabel, gloc, glabel, dboxes)
    np.testing.assert_allclose(np.asarray(loss), np.asarray(ref), rtol=5e-3, atol=5e-3)

    # edge case: a row with zero positives (exercises the k == 0 guard)
    glabel0 = glabel.at[0].set(0)
    loss0 = ssd_loss(ploc, plabel, gloc, glabel0, dboxes)
    jax.block_until_ready(loss0)
    ref0 = ssd_loss_ref(ploc, plabel, gloc, glabel0, dboxes)
    np.testing.assert_allclose(np.asarray(loss0), np.asarray(ref0), rtol=5e-3, atol=5e-3)

    print("KERNEL_OK")
</pallas_src>

<mosaic_0001>
module attributes {stable_mosaic.version = 11 : i64} {
  func.func @_ssd_loss_kernel(%arg0: i32, %arg1: memref<2x4x1024xf32, #tpu.memory_space<vmem>>, %arg2: memref<2x8x1024xf32, #tpu.memory_space<vmem>>, %arg3: memref<2x4x1024xf32, #tpu.memory_space<vmem>>, %arg4: memref<2x1x1024xi32, #tpu.memory_space<vmem>>, %arg5: memref<1x6x1024xf32, #tpu.memory_space<vmem>>, %arg6: memref<2x1x128xf32, #tpu.memory_space<vmem>>) attributes {dimension_semantics = [#tpu.dimension_semantics<parallel>], iteration_bounds = array<i64: 1>, scalar_prefetch = 0 : i64, scratch_operands = 0 : i64, tpu.core_type = #tpu.core_type<tc>, window_params = [{transform_indices = @transform_0, window_bounds = array<i64: 2, 4, 1024>}, {transform_indices = @transform_1, window_bounds = array<i64: 2, 8, 1024>}, {transform_indices = @transform_2, window_bounds = array<i64: 2, 4, 1024>}, {transform_indices = @transform_3, window_bounds = array<i64: 2, 1, 1024>}, {pipeline_mode = #tpu.pipeline_mode<synchronous>, transform_indices = @transform_4, window_bounds = array<i64: 1, 6, 1024>}, {transform_indices = @transform_5, window_bounds = array<i64: 2, 1, 128>}]} {
    %c0 = arith.constant 0 : index
    %c0_0 = arith.constant 0 : index
    %c0_1 = arith.constant 0 : index
    %0 = vector.load %arg1[%c0, %c0_0, %c0_1] : memref<2x4x1024xf32, #tpu.memory_space<vmem>>, vector<2x4x1024xf32>
    %c0_2 = arith.constant 0 : index
    %c0_3 = arith.constant 0 : index
    %c0_4 = arith.constant 0 : index
    %1 = vector.load %arg2[%c0_2, %c0_3, %c0_4] : memref<2x8x1024xf32, #tpu.memory_space<vmem>>, vector<2x8x1024xf32>
    %c0_5 = arith.constant 0 : index
    %c0_6 = arith.constant 0 : index
    %c0_7 = arith.constant 0 : index
    %2 = vector.load %arg3[%c0_5, %c0_6, %c0_7] : memref<2x4x1024xf32, #tpu.memory_space<vmem>>, vector<2x4x1024xf32>
    %c0_8 = arith.constant 0 : index
    %c0_9 = arith.constant 0 : index
    %c0_10 = arith.constant 0 : index
    %3 = vector.load %arg4[%c0_8, %c0_9, %c0_10] : memref<2x1x1024xi32, #tpu.memory_space<vmem>>, vector<2x1x1024xi32>
    %c0_11 = arith.constant 0 : index
    %c0_12 = arith.constant 0 : index
    %c0_13 = arith.constant 0 : index
    %4 = vector.load %arg5[%c0_11, %c0_12, %c0_13] : memref<1x6x1024xf32, #tpu.memory_space<vmem>>, vector<1x6x1024xf32>
    %5 = vector.extract_strided_slice %4 {offsets = [0, 0, 0], sizes = [1, 2, 1024], strides = [1, 1, 1]} : vector<1x6x1024xf32> to vector<1x2x1024xf32>
    %6 = vector.extract_strided_slice %4 {offsets = [0, 2, 0], sizes = [1, 2, 1024], strides = [1, 1, 1]} : vector<1x6x1024xf32> to vector<1x2x1024xf32>
    %7 = vector.extract_strided_slice %4 {offsets = [0, 4, 0], sizes = [1, 2, 1024], strides = [1, 1, 1]} : vector<1x6x1024xf32> to vector<1x2x1024xf32>
    %c0_i32 = arith.constant 0 : i32
    %8 = vector.broadcast %c0_i32 : i32 to vector<2x1x1024xi32>
    %9 = arith.cmpi sgt, %3, %8 : vector<2x1x1024xi32>
    %10 = arith.extui %9 : vector<2x1x1024xi1> to vector<2x1x1024xi32>
    %11 = arith.sitofp %10 : vector<2x1x1024xi32> to vector<2x1x1024xf32>
    %12 = arith.extui %9 : vector<2x1x1024xi1> to vector<2x1x1024xi32>
    %cst = arith.constant dense<0> : vector<2x1xi32>
    %13 = vector.multi_reduction <add>, %12, %cst [2] : vector<2x1x1024xi32> to vector<2x1xi32>
    %14 = vector.shape_cast %13 : vector<2x1xi32> to vector<2x1x1xi32>
    %15 = arith.sitofp %14 : vector<2x1x1xi32> to vector<2x1x1xf32>
    %16 = vector.extract_strided_slice %2 {offsets = [0, 0, 0], sizes = [2, 2, 1024], strides = [1, 1, 1]} : vector<2x4x1024xf32> to vector<2x2x1024xf32>
    %17 = vector.broadcast %5 : vector<1x2x1024xf32> to vector<2x2x1024xf32>
    %18 = arith.subf %16, %17 : vector<2x2x1024xf32>
    %cst_14 = arith.constant 1.000000e+01 : f32
    %19 = vector.broadcast %cst_14 : f32 to vector<2x2x1024xf32>
    %20 = arith.mulf %19, %18 : vector<2x2x1024xf32>
    %21 = vector.broadcast %6 : vector<1x2x1024xf32> to vector<2x2x1024xf32>
    %22 = arith.mulf %20, %21 : vector<2x2x1024xf32>
    %23 = vector.extract_strided_slice %2 {offsets = [0, 2, 0], sizes = [2, 2, 1024], strides = [1, 1, 1]} : vector<2x4x1024xf32> to vector<2x2x1024xf32>
    %24 = math.log %23 : vector<2x2x1024xf32>
    %25 = vector.broadcast %7 : vector<1x2x1024xf32> to vector<2x2x1024xf32>
    %26 = arith.subf %24, %25 : vector<2x2x1024xf32>
    %cst_15 = arith.constant 5.000000e+00 : f32
    %27 = vector.broadcast %cst_15 : f32 to vector<2x2x1024xf32>
    %28 = arith.mulf %27, %26 : vector<2x2x1024xf32>
    %29 = vector.extract_strided_slice %0 {offsets = [0, 0, 0], sizes = [2, 2, 1024], strides = [1, 1, 1]} : vector<2x4x1024xf32> to vector<2x2x1024xf32>
    %30 = arith.subf %29, %22 : vector<2x2x1024xf32>
    %31 = math.absf %30 : vector<2x2x1024xf32>
    %cst_16 = arith.constant 1.000000e+00 : f32
    %32 = vector.broadcast %cst_16 : f32 to vector<2x2x1024xf32>
    %33 = arith.cmpf olt, %31, %32 : vector<2x2x1024xf32>
    %cst_17 = arith.constant 5.000000e-01 : f32
    %34 = vector.broadcast %cst_17 : f32 to vector<2x2x1024xf32>
    %35 = arith.mulf %34, %30 : vector<2x2x1024xf32>
    %36 = arith.mulf %35, %30 : vector<2x2x1024xf32>
    %cst_18 = arith.constant 5.000000e-01 : f32
    %37 = vector.broadcast %cst_18 : f32 to vector<2x2x1024xf32>
    %38 = arith.subf %31, %37 : vector<2x2x1024xf32>
    %39 = arith.select %33, %36, %38 : vector<2x2x1024xi1>, vector<2x2x1024xf32>
    %cst_19 = arith.constant dense<0.000000e+00> : vector<2x1024xf32>
    %40 = vector.multi_reduction <add>, %39, %cst_19 [1] : vector<2x2x1024xf32> to vector<2x1024xf32>
    %41 = vector.shape_cast %40 : vector<2x1024xf32> to vector<2x1x1024xf32>
    %42 = vector.extract_strided_slice %0 {offsets = [0, 2, 0], sizes = [2, 2, 1024], strides = [1, 1, 1]} : vector<2x4x1024xf32> to vector<2x2x1024xf32>
    %43 = arith.subf %42, %28 : vector<2x2x1024xf32>
    %44 = math.absf %43 : vector<2x2x1024xf32>
    %cst_20 = arith.constant 1.000000e+00 : f32
    %45 = vector.broadcast %cst_20 : f32 to vector<2x2x1024xf32>
    %46 = arith.cmpf olt, %44, %45 : vector<2x2x1024xf32>
    %cst_21 = arith.constant 5.000000e-01 : f32
    %47 = vector.broadcast %cst_21 : f32 to vector<2x2x1024xf32>
    %48 = arith.mulf %47, %43 : vector<2x2x1024xf32>
    %49 = arith.mulf %48, %43 : vector<2x2x1024xf32>
    %cst_22 = arith.constant 5.000000e-01 : f32
    %50 = vector.broadcast %cst_22 : f32 to vector<2x2x1024xf32>
    %51 = arith.subf %44, %50 : vector<2x2x1024xf32>
    %52 = arith.select %46, %49, %51 : vector<2x2x1024xi1>, vector<2x2x1024xf32>
    %cst_23 = arith.constant dense<0.000000e+00> : vector<2x1024xf32>
    %53 = vector.multi_reduction <add>, %52, %cst_23 [1] : vector<2x2x1024xf32> to vector<2x1024xf32>
    %54 = vector.shape_cast %53 : vector<2x1024xf32> to vector<2x1x1024xf32>
    %55 = arith.addf %41, %54 : vector<2x1x1024xf32>
    %56 = arith.mulf %11, %55 : vector<2x1x1024xf32>
    %cst_24 = arith.constant dense<0.000000e+00> : vector<2x1xf32>
    %57 = vector.multi_reduction <add>, %56, %cst_24 [2] : vector<2x1x1024xf32> to vector<2x1xf32>
    %58 = vector.shape_cast %57 : vector<2x1xf32> to vector<2x1x1xf32>
    %cst_25 = arith.constant dense<0xFF800000> : vector<2x1024xf32>
    %59 = vector.multi_reduction <maximumf>, %1, %cst_25 [1] : vector<2x8x1024xf32> to vector<2x1024xf32>
    %60 = vector.shape_cast %59 : vector<2x1024xf32> to vector<2x1x1024xf32>
    %61 = vector.broadcast %60 : vector<2x1x1024xf32> to vector<2x8x1024xf32>
    %62 = arith.subf %1, %61 : vector<2x8x1024xf32>
    %63 = math.exp %62 : vector<2x8x1024xf32>
    %cst_26 = arith.constant dense<0.000000e+00> : vector<2x1024xf32>
    %64 = vector.multi_reduction <add>, %63, %cst_26 [1] : vector<2x8x1024xf32> to vector<2x1024xf32>
    %65 = vector.shape_cast %64 : vector<2x1024xf32> to vector<2x1x1024xf32>
    %66 = math.log %65 : vector<2x1x1024xf32>
    %67 = arith.addf %66, %60 : vector<2x1x1024xf32>
    %68 = tpu.iota {dimensions = array<i32: 1>} : vector<1x8x1024xi32>
    %69 = vector.broadcast %68 : vector<1x8x1024xi32> to vector<2x8x1024xi32>
    %70 = vector.broadcast %3 : vector<2x1x1024xi32> to vector<2x8x1024xi32>
    %71 = arith.cmpi eq, %69, %70 : vector<2x8x1024xi32>
    %cst_27 = arith.constant 0.000000e+00 : f32
    %72 = vector.broadcast %cst_27 : f32 to vector<2x8x1024xf32>
    %73 = arith.select %71, %1, %72 : vector<2x8x1024xi1>, vector<2x8x1024xf32>
    %cst_28 = arith.constant dense<0.000000e+00> : vector<2x1024xf32>
    %74 = vector.multi_reduction <add>, %73, %cst_28 [1] : vector<2x8x1024xf32> to vector<2x1024xf32>
    %75 = vector.shape_cast %74 : vector<2x1024xf32> to vector<2x1x1024xf32>
    %76 = arith.subf %67, %75 : vector<2x1x1024xf32>
    %77 = tpu.iota {dimensions = array<i32: 2>} : vector<1x1x1024xi32>
    %c256_i32 = arith.constant 256 : i32
    %78 = vector.broadcast %c256_i32 : i32 to vector<1x1x1024xi32>
    %79 = arith.cmpi slt, %77, %78 : vector<1x1x1024xi32>
    %cst_29 = arith.constant dense<true> : vector<2x1x1024xi1>
    %80 = arith.xori %9, %cst_29 : vector<2x1x1024xi1>
    %81 = vector.broadcast %79 : vector<1x1x1024xi1> to vector<2x1x1024xi1>
    %82 = arith.andi %81, %80 : vector<2x1x1024xi1>
    %cst_30 = arith.constant 0.000000e+00 : f32
    %83 = vector.broadcast %cst_30 : f32 to vector<2x1x1024xf32>
    %84 = arith.select %82, %76, %83 : vector<2x1x1024xi1>, vector<2x1x1024xf32>
    %85 = vector.extract_strided_slice %84 {offsets = [0, 0, 0], sizes = [2, 1, 128], strides = [1, 1, 1]} : vector<2x1x1024xf32> to vector<2x1x128xf32>
    %86 = vector.extract_strided_slice %84 {offsets = [0, 0, 128], sizes = [2, 1, 128], strides = [1, 1, 1]} : vector<2x1x1024xf32> to vector<2x1x128xf32>
    %87 = vector.extract_strided_slice %84 {offsets = [0, 0, 256], sizes = [2, 1, 128], strides = [1, 1, 1]} : vector<2x1x1024xf32> to vector<2x1x128xf32>
    %88 = vector.extract_strided_slice %84 {offsets = [0, 0, 384], sizes = [2, 1, 128], strides = [1, 1, 1]} : vector<2x1x1024xf32> to vector<2x1x128xf32>
    %89 = vector.extract_strided_slice %84 {offsets = [0, 0, 512], sizes = [2, 1, 128], strides = [1, 1, 1]} : vector<2x1x1024xf32> to vector<2x1x128xf32>
    %90 = vector.extract_strided_slice %84 {offsets = [0, 0, 640], sizes = [2, 1, 128], strides = [1, 1, 1]} : vector<2x1x1024xf32> to vector<2x1x128xf32>
    %91 = vector.extract_strided_slice %84 {offsets = [0, 0, 768], sizes = [2, 1, 128], strides = [1, 1, 1]} : vector<2x1x1024xf32> to vector<2x1x128xf32>
    %92 = vector.extract_strided_slice %84 {offsets = [0, 0, 896], sizes = [2, 1, 128], strides = [1, 1, 1]} : vector<2x1x1024xf32> to vector<2x1x128xf32>
    %93 = tpu.concatenate %85, %86, %87, %88, %89, %90, %91, %92 in 1 : vector<2x1x128xf32>, vector<2x1x128xf32>, vector<2x1x128xf32>, vector<2x1x128xf32>, vector<2x1x128xf32>, vector<2x1x128xf32>, vector<2x1x128xf32>, vector<2x1x128xf32> -> vector<2x8x128xf32>
    %94 = tpu.bitcast %93 : vector<2x8x128xf32> -> vector<2x8x128xi32>
    %c0_i32_31 = arith.constant 0 : i32
    %95 = vector.broadcast %c0_i32_31 : i32 to vector<2x8x128xi32>
    %96 = arith.maxsi %94, %95 : vector<2x8x128xi32>
    %c3_i32 = arith.constant 3 : i32
    %97 = vector.broadcast %c3_i32 : i32 to vector<2x1x1xi32>
    %98 = arith.muli %97, %14 : vector<2x1x1xi32>
    %c256_i32_32 = arith.constant 256 : i32
    %99 = vector.broadcast %c256_i32_32 : i32 to vector<2x1x1xi32>
    %100 = arith.minsi %98, %99 : vector<2x1x1xi32>
    %c0_i32_33 = arith.constant 0 : i32
    %101 = vector.broadcast %c0_i32_33 : i32 to vector<2x1x1xi32>
    %c536870912_i32 = arith.constant 536870912 : i32
    %102 = vector.broadcast %c536870912_i32 : i32 to vector<2x1x1xi32>
    %103 = arith.ori %101, %102 : vector<2x1x1xi32>
    %c1073741824_i32 = arith.constant 1073741824 : i32
    %104 = vector.broadcast %c1073741824_i32 : i32 to vector<2x1x1xi32>
    %105 = arith.ori %101, %104 : vector<2x1x1xi32>
    %c1610612736_i32 = arith.constant 1610612736 : i32
    %106 = vector.broadcast %c1610612736_i32 : i32 to vector<2x1x1xi32>
    %107 = arith.ori %101, %106 : vector<2x1x1xi32>
    %108 = vector.broadcast %103 : vector<2x1x1xi32> to vector<2x8x128xi32>
    %109 = arith.cmpi sge, %96, %108 : vector<2x8x128xi32>
    %110 = arith.extui %109 : vector<2x8x128xi1> to vector<2x8x128xi32>
    %cst_34 = arith.constant dense<0> : vector<2x8xi32>
    %111 = vector.multi_reduction <add>, %110, %cst_34 [2] : vector<2x8x128xi32> to vector<2x8xi32>
    %112 = vector.shape_cast %111 : vector<2x8xi32> to vector<2x8x1xi32>
    %cst_35 = arith.constant dense<0> : vector<2x1xi32>
    %113 = vector.multi_reduction <add>, %112, %cst_35 [1] : vector<2x8x1xi32> to vector<2x1xi32>
    %114 = vector.shape_cast %113 : vector<2x1xi32> to vector<2x1x1xi32>
    %115 = vector.broadcast %105 : vector<2x1x1xi32> to vector<2x8x128xi32>
    %116 = arith.cmpi sge, %96, %115 : vector<2x8x128xi32>
    %117 = arith.extui %116 : vector<2x8x128xi1> to vector<2x8x128xi32>
    %cst_36 = arith.constant dense<0> : vector<2x8xi32>
    %118 = vector.multi_reduction <add>, %117, %cst_36 [2] : vector<2x8x128xi32> to vector<2x8xi32>
    %119 = vector.shape_cast %118 : vector<2x8xi32> to vector<2x8x1xi32>
    %cst_37 = arith.constant dense<0> : vector<2x1xi32>
    %120 = vector.multi_reduction <add>, %119, %cst_37 [1] : vector<2x8x1xi32> to vector<2x1xi32>
    %121 = vector.shape_cast %120 : vector<2x1xi32> to vector<2x1x1xi32>
    %122 = vector.broadcast %107 : vector<2x1x1xi32> to vector<2x8x128xi32>
    %123 = arith.cmpi sge, %96, %122 : vector<2x8x128xi32>
    %124 = arith.extui %123 : vector<2x8x128xi1> to vector<2x8x128xi32>
    %cst_38 = arith.constant dense<0> : vector<2x8xi32>
    %125 = vector.multi_reduction <add>, %124, %cst_38 [2] : vector<2x8x128xi32> to vector<2x8xi32>
    %126 = vector.shape_cast %125 : vector<2x8xi32> to vector<2x8x1xi32>
    %cst_39 = arith.constant dense<0> : vector<2x1xi32>
    %127 = vector.multi_reduction <add>, %126, %cst_39 [1] : vector<2x8x1xi32> to vector<2x1xi32>
    %128 = vector.shape_cast %127 : vector<2x1xi32> to vector<2x1x1xi32>
    %129 = arith.cmpi sge, %128, %100 : vector<2x1x1xi32>
    %130 = arith.cmpi sge, %121, %100 : vector<2x1x1xi32>
    %131 = arith.cmpi sge, %114, %100 : vector<2x1x1xi32>
    %132 = arith.select %131, %103, %101 : vector<2x1x1xi1>, vector<2x1x1xi32>
    %133 = arith.select %130, %105, %132 : vector<2x1x1xi1>, vector<2x1x1xi32>
    %134 = arith.select %129, %107, %133 : vector<2x1x1xi1>, vector<2x1x1xi32>
    %c134217728_i32 = arith.constant 134217728 : i32
    %135 = vector.broadcast %c134217728_i32 : i32 to vector<2x1x1xi32>
    %136 = arith.ori %134, %135 : vector<2x1x1xi32>
    %c268435456_i32 = arith.constant 268435456 : i32
    %137 = vector.broadcast %c268435456_i32 : i32 to vector<2x1x1xi32>
    %138 = arith.ori %134, %137 : vector<2x1x1xi32>
    %c402653184_i32 = arith.constant 402653184 : i32
    %139 = vector.broadcast %c402653184_i32 : i32 to vector<2x1x1xi32>
    %140 = arith.ori %134, %139 : vector<2x1x1xi32>
    %141 = vector.broadcast %136 : vector<2x1x1xi32> to vector<2x8x128xi32>
    %142 = arith.cmpi sge, %96, %141 : vector<2x8x128xi32>
    %143 = arith.extui %142 : vector<2x8x128xi1> to vector<2x8x128xi32>
    %cst_40 = arith.constant dense<0> : vector<2x8xi32>
    %144 = vector.multi_reduction <add>, %143, %cst_40 [2] : vector<2x8x128xi32> to vector<2x8xi32>
    %145 = vector.shape_cast %144 : vector<2x8xi32> to vector<2x8x1xi32>
    %cst_41 = arith.constant dense<0> : vector<2x1xi32>
    %146 = vector.multi_reduction <add>, %145, %cst_41 [1] : vector<2x8x1xi32> to vector<2x1xi32>
    %147 = vector.shape_cast %146 : vector<2x1xi32> to vector<2x1x1xi32>
    %148 = vector.broadcast %138 : vector<2x1x1xi32> to vector<2x8x128xi32>
    %149 = arith.cmpi sge, %96, %148 : vector<2x8x128xi32>
    %150 = arith.extui %149 : vector<2x8x128xi1> to vector<2x8x128xi32>
    %cst_42 = arith.constant dense<0> : vector<2x8xi32>
    %151 = vector.multi_reduction <add>, %150, %cst_42 [2] : vector<2x8x128xi32> to vector<2x8xi32>
    %152 = vector.shape_cast %151 : vector<2x8xi32> to vector<2x8x1xi32>
    %cst_43 = arith.constant dense<0> : vector<2x1xi32>
    %153 = vector.multi_reduction <add>, %152, %cst_43 [1] : vector<2x8x1xi32> to vector<2x1xi32>
    %154 = vector.shape_cast %153 : vector<2x1xi32> to vector<2x1x1xi32>
    %155 = vector.broadcast %140 : vector<2x1x1xi32> to vector<2x8x128xi32>
    %156 = arith.cmpi sge, %96, %155 : vector<2x8x128xi32>
    %157 = arith.extui %156 : vector<2x8x128xi1> to vector<2x8x128xi32>
    %cst_44 = arith.constant dense<0> : vector<2x8xi32>
    %158 = vector.multi_reduction <add>, %157, %cst_44 [2] : vector<2x8x128xi32> to vector<2x8xi32>
    %159 = vector.shape_cast %158 : vector<2x8xi32> to vector<2x8x1xi32>
    %cst_45 = arith.constant dense<0> : vector<2x1xi32>
    %160 = vector.multi_reduction <add>, %159, %cst_45 [1] : vector<2x8x1xi32> to vector<2x1xi32>
    %161 = vector.shape_cast %160 : vector<2x1xi32> to vector<2x1x1xi32>
    %162 = arith.cmpi sge, %161, %100 : vector<2x1x1xi32>
    %163 = arith.cmpi sge, %154, %100 : vector<2x1x1xi32>
    %164 = arith.cmpi sge, %147, %100 : vector<2x1x1xi32>
    %165 = arith.select %164, %136, %134 : vector<2x1x1xi1>, vector<2x1x1xi32>
    %166 = arith.select %163, %138, %165 : vector<2x1x1xi1>, vector<2x1x1xi32>
    %167 = arith.select %162, %140, %166 : vector<2x1x1xi1>, vector<2x1x1xi32>
    %c33554432_i32 = arith.constant 33554432 : i32
    %168 = vector.broadcast %c33554432_i32 : i32 to vector<2x1x1xi32>
    %169 = arith.ori %167, %168 : vector<2x1x1xi32>
    %c67108864_i32 = arith.constant 67108864 : i32
    %170 = vector.broadcast %c67108864_i32 : i32 to vector<2x1x1xi32>
    %171 = arith.ori %167, %170 : vector<2x1x1xi32>
    %c100663296_i32 = arith.constant 100663296 : i32
    %172 = vector.broadcast %c100663296_i32 : i32 to vector<2x1x1xi32>
    %173 = arith.ori %167, %172 : vector<2x1x1xi32>
    %174 = vector.broadcast %169 : vector<2x1x1xi32> to vector<2x8x128xi32>
    %175 = arith.cmpi sge, %96, %174 : vector<2x8x128xi32>
    %176 = arith.extui %175 : vector<2x8x128xi1> to vector<2x8x128xi32>
    %cst_46 = arith.constant dense<0> : vector<2x8xi32>
    %177 = vector.multi_reduction <add>, %176, %cst_46 [2] : vector<2x8x128xi32> to vector<2x8xi32>
    %178 = vector.shape_cast %177 : vector<2x8xi32> to vector<2x8x1xi32>
    %cst_47 = arith.constant dense<0> : vector<2x1xi32>
    %179 = vector.multi_reduction <add>, %178, %cst_47 [1] : vector<2x8x1xi32> to vector<2x1xi32>
    %180 = vector.shape_cast %179 : vector<2x1xi32> to vector<2x1x1xi32>
    %181 = vector.broadcast %171 : vector<2x1x1xi32> to vector<2x8x128xi32>
    %182 = arith.cmpi sge, %96, %181 : vector<2x8x128xi32>
    %183 = arith.extui %182 : vector<2x8x128xi1> to vector<2x8x128xi32>
    %cst_48 = arith.constant dense<0> : vector<2x8xi32>
    %184 = vector.multi_reduction <add>, %183, %cst_48 [2] : vector<2x8x128xi32> to vector<2x8xi32>
    %185 = vector.shape_cast %184 : vector<2x8xi32> to vector<2x8x1xi32>
    %cst_49 = arith.constant dense<0> : vector<2x1xi32>
    %186 = vector.multi_reduction <add>, %185, %cst_49 [1] : vector<2x8x1xi32> to vector<2x1xi32>
    %187 = vector.shape_cast %186 : vector<2x1xi32> to vector<2x1x1xi32>
    %188 = vector.broadcast %173 : vector<2x1x1xi32> to vector<2x8x128xi32>
    %189 = arith.cmpi sge, %96, %188 : vector<2x8x128xi32>
    %190 = arith.extui %189 : vector<2x8x128xi1> to vector<2x8x128xi32>
    %cst_50 = arith.constant dense<0> : vector<2x8xi32>
    %191 = vector.multi_reduction <add>, %190, %cst_50 [2] : vector<2x8x128xi32> to vector<2x8xi32>
    %192 = vector.shape_cast %191 : vector<2x8xi32> to vector<2x8x1xi32>
    %cst_51 = arith.constant dense<0> : vector<2x1xi32>
    %193 = vector.multi_reduction <add>, %192, %cst_51 [1] : vector<2x8x1xi32> to vector<2x1xi32>
    %194 = vector.shape_cast %193 : vector<2x1xi32> to vector<2x1x1xi32>
    %195 = arith.cmpi sge, %194, %100 : vector<2x1x1xi32>
    %196 = arith.cmpi sge, %187, %100 : vector<2x1x1xi32>
    %197 = arith.cmpi sge, %180, %100 : vector<2x1x1xi32>
    %198 = arith.select %197, %169, %167 : vector<2x1x1xi1>, vector<2x1x1xi32>
    %199 = arith.select %196, %171, %198 : vector<2x1x1xi1>, vector<2x1x1xi32>
    %200 = arith.select %195, %173, %199 : vector<2x1x1xi1>, vector<2x1x1xi32>
    %c8388608_i32 = arith.constant 8388608 : i32
    %201 = vector.broadcast %c8388608_i32 : i32 to vector<2x1x1xi32>
    %202 = arith.ori %200, %201 : vector<2x1x1xi32>
    %c16777216_i32 = arith.constant 16777216 : i32
    %203 = vector.broadcast %c16777216_i32 : i32 to vector<2x1x1xi32>
    %204 = arith.ori %200, %203 : vector<2x1x1xi32>
    %c25165824_i32 = arith.constant 25165824 : i32
    %205 = vector.broadcast %c25165824_i32 : i32 to vector<2x1x1xi32>
    %206 = arith.ori %200, %205 : vector<2x1x1xi32>
    %207 = vector.broadcast %202 : vector<2x1x1xi32> to vector<2x8x128xi32>
    %208 = arith.cmpi sge, %96, %207 : vector<2x8x128xi32>
    %209 = arith.extui %208 : vector<2x8x128xi1> to vector<2x8x128xi32>
    %cst_52 = arith.constant dense<0> : vector<2x8xi32>
    %210 = vector.multi_reduction <add>, %209, %cst_52 [2] : vector<2x8x128xi32> to vector<2x8xi32>
    %211 = vector.shape_cast %210 : vector<2x8xi32> to vector<2x8x1xi32>
    %cst_53 = arith.constant dense<0> : vector<2x1xi32>
    %212 = vector.multi_reduction <add>, %211, %cst_53 [1] : vector<2x8x1xi32> to vector<2x1xi32>
    %213 = vector.shape_cast %212 : vector<2x1xi32> to vector<2x1x1xi32>
    %214 = vector.broadcast %204 : vector<2x1x1xi32> to vector<2x8x128xi32>
    %215 = arith.cmpi sge, %96, %214 : vector<2x8x128xi32>
    %216 = arith.extui %215 : vector<2x8x128xi1> to vector<2x8x128xi32>
    %cst_54 = arith.constant dense<0> : vector<2x8xi32>
    %217 = vector.multi_reduction <add>, %216, %cst_54 [2] : vector<2x8x128xi32> to vector<2x8xi32>
    %218 = vector.shape_cast %217 : vector<2x8xi32> to vector<2x8x1xi32>
    %cst_55 = arith.constant dense<0> : vector<2x1xi32>
    %219 = vector.multi_reduction <add>, %218, %cst_55 [1] : vector<2x8x1xi32> to vector<2x1xi32>
    %220 = vector.shape_cast %219 : vector<2x1xi32> to vector<2x1x1xi32>
    %221 = vector.broadcast %206 : vector<2x1x1xi32> to vector<2x8x128xi32>
    %222 = arith.cmpi sge, %96, %221 : vector<2x8x128xi32>
    %223 = arith.extui %222 : vector<2x8x128xi1> to vector<2x8x128xi32>
    %cst_56 = arith.constant dense<0> : vector<2x8xi32>
    %224 = vector.multi_reduction <add>, %223, %cst_56 [2] : vector<2x8x128xi32> to vector<2x8xi32>
    %225 = vector.shape_cast %224 : vector<2x8xi32> to vector<2x8x1xi32>
    %cst_57 = arith.constant dense<0> : vector<2x1xi32>
    %226 = vector.multi_reduction <add>, %225, %cst_57 [1] : vector<2x8x1xi32> to vector<2x1xi32>
    %227 = vector.shape_cast %226 : vector<2x1xi32> to vector<2x1x1xi32>
    %228 = arith.cmpi sge, %227, %100 : vector<2x1x1xi32>
    %229 = arith.cmpi sge, %220, %100 : vector<2x1x1xi32>
    %230 = arith.cmpi sge, %213, %100 : vector<2x1x1xi32>
    %231 = arith.select %230, %202, %200 : vector<2x1x1xi1>, vector<2x1x1xi32>
    %232 = arith.select %229, %204, %231 : vector<2x1x1xi1>, vector<2x1x1xi32>
    %233 = arith.select %228, %206, %232 : vector<2x1x1xi1>, vector<2x1x1xi32>
    %c2097152_i32 = arith.constant 2097152 : i32
    %234 = vector.broadcast %c2097152_i32 : i32 to vector<2x1x1xi32>
    %235 = arith.ori %233, %234 : vector<2x1x1xi32>
    %c4194304_i32 = arith.constant 4194304 : i32
    %236 = vector.broadcast %c4194304_i32 : i32 to vector<2x1x1xi32>
    %237 = arith.ori %233, %236 : vector<2x1x1xi32>
    %c6291456_i32 = arith.constant 6291456 : i32
    %238 = vector.broadcast %c6291456_i32 : i32 to vector<2x1x1xi32>
    %239 = arith.ori %233, %238 : vector<2x1x1xi32>
    %240 = vector.broadcast %235 : vector<2x1x1xi32> to vector<2x8x128xi32>
    %241 = arith.cmpi sge, %96, %240 : vector<2x8x128xi32>
    %242 = arith.extui %241 : vector<2x8x128xi1> to vector<2x8x128xi32>
    %cst_58 = arith.constant dense<0> : vector<2x8xi32>
    %243 = vector.multi_reduction <add>, %242, %cst_58 [2] : vector<2x8x128xi32> to vector<2x8xi32>
    %244 = vector.shape_cast %243 : vector<2x8xi32> to vector<2x8x1xi32>
    %cst_59 = arith.constant dense<0> : vector<2x1xi32>
    %245 = vector.multi_reduction <add>, %244, %cst_59 [1] : vector<2x8x1xi32> to vector<2x1xi32>
    %246 = vector.shape_cast %245 : vector<2x1xi32> to vector<2x1x1xi32>
    %247 = vector.broadcast %237 : vector<2x1x1xi32> to vector<2x8x128xi32>
    %248 = arith.cmpi sge, %96, %247 : vector<2x8x128xi32>
    %249 = arith.extui %248 : vector<2x8x128xi1> to vector<2x8x128xi32>
    %cst_60 = arith.constant dense<0> : vector<2x8xi32>
    %250 = vector.multi_reduction <add>, %249, %cst_60 [2] : vector<2x8x128xi32> to vector<2x8xi32>
    %251 = vector.shape_cast %250 : vector<2x8xi32> to vector<2x8x1xi32>
    %cst_61 = arith.constant dense<0> : vector<2x1xi32>
    %252 = vector.multi_reduction <add>, %251, %cst_61 [1] : vector<2x8x1xi32> to vector<2x1xi32>
    %253 = vector.shape_cast %252 : vector<2x1xi32> to vector<2x1x1xi32>
    %254 = vector.broadcast %239 : vector<2x1x1xi32> to vector<2x8x128xi32>
    %255 = arith.cmpi sge, %96, %254 : vector<2x8x128xi32>
    %256 = arith.extui %255 : vector<2x8x128xi1> to vector<2x8x128xi32>
    %cst_62 = arith.constant dense<0> : vector<2x8xi32>
    %257 = vector.multi_reduction <add>, %256, %cst_62 [2] : vector<2x8x128xi32> to vector<2x8xi32>
    %258 = vector.shape_cast %257 : vector<2x8xi32> to vector<2x8x1xi32>
    %cst_63 = arith.constant dense<0> : vector<2x1xi32>
    %259 = vector.multi_reduction <add>, %258, %cst_63 [1] : vector<2x8x1xi32> to vector<2x1xi32>
    %260 = vector.shape_cast %259 : vector<2x1xi32> to vector<2x1x1xi32>
    %261 = arith.cmpi sge, %260, %100 : vector<2x1x1xi32>
    %262 = arith.cmpi sge, %253, %100 : vector<2x1x1xi32>
    %263 = arith.cmpi sge, %246, %100 : vector<2x1x1xi32>
    %264 = arith.select %263, %235, %233 : vector<2x1x1xi1>, vector<2x1x1xi32>
    %265 = arith.select %262, %237, %264 : vector<2x1x1xi1>, vector<2x1x1xi32>
    %266 = arith.select %261, %239, %265 : vector<2x1x1xi1>, vector<2x1x1xi32>
    %c524288_i32 = arith.constant 524288 : i32
    %267 = vector.broadcast %c524288_i32 : i32 to vector<2x1x1xi32>
    %268 = arith.ori %266, %267 : vector<2x1x1xi32>
    %c1048576_i32 = arith.constant 1048576 : i32
    %269 = vector.broadcast %c1048576_i32 : i32 to vector<2x1x1xi32>
    %270 = arith.ori %266, %269 : vector<2x1x1xi32>
    %c1572864_i32 = arith.constant 1572864 : i32
    %271 = vector.broadcast %c1572864_i32 : i32 to vector<2x1x1xi32>
    %272 = arith.ori %266, %271 : vector<2x1x1xi32>
    %273 = vector.broadcast %268 : vector<2x1x1xi32> to vector<2x8x128xi32>
    %274 = arith.cmpi sge, %96, %273 : vector<2x8x128xi32>
    %275 = arith.extui %274 : vector<2x8x128xi1> to vector<2x8x128xi32>
    %cst_64 = arith.constant dense<0> : vector<2x8xi32>
    %276 = vector.multi_reduction <add>, %275, %cst_64 [2] : vector<2x8x128xi32> to vector<2x8xi32>
    %277 = vector.shape_cast %276 : vector<2x8xi32> to vector<2x8x1xi32>
    %cst_65 = arith.constant dense<0> : vector<2x1xi32>
    %278 = vector.multi_reduction <add>, %277, %cst_65 [1] : vector<2x8x1xi32> to vector<2x1xi32>
    %279 = vector.shape_cast %278 : vector<2x1xi32> to vector<2x1x1xi32>
    %280 = vector.broadcast %270 : vector<2x1x1xi32> to vector<2x8x128xi32>
    %281 = arith.cmpi sge, %96, %280 : vector<2x8x128xi32>
    %282 = arith.extui %281 : vector<2x8x128xi1> to vector<2x8x128xi32>
    %cst_66 = arith.constant dense<0> : vector<2x8xi32>
    %283 = vector.multi_reduction <add>, %282, %cst_66 [2] : vector<2x8x128xi32> to vector<2x8xi32>
    %284 = vector.shape_cast %283 : vector<2x8xi32> to vector<2x8x1xi32>
    %cst_67 = arith.constant dense<0> : vector<2x1xi32>
    %285 = vector.multi_reduction <add>, %284, %cst_67 [1] : vector<2x8x1xi32> to vector<2x1xi32>
    %286 = vector.shape_cast %285 : vector<2x1xi32> to vector<2x1x1xi32>
    %287 = vector.broadcast %272 : vector<2x1x1xi32> to vector<2x8x128xi32>
    %288 = arith.cmpi sge, %96, %287 : vector<2x8x128xi32>
    %289 = arith.extui %288 : vector<2x8x128xi1> to vector<2x8x128xi32>
    %cst_68 = arith.constant dense<0> : vector<2x8xi32>
    %290 = vector.multi_reduction <add>, %289, %cst_68 [2] : vector<2x8x128xi32> to vector<2x8xi32>
    %291 = vector.shape_cast %290 : vector<2x8xi32> to vector<2x8x1xi32>
    %cst_69 = arith.constant dense<0> : vector<2x1xi32>
    %292 = vector.multi_reduction <add>, %291, %cst_69 [1] : vector<2x8x1xi32> to vector<2x1xi32>
    %293 = vector.shape_cast %292 : vector<2x1xi32> to vector<2x1x1xi32>
    %294 = arith.cmpi sge, %293, %100 : vector<2x1x1xi32>
    %295 = arith.cmpi sge, %286, %100 : vector<2x1x1xi32>
    %296 = arith.cmpi sge, %279, %100 : vector<2x1x1xi32>
    %297 = arith.select %296, %268, %266 : vector<2x1x1xi1>, vector<2x1x1xi32>
    %298 = arith.select %295, %270, %297 : vector<2x1x1xi1>, vector<2x1x1xi32>
    %299 = arith.select %294, %272, %298 : vector<2x1x1xi1>, vector<2x1x1xi32>
    %c131072_i32 = arith.constant 131072 : i32
    %300 = vector.broadcast %c131072_i32 : i32 to vector<2x1x1xi32>
    %301 = arith.ori %299, %300 : vector<2x1x1xi32>
    %c262144_i32 = arith.constant 262144 : i32
    %302 = vector.broadcast %c262144_i32 : i32 to vector<2x1x1xi32>
    %303 = arith.ori %299, %302 : vector<2x1x1xi32>
    %c393216_i32 = arith.constant 393216 : i32
    %304 = vector.broadcast %c393216_i32 : i32 to vector<2x1x1xi32>
    %305 = arith.ori %299, %304 : vector<2x1x1xi32>
    %306 = vector.broadcast %301 : vector<2x1x1xi32> to vector<2x8x128xi32>
    %307 = arith.cmpi sge, %96, %306 : vector<2x8x128xi32>
    %308 = arith.extui %307 : vector<2x8x128xi1> to vector<2x8x128xi32>
    %cst_70 = arith.constant dense<0> : vector<2x8xi32>
    %309 = vector.multi_reduction <add>, %308, %cst_70 [2] : vector<2x8x128xi32> to vector<2x8xi32>
    %310 = vector.shape_cast %309 : vector<2x8xi32> to vector<2x8x1xi32>
    %cst_71 = arith.constant dense<0> : vector<2x1xi32>
    %311 = vector.multi_reduction <add>, %310, %cst_71 [1] : vector<2x8x1xi32> to vector<2x1xi32>
    %312 = vector.shape_cast %311 : vector<2x1xi32> to vector<2x1x1xi32>
    %313 = vector.broadcast %303 : vector<2x1x1xi32> to vector<2x8x128xi32>
    %314 = arith.cmpi sge, %96, %313 : vector<2x8x128xi32>
    %315 = arith.extui %314 : vector<2x8x128xi1> to vector<2x8x128xi32>
    %cst_72 = arith.constant dense<0> : vector<2x8xi32>
    %316 = vector.multi_reduction <add>, %315, %cst_72 [2] : vector<2x8x128xi32> to vector<2x8xi32>
    %317 = vector.shape_cast %316 : vector<2x8xi32> to vector<2x8x1xi32>
    %cst_73 = arith.constant dense<0> : vector<2x1xi32>
    %318 = vector.multi_reduction <add>, %317, %cst_73 [1] : vector<2x8x1xi32> to vector<2x1xi32>
    %319 = vector.shape_cast %318 : vector<2x1xi32> to vector<2x1x1xi32>
    %320 = vector.broadcast %305 : vector<2x1x1xi32> to vector<2x8x128xi32>
    %321 = arith.cmpi sge, %96, %320 : vector<2x8x128xi32>
    %322 = arith.extui %321 : vector<2x8x128xi1> to vector<2x8x128xi32>
    %cst_74 = arith.constant dense<0> : vector<2x8xi32>
    %323 = vector.multi_reduction <add>, %322, %cst_74 [2] : vector<2x8x128xi32> to vector<2x8xi32>
    %324 = vector.shape_cast %323 : vector<2x8xi32> to vector<2x8x1xi32>
    %cst_75 = arith.constant dense<0> : vector<2x1xi32>
    %325 = vector.multi_reduction <add>, %324, %cst_75 [1] : vector<2x8x1xi32> to vector<2x1xi32>
    %326 = vector.shape_cast %325 : vector<2x1xi32> to vector<2x1x1xi32>
    %327 = arith.cmpi sge, %326, %100 : vector<2x1x1xi32>
    %328 = arith.cmpi sge, %319, %100 : vector<2x1x1xi32>
    %329 = arith.cmpi sge, %312, %100 : vector<2x1x1xi32>
    %330 = arith.select %329, %301, %299 : vector<2x1x1xi1>, vector<2x1x1xi32>
    %331 = arith.select %328, %303, %330 : vector<2x1x1xi1>, vector<2x1x1xi32>
    %332 = arith.select %327, %305, %331 : vector<2x1x1xi1>, vector<2x1x1xi32>
    %c32768_i32 = arith.constant 32768 : i32
    %333 = vector.broadcast %c32768_i32 : i32 to vector<2x1x1xi32>
    %334 = arith.ori %332, %333 : vector<2x1x1xi32>
    %c65536_i32 = arith.constant 65536 : i32
    %335 = vector.broadcast %c65536_i32 : i32 to vector<2x1x1xi32>
    %336 = arith.ori %332, %335 : vector<2x1x1xi32>
    %c98304_i32 = arith.constant 98304 : i32
    %337 = vector.broadcast %c98304_i32 : i32 to vector<2x1x1xi32>
    %338 = arith.ori %332, %337 : vector<2x1x1xi32>
    %339 = vector.broadcast %334 : vector<2x1x1xi32> to vector<2x8x128xi32>
    %340 = arith.cmpi sge, %96, %339 : vector<2x8x128xi32>
    %341 = arith.extui %340 : vector<2x8x128xi1> to vector<2x8x128xi32>
    %cst_76 = arith.constant dense<0> : vector<2x8xi32>
    %342 = vector.multi_reduction <add>, %341, %cst_76 [2] : vector<2x8x128xi32> to vector<2x8xi32>
    %343 = vector.shape_cast %342 : vector<2x8xi32> to vector<2x8x1xi32>
    %cst_77 = arith.constant dense<0> : vector<2x1xi32>
    %344 = vector.multi_reduction <add>, %343, %cst_77 [1] : vector<2x8x1xi32> to vector<2x1xi32>
    %345 = vector.shape_cast %344 : vector<2x1xi32> to vector<2x1x1xi32>
    %346 = vector.broadcast %336 : vector<2x1x1xi32> to vector<2x8x128xi32>
    %347 = arith.cmpi sge, %96, %346 : vector<2x8x128xi32>
    %348 = arith.extui %347 : vector<2x8x128xi1> to vector<2x8x128xi32>
    %cst_78 = arith.constant dense<0> : vector<2x8xi32>
    %349 = vector.multi_reduction <add>, %348, %cst_78 [2] : vector<2x8x128xi32> to vector<2x8xi32>
    %350 = vector.shape_cast %349 : vector<2x8xi32> to vector<2x8x1xi32>
    %cst_79 = arith.constant dense<0> : vector<2x1xi32>
    %351 = vector.multi_reduction <add>, %350, %cst_79 [1] : vector<2x8x1xi32> to vector<2x1xi32>
    %352 = vector.shape_cast %351 : vector<2x1xi32> to vector<2x1x1xi32>
    %353 = vector.broadcast %338 : vector<2x1x1xi32> to vector<2x8x128xi32>
    %354 = arith.cmpi sge, %96, %353 : vector<2x8x128xi32>
    %355 = arith.extui %354 : vector<2x8x128xi1> to vector<2x8x128xi32>
    %cst_80 = arith.constant dense<0> : vector<2x8xi32>
    %356 = vector.multi_reduction <add>, %355, %cst_80 [2] : vector<2x8x128xi32> to vector<2x8xi32>
    %357 = vector.shape_cast %356 : vector<2x8xi32> to vector<2x8x1xi32>
    %cst_81 = arith.constant dense<0> : vector<2x1xi32>
    %358 = vector.multi_reduction <add>, %357, %cst_81 [1] : vector<2x8x1xi32> to vector<2x1xi32>
    %359 = vector.shape_cast %358 : vector<2x1xi32> to vector<2x1x1xi32>
    %360 = arith.cmpi sge, %359, %100 : vector<2x1x1xi32>
    %361 = arith.cmpi sge, %352, %100 : vector<2x1x1xi32>
    %362 = arith.cmpi sge, %345, %100 : vector<2x1x1xi32>
    %363 = arith.select %362, %334, %332 : vector<2x1x1xi1>, vector<2x1x1xi32>
    %364 = arith.select %361, %336, %363 : vector<2x1x1xi1>, vector<2x1x1xi32>
    %365 = arith.select %360, %338, %364 : vector<2x1x1xi1>, vector<2x1x1xi32>
    %c8192_i32 = arith.constant 8192 : i32
    %366 = vector.broadcast %c8192_i32 : i32 to vector<2x1x1xi32>
    %367 = arith.ori %365, %366 : vector<2x1x1xi32>
    %c16384_i32 = arith.constant 16384 : i32
    %368 = vector.broadcast %c16384_i32 : i32 to vector<2x1x1xi32>
    %369 = arith.ori %365, %368 : vector<2x1x1xi32>
    %c24576_i32 = arith.constant 24576 : i32
    %370 = vector.broadcast %c24576_i32 : i32 to vector<2x1x1xi32>
    %371 = arith.ori %365, %370 : vector<2x1x1xi32>
    %372 = vector.broadcast %367 : vector<2x1x1xi32> to vector<2x8x128xi32>
    %373 = arith.cmpi sge, %96, %372 : vector<2x8x128xi32>
    %374 = arith.extui %373 : vector<2x8x128xi1> to vector<2x8x128xi32>
    %cst_82 = arith.constant dense<0> : vector<2x8xi32>
    %375 = vector.multi_reduction <add>, %374, %cst_82 [2] : vector<2x8x128xi32> to vector<2x8xi32>
    %376 = vector.shape_cast %375 : vector<2x8xi32> to vector<2x8x1xi32>
    %cst_83 = arith.constant dense<0> : vector<2x1xi32>
    %377 = vector.multi_reduction <add>, %376, %cst_83 [1] : vector<2x8x1xi32> to vector<2x1xi32>
    %378 = vector.shape_cast %377 : vector<2x1xi32> to vector<2x1x1xi32>
    %379 = vector.broadcast %369 : vector<2x1x1xi32> to vector<2x8x128xi32>
    %380 = arith.cmpi sge, %96, %379 : vector<2x8x128xi32>
    %381 = arith.extui %380 : vector<2x8x128xi1> to vector<2x8x128xi32>
    %cst_84 = arith.constant dense<0> : vector<2x8xi32>
    %382 = vector.multi_reduction <add>, %381, %cst_84 [2] : vector<2x8x128xi32> to vector<2x8xi32>
    %383 = vector.shape_cast %382 : vector<2x8xi32> to vector<2x8x1xi32>
    %cst_85 = arith.constant dense<0> : vector<2x1xi32>
    %384 = vector.multi_reduction <add>, %383, %cst_85 [1] : vector<2x8x1xi32> to vector<2x1xi32>
    %385 = vector.shape_cast %384 : vector<2x1xi32> to vector<2x1x1xi32>
    %386 = vector.broadcast %371 : vector<2x1x1xi32> to vector<2x8x128xi32>
    %387 = arith.cmpi sge, %96, %386 : vector<2x8x128xi32>
    %388 = arith.extui %387 : vector<2x8x128xi1> to vector<2x8x128xi32>
    %cst_86 = arith.constant dense<0> : vector<2x8xi32>
    %389 = vector.multi_reduction <add>, %388, %cst_86 [2] : vector<2x8x128xi32> to vector<2x8xi32>
    %390 = vector.shape_cast %389 : vector<2x8xi32> to vector<2x8x1xi32>
    %cst_87 = arith.constant dense<0> : vector<2x1xi32>
    %391 = vector.multi_reduction <add>, %390, %cst_87 [1] : vector<2x8x1xi32> to vector<2x1xi32>
    %392 = vector.shape_cast %391 : vector<2x1xi32> to vector<2x1x1xi32>
    %393 = arith.cmpi sge, %392, %100 : vector<2x1x1xi32>
    %394 = arith.cmpi sge, %385, %100 : vector<2x1x1xi32>
    %395 = arith.cmpi sge, %378, %100 : vector<2x1x1xi32>
    %396 = arith.select %395, %367, %365 : vector<2x1x1xi1>, vector<2x1x1xi32>
    %397 = arith.select %394, %369, %396 : vector<2x1x1xi1>, vector<2x1x1xi32>
    %398 = arith.select %393, %371, %397 : vector<2x1x1xi1>, vector<2x1x1xi32>
    %c2048_i32 = arith.constant 2048 : i32
    %399 = vector.broadcast %c2048_i32 : i32 to vector<2x1x1xi32>
    %400 = arith.ori %398, %399 : vector<2x1x1xi32>
    %c4096_i32 = arith.constant 4096 : i32
    %401 = vector.broadcast %c4096_i32 : i32 to vector<2x1x1xi32>
    %402 = arith.ori %398, %401 : vector<2x1x1xi32>
    %c6144_i32 = arith.constant 6144 : i32
    %403 = vector.broadcast %c6144_i32 : i32 to vector<2x1x1xi32>
    %404 = arith.ori %398, %403 : vector<2x1x1xi32>
    %405 = vector.broadcast %400 : vector<2x1x1xi32> to vector<2x8x128xi32>
    %406 = arith.cmpi sge, %96, %405 : vector<2x8x128xi32>
    %407 = arith.extui %406 : vector<2x8x128xi1> to vector<2x8x128xi32>
    %cst_88 = arith.constant dense<0> : vector<2x8xi32>
    %408 = vector.multi_reduction <add>, %407, %cst_88 [2] : vector<2x8x128xi32> to vector<2x8xi32>
    %409 = vector.shape_cast %408 : vector<2x8xi32> to vector<2x8x1xi32>
    %cst_89 = arith.constant dense<0> : vector<2x1xi32>
    %410 = vector.multi_reduction <add>, %409, %cst_89 [1] : vector<2x8x1xi32> to vector<2x1xi32>
    %411 = vector.shape_cast %410 : vector<2x1xi32> to vector<2x1x1xi32>
    %412 = vector.broadcast %402 : vector<2x1x1xi32> to vector<2x8x128xi32>
    %413 = arith.cmpi sge, %96, %412 : vector<2x8x128xi32>
    %414 = arith.extui %413 : vector<2x8x128xi1> to vector<2x8x128xi32>
    %cst_90 = arith.constant dense<0> : vector<2x8xi32>
    %415 = vector.multi_reduction <add>, %414, %cst_90 [2] : vector<2x8x128xi32> to vector<2x8xi32>
    %416 = vector.shape_cast %415 : vector<2x8xi32> to vector<2x8x1xi32>
    %cst_91 = arith.constant dense<0> : vector<2x1xi32>
    %417 = vector.multi_reduction <add>, %416, %cst_91 [1] : vector<2x8x1xi32> to vector<2x1xi32>
    %418 = vector.shape_cast %417 : vector<2x1xi32> to vector<2x1x1xi32>
    %419 = vector.broadcast %404 : vector<2x1x1xi32> to vector<2x8x128xi32>
    %420 = arith.cmpi sge, %96, %419 : vector<2x8x128xi32>
    %421 = arith.extui %420 : vector<2x8x128xi1> to vector<2x8x128xi32>
    %cst_92 = arith.constant dense<0> : vector<2x8xi32>
    %422 = vector.multi_reduction <add>, %421, %cst_92 [2] : vector<2x8x128xi32> to vector<2x8xi32>
    %423 = vector.shape_cast %422 : vector<2x8xi32> to vector<2x8x1xi32>
    %cst_93 = arith.constant dense<0> : vector<2x1xi32>
    %424 = vector.multi_reduction <add>, %423, %cst_93 [1] : vector<2x8x1xi32> to vector<2x1xi32>
    %425 = vector.shape_cast %424 : vector<2x1xi32> to vector<2x1x1xi32>
    %426 = arith.cmpi sge, %425, %100 : vector<2x1x1xi32>
    %427 = arith.cmpi sge, %418, %100 : vector<2x1x1xi32>
    %428 = arith.cmpi sge, %411, %100 : vector<2x1x1xi32>
    %429 = arith.select %428, %400, %398 : vector<2x1x1xi1>, vector<2x1x1xi32>
    %430 = arith.select %427, %402, %429 : vector<2x1x1xi1>, vector<2x1x1xi32>
    %431 = arith.select %426, %404, %430 : vector<2x1x1xi1>, vector<2x1x1xi32>
    %c512_i32 = arith.constant 512 : i32
    %432 = vector.broadcast %c512_i32 : i32 to vector<2x1x1xi32>
    %433 = arith.ori %431, %432 : vector<2x1x1xi32>
    %c1024_i32 = arith.constant 1024 : i32
    %434 = vector.broadcast %c1024_i32 : i32 to vector<2x1x1xi32>
    %435 = arith.ori %431, %434 : vector<2x1x1xi32>
    %c1536_i32 = arith.constant 1536 : i32
    %436 = vector.broadcast %c1536_i32 : i32 to vector<2x1x1xi32>
    %437 = arith.ori %431, %436 : vector<2x1x1xi32>
    %438 = vector.broadcast %433 : vector<2x1x1xi32> to vector<2x8x128xi32>
    %439 = arith.cmpi sge, %96, %438 : vector<2x8x128xi32>
    %440 = arith.extui %439 : vector<2x8x128xi1> to vector<2x8x128xi32>
    %cst_94 = arith.constant dense<0> : vector<2x8xi32>
    %441 = vector.multi_reduction <add>, %440, %cst_94 [2] : vector<2x8x128xi32> to vector<2x8xi32>
    %442 = vector.shape_cast %441 : vector<2x8xi32> to vector<2x8x1xi32>
    %cst_95 = arith.constant dense<0> : vector<2x1xi32>
    %443 = vector.multi_reduction <add>, %442, %cst_95 [1] : vector<2x8x1xi32> to vector<2x1xi32>
    %444 = vector.shape_cast %443 : vector<2x1xi32> to vector<2x1x1xi32>
    %445 = vector.broadcast %435 : vector<2x1x1xi32> to vector<2x8x128xi32>
    %446 = arith.cmpi sge, %96, %445 : vector<2x8x128xi32>
    %447 = arith.extui %446 : vector<2x8x128xi1> to vector<2x8x128xi32>
    %cst_96 = arith.constant dense<0> : vector<2x8xi32>
    %448 = vector.multi_reduction <add>, %447, %cst_96 [2] : vector<2x8x128xi32> to vector<2x8xi32>
    %449 = vector.shape_cast %448 : vector<2x8xi32> to vector<2x8x1xi32>
    %cst_97 = arith.constant dense<0> : vector<2x1xi32>
    %450 = vector.multi_reduction <add>, %449, %cst_97 [1] : vector<2x8x1xi32> to vector<2x1xi32>
    %451 = vector.shape_cast %450 : vector<2x1xi32> to vector<2x1x1xi32>
    %452 = vector.broadcast %437 : vector<2x1x1xi32> to vector<2x8x128xi32>
    %453 = arith.cmpi sge, %96, %452 : vector<2x8x128xi32>
    %454 = arith.extui %453 : vector<2x8x128xi1> to vector<2x8x128xi32>
    %cst_98 = arith.constant dense<0> : vector<2x8xi32>
    %455 = vector.multi_reduction <add>, %454, %cst_98 [2] : vector<2x8x128xi32> to vector<2x8xi32>
    %456 = vector.shape_cast %455 : vector<2x8xi32> to vector<2x8x1xi32>
    %cst_99 = arith.constant dense<0> : vector<2x1xi32>
    %457 = vector.multi_reduction <add>, %456, %cst_99 [1] : vector<2x8x1xi32> to vector<2x1xi32>
    %458 = vector.shape_cast %457 : vector<2x1xi32> to vector<2x1x1xi32>
    %459 = arith.cmpi sge, %458, %100 : vector<2x1x1xi32>
    %460 = arith.cmpi sge, %451, %100 : vector<2x1x1xi32>
    %461 = arith.cmpi sge, %444, %100 : vector<2x1x1xi32>
    %462 = arith.select %461, %433, %431 : vector<2x1x1xi1>, vector<2x1x1xi32>
    %463 = arith.select %460, %435, %462 : vector<2x1x1xi1>, vector<2x1x1xi32>
    %464 = arith.select %459, %437, %463 : vector<2x1x1xi1>, vector<2x1x1xi32>
    %c128_i32 = arith.constant 128 : i32
    %465 = vector.broadcast %c128_i32 : i32 to vector<2x1x1xi32>
    %466 = arith.ori %464, %465 : vector<2x1x1xi32>
    %c256_i32_100 = arith.constant 256 : i32
    %467 = vector.broadcast %c256_i32_100 : i32 to vector<2x1x1xi32>
    %468 = arith.ori %464, %467 : vector<2x1x1xi32>
    %c384_i32 = arith.constant 384 : i32
    %469 = vector.broadcast %c384_i32 : i32 to vector<2x1x1xi32>
    %470 = arith.ori %464, %469 : vector<2x1x1xi32>
    %471 = vector.broadcast %466 : vector<2x1x1xi32> to vector<2x8x128xi32>
    %472 = arith.cmpi sge, %96, %471 : vector<2x8x128xi32>
    %473 = arith.extui %472 : vector<2x8x128xi1> to vector<2x8x128xi32>
    %cst_101 = arith.constant dense<0> : vector<2x8xi32>
    %474 = vector.multi_reduction <add>, %473, %cst_101 [2] : vector<2x8x128xi32> to vector<2x8xi32>
    %475 = vector.shape_cast %474 : vector<2x8xi32> to vector<2x8x1xi32>
    %cst_102 = arith.constant dense<0> : vector<2x1xi32>
    %476 = vector.multi_reduction <add>, %475, %cst_102 [1] : vector<2x8x1xi32> to vector<2x1xi32>
    %477 = vector.shape_cast %476 : vector<2x1xi32> to vector<2x1x1xi32>
    %478 = vector.broadcast %468 : vector<2x1x1xi32> to vector<2x8x128xi32>
    %479 = arith.cmpi sge, %96, %478 : vector<2x8x128xi32>
    %480 = arith.extui %479 : vector<2x8x128xi1> to vector<2x8x128xi32>
    %cst_103 = arith.constant dense<0> : vector<2x8xi32>
    %481 = vector.multi_reduction <add>, %480, %cst_103 [2] : vector<2x8x128xi32> to vector<2x8xi32>
    %482 = vector.shape_cast %481 : vector<2x8xi32> to vector<2x8x1xi32>
    %cst_104 = arith.constant dense<0> : vector<2x1xi32>
    %483 = vector.multi_reduction <add>, %482, %cst_104 [1] : vector<2x8x1xi32> to vector<2x1xi32>
    %484 = vector.shape_cast %483 : vector<2x1xi32> to vector<2x1x1xi32>
    %485 = vector.broadcast %470 : vector<2x1x1xi32> to vector<2x8x128xi32>
    %486 = arith.cmpi sge, %96, %485 : vector<2x8x128xi32>
    %487 = arith.extui %486 : vector<2x8x128xi1> to vector<2x8x128xi32>
    %cst_105 = arith.constant dense<0> : vector<2x8xi32>
    %488 = vector.multi_reduction <add>, %487, %cst_105 [2] : vector<2x8x128xi32> to vector<2x8xi32>
    %489 = vector.shape_cast %488 : vector<2x8xi32> to vector<2x8x1xi32>
    %cst_106 = arith.constant dense<0> : vector<2x1xi32>
    %490 = vector.multi_reduction <add>, %489, %cst_106 [1] : vector<2x8x1xi32> to vector<2x1xi32>
    %491 = vector.shape_cast %490 : vector<2x1xi32> to vector<2x1x1xi32>
    %492 = arith.cmpi sge, %491, %100 : vector<2x1x1xi32>
    %493 = arith.cmpi sge, %484, %100 : vector<2x1x1xi32>
    %494 = arith.cmpi sge, %477, %100 : vector<2x1x1xi32>
    %495 = arith.select %494, %466, %464 : vector<2x1x1xi1>, vector<2x1x1xi32>
    %496 = arith.select %493, %468, %495 : vector<2x1x1xi1>, vector<2x1x1xi32>
    %497 = arith.select %492, %470, %496 : vector<2x1x1xi1>, vector<2x1x1xi32>
    %c32_i32 = arith.constant 32 : i32
    %498 = vector.broadcast %c32_i32 : i32 to vector<2x1x1xi32>
    %499 = arith.ori %497, %498 : vector<2x1x1xi32>
    %c64_i32 = arith.constant 64 : i32
    %500 = vector.broadcast %c64_i32 : i32 to vector<2x1x1xi32>
    %501 = arith.ori %497, %500 : vector<2x1x1xi32>
    %c96_i32 = arith.constant 96 : i32
    %502 = vector.broadcast %c96_i32 : i32 to vector<2x1x1xi32>
    %503 = arith.ori %497, %502 : vector<2x1x1xi32>
    %504 = vector.broadcast %499 : vector<2x1x1xi32> to vector<2x8x128xi32>
    %505 = arith.cmpi sge, %96, %504 : vector<2x8x128xi32>
    %506 = arith.extui %505 : vector<2x8x128xi1> to vector<2x8x128xi32>
    %cst_107 = arith.constant dense<0> : vector<2x8xi32>
    %507 = vector.multi_reduction <add>, %506, %cst_107 [2] : vector<2x8x128xi32> to vector<2x8xi32>
    %508 = vector.shape_cast %507 : vector<2x8xi32> to vector<2x8x1xi32>
    %cst_108 = arith.constant dense<0> : vector<2x1xi32>
    %509 = vector.multi_reduction <add>, %508, %cst_108 [1] : vector<2x8x1xi32> to vector<2x1xi32>
    %510 = vector.shape_cast %509 : vector<2x1xi32> to vector<2x1x1xi32>
    %511 = vector.broadcast %501 : vector<2x1x1xi32> to vector<2x8x128xi32>
    %512 = arith.cmpi sge, %96, %511 : vector<2x8x128xi32>
    %513 = arith.extui %512 : vector<2x8x128xi1> to vector<2x8x128xi32>
    %cst_109 = arith.constant dense<0> : vector<2x8xi32>
    %514 = vector.multi_reduction <add>, %513, %cst_109 [2] : vector<2x8x128xi32> to vector<2x8xi32>
    %515 = vector.shape_cast %514 : vector<2x8xi32> to vector<2x8x1xi32>
    %cst_110 = arith.constant dense<0> : vector<2x1xi32>
    %516 = vector.multi_reduction <add>, %515, %cst_110 [1] : vector<2x8x1xi32> to vector<2x1xi32>
    %517 = vector.shape_cast %516 : vector<2x1xi32> to vector<2x1x1xi32>
    %518 = vector.broadcast %503 : vector<2x1x1xi32> to vector<2x8x128xi32>
    %519 = arith.cmpi sge, %96, %518 : vector<2x8x128xi32>
    %520 = arith.extui %519 : vector<2x8x128xi1> to vector<2x8x128xi32>
    %cst_111 = arith.constant dense<0> : vector<2x8xi32>
    %521 = vector.multi_reduction <add>, %520, %cst_111 [2] : vector<2x8x128xi32> to vector<2x8xi32>
    %522 = vector.shape_cast %521 : vector<2x8xi32> to vector<2x8x1xi32>
    %cst_112 = arith.constant dense<0> : vector<2x1xi32>
    %523 = vector.multi_reduction <add>, %522, %cst_112 [1] : vector<2x8x1xi32> to vector<2x1xi32>
    %524 = vector.shape_cast %523 : vector<2x1xi32> to vector<2x1x1xi32>
    %525 = arith.cmpi sge, %524, %100 : vector<2x1x1xi32>
    %526 = arith.cmpi sge, %517, %100 : vector<2x1x1xi32>
    %527 = arith.cmpi sge, %510, %100 : vector<2x1x1xi32>
    %528 = arith.select %527, %499, %497 : vector<2x1x1xi1>, vector<2x1x1xi32>
    %529 = arith.select %526, %501, %528 : vector<2x1x1xi1>, vector<2x1x1xi32>
    %530 = arith.select %525, %503, %529 : vector<2x1x1xi1>, vector<2x1x1xi32>
    %c8_i32 = arith.constant 8 : i32
    %531 = vector.broadcast %c8_i32 : i32 to vector<2x1x1xi32>
    %532 = arith.ori %530, %531 : vector<2x1x1xi32>
    %c16_i32 = arith.constant 16 : i32
    %533 = vector.broadcast %c16_i32 : i32 to vector<2x1x1xi32>
    %534 = arith.ori %530, %533 : vector<2x1x1xi32>
    %c24_i32 = arith.constant 24 : i32
    %535 = vector.broadcast %c24_i32 : i32 to vector<2x1x1xi32>
    %536 = arith.ori %530, %535 : vector<2x1x1xi32>
    %537 = vector.broadcast %532 : vector<2x1x1xi32> to vector<2x8x128xi32>
    %538 = arith.cmpi sge, %96, %537 : vector<2x8x128xi32>
    %539 = arith.extui %538 : vector<2x8x128xi1> to vector<2x8x128xi32>
    %cst_113 = arith.constant dense<0> : vector<2x8xi32>
    %540 = vector.multi_reduction <add>, %539, %cst_113 [2] : vector<2x8x128xi32> to vector<2x8xi32>
    %541 = vector.shape_cast %540 : vector<2x8xi32> to vector<2x8x1xi32>
    %cst_114 = arith.constant dense<0> : vector<2x1xi32>
    %542 = vector.multi_reduction <add>, %541, %cst_114 [1] : vector<2x8x1xi32> to vector<2x1xi32>
    %543 = vector.shape_cast %542 : vector<2x1xi32> to vector<2x1x1xi32>
    %544 = vector.broadcast %534 : vector<2x1x1xi32> to vector<2x8x128xi32>
    %545 = arith.cmpi sge, %96, %544 : vector<2x8x128xi32>
    %546 = arith.extui %545 : vector<2x8x128xi1> to vector<2x8x128xi32>
    %cst_115 = arith.constant dense<0> : vector<2x8xi32>
    %547 = vector.multi_reduction <add>, %546, %cst_115 [2] : vector<2x8x128xi32> to vector<2x8xi32>
    %548 = vector.shape_cast %547 : vector<2x8xi32> to vector<2x8x1xi32>
    %cst_116 = arith.constant dense<0> : vector<2x1xi32>
    %549 = vector.multi_reduction <add>, %548, %cst_116 [1] : vector<2x8x1xi32> to vector<2x1xi32>
    %550 = vector.shape_cast %549 : vector<2x1xi32> to vector<2x1x1xi32>
    %551 = vector.broadcast %536 : vector<2x1x1xi32> to vector<2x8x128xi32>
    %552 = arith.cmpi sge, %96, %551 : vector<2x8x128xi32>
    %553 = arith.extui %552 : vector<2x8x128xi1> to vector<2x8x128xi32>
    %cst_117 = arith.constant dense<0> : vector<2x8xi32>
    %554 = vector.multi_reduction <add>, %553, %cst_117 [2] : vector<2x8x128xi32> to vector<2x8xi32>
    %555 = vector.shape_cast %554 : vector<2x8xi32> to vector<2x8x1xi32>
    %cst_118 = arith.constant dense<0> : vector<2x1xi32>
    %556 = vector.multi_reduction <add>, %555, %cst_118 [1] : vector<2x8x1xi32> to vector<2x1xi32>
    %557 = vector.shape_cast %556 : vector<2x1xi32> to vector<2x1x1xi32>
    %558 = arith.cmpi sge, %557, %100 : vector<2x1x1xi32>
    %559 = arith.cmpi sge, %550, %100 : vector<2x1x1xi32>
    %560 = arith.cmpi sge, %543, %100 : vector<2x1x1xi32>
    %561 = arith.select %560, %532, %530 : vector<2x1x1xi1>, vector<2x1x1xi32>
    %562 = arith.select %559, %534, %561 : vector<2x1x1xi1>, vector<2x1x1xi32>
    %563 = arith.select %558, %536, %562 : vector<2x1x1xi1>, vector<2x1x1xi32>
    %c2_i32 = arith.constant 2 : i32
    %564 = vector.broadcast %c2_i32 : i32 to vector<2x1x1xi32>
    %565 = arith.ori %563, %564 : vector<2x1x1xi32>
    %c4_i32 = arith.constant 4 : i32
    %566 = vector.broadcast %c4_i32 : i32 to vector<2x1x1xi32>
    %567 = arith.ori %563, %566 : vector<2x1x1xi32>
    %c6_i32 = arith.constant 6 : i32
    %568 = vector.broadcast %c6_i32 : i32 to vector<2x1x1xi32>
    %569 = arith.ori %563, %568 : vector<2x1x1xi32>
    %570 = vector.broadcast %565 : vector<2x1x1xi32> to vector<2x8x128xi32>
    %571 = arith.cmpi sge, %96, %570 : vector<2x8x128xi32>
    %572 = arith.extui %571 : vector<2x8x128xi1> to vector<2x8x128xi32>
    %cst_119 = arith.constant dense<0> : vector<2x8xi32>
    %573 = vector.multi_reduction <add>, %572, %cst_119 [2] : vector<2x8x128xi32> to vector<2x8xi32>
    %574 = vector.shape_cast %573 : vector<2x8xi32> to vector<2x8x1xi32>
    %cst_120 = arith.constant dense<0> : vector<2x1xi32>
    %575 = vector.multi_reduction <add>, %574, %cst_120 [1] : vector<2x8x1xi32> to vector<2x1xi32>
    %576 = vector.shape_cast %575 : vector<2x1xi32> to vector<2x1x1xi32>
    %577 = vector.broadcast %567 : vector<2x1x1xi32> to vector<2x8x128xi32>
    %578 = arith.cmpi sge, %96, %577 : vector<2x8x128xi32>
    %579 = arith.extui %578 : vector<2x8x128xi1> to vector<2x8x128xi32>
    %cst_121 = arith.constant dense<0> : vector<2x8xi32>
    %580 = vector.multi_reduction <add>, %579, %cst_121 [2] : vector<2x8x128xi32> to vector<2x8xi32>
    %581 = vector.shape_cast %580 : vector<2x8xi32> to vector<2x8x1xi32>
    %cst_122 = arith.constant dense<0> : vector<2x1xi32>
    %582 = vector.multi_reduction <add>, %581, %cst_122 [1] : vector<2x8x1xi32> to vector<2x1xi32>
    %583 = vector.shape_cast %582 : vector<2x1xi32> to vector<2x1x1xi32>
    %584 = vector.broadcast %569 : vector<2x1x1xi32> to vector<2x8x128xi32>
    %585 = arith.cmpi sge, %96, %584 : vector<2x8x128xi32>
    %586 = arith.extui %585 : vector<2x8x128xi1> to vector<2x8x128xi32>
    %cst_123 = arith.constant dense<0> : vector<2x8xi32>
    %587 = vector.multi_reduction <add>, %586, %cst_123 [2] : vector<2x8x128xi32> to vector<2x8xi32>
    %588 = vector.shape_cast %587 : vector<2x8xi32> to vector<2x8x1xi32>
    %cst_124 = arith.constant dense<0> : vector<2x1xi32>
    %589 = vector.multi_reduction <add>, %588, %cst_124 [1] : vector<2x8x1xi32> to vector<2x1xi32>
    %590 = vector.shape_cast %589 : vector<2x1xi32> to vector<2x1x1xi32>
    %591 = arith.cmpi sge, %590, %100 : vector<2x1x1xi32>
    %592 = arith.cmpi sge, %583, %100 : vector<2x1x1xi32>
    %593 = arith.cmpi sge, %576, %100 : vector<2x1x1xi32>
    %594 = arith.select %593, %565, %563 : vector<2x1x1xi1>, vector<2x1x1xi32>
    %595 = arith.select %592, %567, %594 : vector<2x1x1xi1>, vector<2x1x1xi32>
    %596 = arith.select %591, %569, %595 : vector<2x1x1xi1>, vector<2x1x1xi32>
    %c1_i32 = arith.constant 1 : i32
    %597 = vector.broadcast %c1_i32 : i32 to vector<2x1x1xi32>
    %598 = arith.ori %596, %597 : vector<2x1x1xi32>
    %599 = vector.broadcast %598 : vector<2x1x1xi32> to vector<2x8x128xi32>
    %600 = arith.cmpi sge, %96, %599 : vector<2x8x128xi32>
    %601 = arith.extui %600 : vector<2x8x128xi1> to vector<2x8x128xi32>
    %cst_125 = arith.constant dense<0> : vector<2x8xi32>
    %602 = vector.multi_reduction <add>, %601, %cst_125 [2] : vector<2x8x128xi32> to vector<2x8xi32>
    %603 = vector.shape_cast %602 : vector<2x8xi32> to vector<2x8x1xi32>
    %cst_126 = arith.constant dense<0> : vector<2x1xi32>
    %604 = vector.multi_reduction <add>, %603, %cst_126 [1] : vector<2x8x1xi32> to vector<2x1xi32>
    %605 = vector.shape_cast %604 : vector<2x1xi32> to vector<2x1x1xi32>
    %606 = arith.cmpi sge, %605, %100 : vector<2x1x1xi32>
    %607 = arith.select %606, %598, %596 : vector<2x1x1xi1>, vector<2x1x1xi32>
    %608 = tpu.bitcast %607 : vector<2x1x1xi32> -> vector<2x1x1xf32>
    %609 = vector.broadcast %608 : vector<2x1x1xf32> to vector<2x8x128xf32>
    %610 = arith.cmpf ogt, %93, %609 : vector<2x8x128xf32>
    %611 = arith.extui %610 : vector<2x8x128xi1> to vector<2x8x128xi32>
    %612 = arith.sitofp %611 : vector<2x8x128xi32> to vector<2x8x128xf32>
    %cst_127 = arith.constant dense<0.000000e+00> : vector<2x8xf32>
    %613 = vector.multi_reduction <add>, %612, %cst_127 [2] : vector<2x8x128xf32> to vector<2x8xf32>
    %614 = vector.shape_cast %613 : vector<2x8xf32> to vector<2x8x1xf32>
    %cst_128 = arith.constant dense<0.000000e+00> : vector<2x1xf32>
    %615 = vector.multi_reduction <add>, %614, %cst_128 [1] : vector<2x8x1xf32> to vector<2x1xf32>
    %616 = vector.shape_cast %615 : vector<2x1xf32> to vector<2x1x1xf32>
    %cst_129 = arith.constant 0.000000e+00 : f32
    %617 = vector.broadcast %cst_129 : f32 to vector<2x8x128xf32>
    %618 = arith.select %610, %93, %617 : vector<2x8x128xi1>, vector<2x8x128xf32>
    %cst_130 = arith.constant dense<0.000000e+00> : vector<2x8xf32>
    %619 = vector.multi_reduction <add>, %618, %cst_130 [2] : vector<2x8x128xf32> to vector<2x8xf32>
    %620 = vector.shape_cast %619 : vector<2x8xf32> to vector<2x8x1xf32>
    %cst_131 = arith.constant dense<0.000000e+00> : vector<2x1xf32>
    %621 = vector.multi_reduction <add>, %620, %cst_131 [1] : vector<2x8x1xf32> to vector<2x1xf32>
    %622 = vector.shape_cast %621 : vector<2x1xf32> to vector<2x1x1xf32>
    %623 = arith.sitofp %100 : vector<2x1x1xi32> to vector<2x1x1xf32>
    %624 = arith.subf %623, %616 : vector<2x1x1xf32>
    %625 = arith.mulf %624, %608 : vector<2x1x1xf32>
    %626 = arith.addf %622, %625 : vector<2x1x1xf32>
    %c0_i32_132 = arith.constant 0 : i32
    %627 = vector.broadcast %c0_i32_132 : i32 to vector<2x1x1xi32>
    %628 = arith.cmpi sgt, %100, %627 : vector<2x1x1xi32>
    %cst_133 = arith.constant 0.000000e+00 : f32
    %629 = vector.broadcast %cst_133 : f32 to vector<2x1x1xf32>
    %630 = arith.select %628, %626, %629 : vector<2x1x1xi1>, vector<2x1x1xf32>
    %631 = arith.mulf %76, %11 : vector<2x1x1024xf32>
    %cst_134 = arith.constant dense<0.000000e+00> : vector<2x1xf32>
    %632 = vector.multi_reduction <add>, %631, %cst_134 [2] : vector<2x1x1024xf32> to vector<2x1xf32>
    %633 = vector.shape_cast %632 : vector<2x1xf32> to vector<2x1x1xf32>
    %634 = arith.addf %633, %630 : vector<2x1x1xf32>
    %635 = arith.addf %58, %634 : vector<2x1x1xf32>
    %cst_135 = arith.constant 0.000000e+00 : f32
    %636 = vector.broadcast %cst_135 : f32 to vector<2x1x1xf32>
    %637 = arith.cmpf ogt, %15, %636 : vector<2x1x1xf32>
    %638 = arith.extui %637 : vector<2x1x1xi1> to vector<2x1x1xi32>
    %639 = arith.sitofp %638 : vector<2x1x1xi32> to vector<2x1x1xf32>
    %640 = arith.mulf %635, %639 : vector<2x1x1xf32>
    %cst_136 = arith.constant 9.99999997E-7 : f32
    %641 = vector.broadcast %cst_136 : f32 to vector<2x1x1xf32>
    %642 = arith.maximumf %15, %641 : vector<2x1x1xf32>
    %643 = arith.divf %640, %642 : vector<2x1x1xf32>
    %644 = vector.shape_cast %643 : vector<2x1x1xf32> to vector<2x1x1xf32>
    %645 = vector.broadcast %644 : vector<2x1x1xf32> to vector<2x1x128xf32>
    %c0_137 = arith.constant 0 : index
    %c0_138 = arith.constant 0 : index
    %c0_139 = arith.constant 0 : index
    %646 = vector.load %arg6[%c0_137, %c0_138, %c0_139] : memref<2x1x128xf32, #tpu.memory_space<vmem>>, vector<2x1x128xf32>
    tpu.vector_store %arg6[%c0_137, %c0_138, %c0_139], %645 {strides = array<i32>} : memref<2x1x128xf32, #tpu.memory_space<vmem>>, vector<2x1x128xf32>,
    return
  }
  func.func @transform_0(%arg0: i32) -> (i32, i32, i32) {
    %c0_i32 = arith.constant 0 : i32
    %c0_i32_0 = arith.constant 0 : i32
    %c0_i32_1 = arith.constant 0 : i32
    return %arg0, %c0_i32, %c0_i32_0 : i32, i32, i32
  }
  func.func @transform_1(%arg0: i32) -> (i32, i32, i32) {
    %c0_i32 = arith.constant 0 : i32
    %c0_i32_0 = arith.constant 0 : i32
    %c0_i32_1 = arith.constant 0 : i32
    return %arg0, %c0_i32, %c0_i32_0 : i32, i32, i32
  }
  func.func @transform_2(%arg0: i32) -> (i32, i32, i32) {
    %c0_i32 = arith.constant 0 : i32
    %c0_i32_0 = arith.constant 0 : i32
    %c0_i32_1 = arith.constant 0 : i32
    return %arg0, %c0_i32, %c0_i32_0 : i32, i32, i32
  }
  func.func @transform_3(%arg0: i32) -> (i32, i32, i32) {
    %c0_i32 = arith.constant 0 : i32
    %c0_i32_0 = arith.constant 0 : i32
    %c0_i32_1 = arith.constant 0 : i32
    return %arg0, %c0_i32, %c0_i32_0 : i32, i32, i32
  }
  func.func @transform_4(%arg0: i32) -> (i32, i32, i32) {
    %c0_i32 = arith.constant 0 : i32
    %c0_i32_0 = arith.constant 0 : i32
    %c0_i32_1 = arith.constant 0 : i32
    %c0_i32_2 = arith.constant 0 : i32
    return %c0_i32, %c0_i32_0, %c0_i32_1 : i32, i32, i32
  }
  func.func @transform_5(%arg0: i32) -> (i32, i32, i32) {
    %c0_i32 = arith.constant 0 : i32
    %c0_i32_0 = arith.constant 0 : i32
    %c0_i32_1 = arith.constant 0 : i32
    return %arg0, %c0_i32, %c0_i32_0 : i32, i32, i32
  }
}

</mosaic_0001>

<llo_original>
// kernel: tpu_custom_call.1
$region0: #{tpu_custom_call.1}
  #allocation0 [shape = 'u32[]', space=smem, size = 0x4, offset = 0x4, fixed_abs, tag = 'smem constant byte address 0x4 - core index']
  #allocation1 [shape = 'u32[144,128]{1,0:T(1,128)}', space=vmem, size = 0x12000, scoped, tag = 'internal scratch']
  %s0 = inlined_call_operand.vmem [shape: f32[2,4,1024], index: 0, kind: input, shape index: {}]
  %s1 = inlined_call_operand.hbm [shape: f32[2,8,1024], index: 1, kind: input, shape index: {}]
  %s2 = inlined_call_operand.hbm [shape: f32[2,4,1024], index: 2, kind: input, shape index: {}]
  %s3 = inlined_call_operand.vmem [shape: s32[2,1,1024], index: 3, kind: input, shape index: {}]
  %s4 = inlined_call_operand.vmem [shape: f32[1,6,1024], index: 4, kind: input, shape index: {}]
  %s5 = inlined_call_operand.hbm [shape: f32[2,1,128], index: 5, kind: output, shape index: {}]
  %s6 = sld [smem:[#allocation0]]
  $region38: #{tpu_custom_call.1} parent=0
    _
  %s8 = ssub.s32 1, %s6
  %s9 = scalar_select 0, %s8, %s6
  $region1: #{tpu_custom_call.1} parent=0
    #allocation2 [shape = 'u8[65536]{0}', space=vmem, size = 0x10000, scoped, tag = 'input window, operand 1, single buffered']
    #allocation3 [shape = 's32[1]{0}', space=sflag, size = 0x4, scoped, tag = 'scoped memory for tpu_custom_call.1']
    #allocation4 [shape = 's32[1]{0}', space=sflag, size = 0x4, scoped, tag = 'scoped memory for tpu_custom_call.1']
    #allocation5 [shape = 'u8[32768]{0}', space=vmem, size = 0x8000, scoped, tag = 'input window, operand 2, single buffered']
    #allocation6 [shape = 's32[1]{0}', space=sflag, size = 0x4, scoped, tag = 'scoped memory for tpu_custom_call.1']
    #allocation7 [shape = 'u8[1024]{0}', space=vmem, size = 0x400, scoped, tag = 'output window, operand 0, single buffered']
    %10 = vsyncpa [#allocation3], 0
    %11 = vsyncpa [#allocation6], 0
    %12 = vsyncpa [#allocation4], 0
    // Predicated region
    $region2: #{tpu_custom_call.1} parent=1 // pred_check
      _
    $region3: #{tpu_custom_call.1} parent=1 // pred_check_branch
      %14 = sbr.rel (0) target = $region5
    $region4: #{tpu_custom_call.1} parent=1 // pred_region
      _
    $region5: #{tpu_custom_call.1} parent=1 // pred_fallthru
      _
    // Predicated region
    $region6: #{tpu_custom_call.1} parent=1 // pred_check
      _
    $region7: #{tpu_custom_call.1} parent=1 // pred_check_branch
      %16 = sbr.rel (0) target = $region9
    $region8: #{tpu_custom_call.1} parent=1 // pred_region
      %s18 = ssub.s32 2048, 2048
      %19 = vsyncadd [#allocation3], %s18
      %s20 = sshll.u32 [#allocation2], 4
      %s21 = int_to_ptr.vmem [resolvable:$true] %s20
      %26 = dma.hbm_to_vmem [thread:$0]  %s1, 2048, %s21, [#allocation3], 1024, 1024, 64
    $region9: #{tpu_custom_call.1} parent=1 // pred_fallthru
      _
    // Predicated region
    $region10: #{tpu_custom_call.1} parent=1 // pred_check
      _
    $region11: #{tpu_custom_call.1} parent=1 // pred_check_branch
      %28 = sbr.rel (0) target = $region13
    $region12: #{tpu_custom_call.1} parent=1 // pred_region
      %s30 = ssub.s32 1024, 1024
      %31 = vsyncadd [#allocation6], %s30
      %s32 = sshll.u32 [#allocation5], 4
      %s33 = int_to_ptr.vmem [resolvable:$true] %s32
      %38 = dma.hbm_to_vmem [thread:$0]  %s2, 1024, %s33, [#allocation6], 512, 512, 32
    $region13: #{tpu_custom_call.1} parent=1 // pred_fallthru
      _
    // Predicated region
    $region14: #{tpu_custom_call.1} parent=1 // pred_check
      _
    $region15: #{tpu_custom_call.1} parent=1 // pred_check_branch
      %40 = sbr.rel (0) target = $region17
    $region16: #{tpu_custom_call.1} parent=1 // pred_region
      _
    $region17: #{tpu_custom_call.1} parent=1 // pred_fallthru
      _
    // Predicated region
    $region18: #{tpu_custom_call.1} parent=1 // pred_check
      _
    $region19: #{tpu_custom_call.1} parent=1 // pred_check_branch
      %42 = sbr.rel (0) target = $region21
    $region20: #{tpu_custom_call.1} parent=1 // pred_region
      _
    $region21: #{tpu_custom_call.1} parent=1 // pred_fallthru
      _
    // Predicated region
    $region22: #{tpu_custom_call.1} parent=1 // pred_check
      _
    $region23: #{tpu_custom_call.1} parent=1 // pred_check_branch
      %44 = sbr.rel (0) target = $region25
    $region24: #{tpu_custom_call.1} parent=1 // pred_region
      %45 = dma.done [#allocation3], 2048
    $region25: #{tpu_custom_call.1} parent=1 // pred_fallthru
      _
    // Predicated region
    $region26: #{tpu_custom_call.1} parent=1 // pred_check
      _
    $region27: #{tpu_custom_call.1} parent=1 // pred_check_branch
      %47 = sbr.rel (0) target = $region29
    $region28: #{tpu_custom_call.1} parent=1 // pred_region
      %48 = dma.done [#allocation6], 1024
    $region29: #{tpu_custom_call.1} parent=1 // pred_fallthru
      _
    %v49 = vld [vmem:[%s0] sm:$0xff]
    %v50 = vld [vmem:[%s0 + $0x8] sm:$0xff]
    %v51 = vld [vmem:[%s0 + $0x10] sm:$0xff]
    %v52 = vld [vmem:[%s0 + $0x18] sm:$0xff]
    %v53 = vld [vmem:[%s0 + $0x20] sm:$0xff]
    %v54 = vld [vmem:[%s0 + $0x28] sm:$0xff]
    %v55 = vld [vmem:[%s0 + $0x30] sm:$0xff]
    %v56 = vld [vmem:[%s0 + $0x38] sm:$0xff]
    %v57 = vld [vmem:[#allocation2] sm:$0xff]
    %v58 = vld [vmem:[#allocation2 + $0x8] sm:$0xff]
    %v59 = vld [vmem:[#allocation2 + $0x10] sm:$0xff]
    %v60 = vld [vmem:[#allocation2 + $0x18] sm:$0xff]
    %v61 = vld [vmem:[#allocation2 + $0x20] sm:$0xff]
    %v62 = vld [vmem:[#allocation2 + $0x28] sm:$0xff]
    %v63 = vld [vmem:[#allocation2 + $0x30] sm:$0xff]
    %v64 = vld [vmem:[#allocation2 + $0x38] sm:$0xff]
    %v65 = vld [vmem:[#allocation2 + $0x40] sm:$0xff]
    %v66 = vld [vmem:[#allocation2 + $0x48] sm:$0xff]
    %v67 = vld [vmem:[#allocation2 + $0x50] sm:$0xff]
    %v68 = vld [vmem:[#allocation2 + $0x58] sm:$0xff]
    %v69 = vld [vmem:[#allocation2 + $0x60] sm:$0xff]
    %v70 = vld [vmem:[#allocation2 + $0x68] sm:$0xff]
    %v71 = vld [vmem:[#allocation2 + $0x70] sm:$0xff]
    %v72 = vld [vmem:[#allocation2 + $0x78] sm:$0xff]
    %v73 = vld [vmem:[#allocation5] sm:$0xff]
    %v74 = vld [vmem:[#allocation5 + $0x8] sm:$0xff]
    %v75 = vld [vmem:[#allocation5 + $0x10] sm:$0xff]
    %v76 = vld [vmem:[#allocation5 + $0x18] sm:$0xff]
    %v77 = vld [vmem:[#allocation5 + $0x20] sm:$0xff]
    %v78 = vld [vmem:[#allocation5 + $0x28] sm:$0xff]
    %v79 = vld [vmem:[#allocation5 + $0x30] sm:$0xff]
    %v80 = vld [vmem:[#allocation5 + $0x38] sm:$0xff]
    %v81 = vld [vmem:[%s3] sm:$0xff]
    %v82 = vld [vmem:[%s3 + $0x8] sm:$0xff]
    %v83 = vld [vmem:[%s4] sm:$0x3f]
    %v84 = vld [vmem:[%s4 + $0x8] sm:$0x3f]
    %v85 = vld [vmem:[%s4 + $0x10] sm:$0x3f]
    %v86 = vld [vmem:[%s4 + $0x18] sm:$0x3f]
    %v87 = vld [vmem:[%s4 + $0x20] sm:$0x3f]
    %v88 = vld [vmem:[%s4 + $0x28] sm:$0x3f]
    %v89 = vld [vmem:[%s4 + $0x30] sm:$0x3f]
    %v90 = vld [vmem:[%s4 + $0x38] sm:$0x3f]
    %vm91 = vcmp.gt.s32.totalorder %v81, 0
    %vm92 = vcmp.gt.s32.totalorder %v82, 0
    %v93 = vsel %vm91, 1, 0
    %v94 = vsel %vm92, 1, 0
    %v95 = vcvt.s32.f32 %v93
    %v96 = vcvt.s32.f32 %v94
    %v97 = vlaneseq
    %v98 = vshrl.u32 %v97, 7
    %v99 = vsub.s32 0, %v98
    %v100 = vrot.slane %v93, %v99
    %v101 = vlaneseq
    %v102 = vshrl.u32 %v101, 7
    %v103 = vsub.s32 1, %v102
    %v104 = vrot.slane %v93, %v103
    %v105 = vlaneseq
    %v106 = vshrl.u32 %v105, 7
    %v107 = vsub.s32 2, %v106
    %v108 = vrot.slane %v93, %v107
    %v109 = vlaneseq
    %v110 = vshrl.u32 %v109, 7
    %v111 = vsub.s32 3, %v110
    %v112 = vrot.slane %v93, %v111
    %v113 = vlaneseq
    %v114 = vshrl.u32 %v113, 7
    %v115 = vsub.s32 4, %v114
    %v116 = vrot.slane %v93, %v115
    %v117 = vlaneseq
    %v118 = vshrl.u32 %v117, 7
    %v119 = vsub.s32 5, %v118
    %v120 = vrot.slane %v93, %v119
    %v121 = vlaneseq
    %v122 = vshrl.u32 %v121, 7
    %v123 = vsub.s32 6, %v122
    %v124 = vrot.slane %v93, %v123
    %v125 = vlaneseq
    %v126 = vshrl.u32 %v125, 7
    %v127 = vsub.s32 7, %v126
    %v128 = vrot.slane %v93, %v127
    %v129 = vlaneseq
    %v130 = vshrl.u32 %v129, 7
    %v131 = vsub.s32 0, %v130
    %v132 = vrot.slane %v94, %v131
    %v133 = vlaneseq
    %v134 = vshrl.u32 %v133, 7
    %v135 = vsub.s32 1, %v134
    %v136 = vrot.slane %v94, %v135
    %v137 = vlaneseq
    %v138 = vshrl.u32 %v137, 7
    %v139 = vsub.s32 2, %v138
    %v140 = vrot.slane %v94, %v139
    %v141 = vlaneseq
    %v142 = vshrl.u32 %v141, 7
    %v143 = vsub.s32 3, %v142
    %v144 = vrot.slane %v94, %v143
    %v145 = vlaneseq
    %v146 = vshrl.u32 %v145, 7
    %v147 = vsub.s32 4, %v146
    %v148 = vrot.slane %v94, %v147
    %v149 = vlaneseq
    %v150 = vshrl.u32 %v149, 7
    %v151 = vsub.s32 5, %v150
    %v152 = vrot.slane %v94, %v151
    %v153 = vlaneseq
    %v154 = vshrl.u32 %v153, 7
    %v155 = vsub.s32 6, %v154
    %v156 = vrot.slane %v94, %v155
    %v157 = vlaneseq
    %v158 = vshrl.u32 %v157, 7
    %v159 = vsub.s32 7, %v158
    %v160 = vrot.slane %v94, %v159
    %vm161 = vcmask 1040384
    %v162 = vsel %vm161, %v100, 0
    %v163 = vsel %vm161, %v104, 0
    %v164 = vsel %vm161, %v108, 0
    %v165 = vadd.s32 %v162, %v164
    %v166 = vsel %vm161, %v112, 0
    %v167 = vadd.s32 %v163, %v166
    %v168 = vsel %vm161, %v116, 0
    %v169 = vadd.s32 %v165, %v168
    %v170 = vsel %vm161, %v120, 0
    %v171 = vadd.s32 %v167, %v170
    %v172 = vsel %vm161, %v124, 0
    %v173 = vadd.s32 %v169, %v172
    %v174 = vsel %vm161, %v128, 0
    %v175 = vadd.s32 %v171, %v174
    %v176 = vadd.s32 %v173, %v175
    %v177 = vand.u32 %v176, 65535
    %v178 = vshrl.u32 %v176, 16
    %v179 = vcvt.s32.f32 %v177
    %v180 = vcvt.s32.f32 %v178
    %181 = vadd.xlane.f32.xlu0 %v179
    %v182 = vpop.xlane.xlu0 %181
    %183 = vadd.xlane.f32.xlu0 %v180
    %v184 = vpop.xlane.xlu0 %183
    %v185 = vcvt.f32.s32 %v182
    %v186 = vcvt.f32.s32 %v184
    %v187 = vshll.u32 %v186, 16
    %v188 = vadd.s32 %v187, %v185
    %v189 = vsel %vm161, %v132, 0
    %v190 = vsel %vm161, %v136, 0
    %v191 = vsel %vm161, %v140, 0
    %v192 = vadd.s32 %v189, %v191
    %v193 = vsel %vm161, %v144, 0
    %v194 = vadd.s32 %v190, %v193
    %v195 = vsel %vm161, %v148, 0
    %v196 = vadd.s32 %v192, %v195
    %v197 = vsel %vm161, %v152, 0
    %v198 = vadd.s32 %v194, %v197
    %v199 = vsel %vm161, %v156, 0
    %v200 = vadd.s32 %v196, %v199
    %v201 = vsel %vm161, %v160, 0
    %v202 = vadd.s32 %v198, %v201
    %v203 = vadd.s32 %v200, %v202
    %v204 = vand.u32 %v203, 65535
    %v205 = vshrl.u32 %v203, 16
    %v206 = vcvt.s32.f32 %v204
    %v207 = vcvt.s32.f32 %v205
    %208 = vadd.xlane.f32.xlu0 %v206
    %v209 = vpop.xlane.xlu0 %208
    %210 = vadd.xlane.f32.xlu0 %v207
    %v211 = vpop.xlane.xlu0 %210
    %v212 = vcvt.f32.s32 %v209
    %v213 = vcvt.f32.s32 %v211
    %v214 = vshll.u32 %v213, 16
    %v215 = vadd.s32 %v214, %v212
    %v216 = vcvt.s32.f32 %v188
    %v217 = vcvt.s32.f32 %v215
    %v226 = vcombine.low %v83, %v84
    %v227 = vcombine.low %v85, %v86
    %v228 = vcombine.low %v87, %v88
    %v229 = vcombine.low %v89, %v90
    %v234 = vsub.f32 %v73, %v226
    %v235 = vsub.f32 %v74, %v227
    %v236 = vsub.f32 %v75, %v228
    %v237 = vsub.f32 %v76, %v229
    %v238 = vsub.f32 %v77, %v226
    %v239 = vsub.f32 %v78, %v227
    %v240 = vsub.f32 %v79, %v228
    %v241 = vsub.f32 %v80, %v229
    %v242 = vmul.f32 %v234, 10.0
    %v243 = vmul.f32 %v235, 10.0
    %v244 = vmul.f32 %v236, 10.0
    %v245 = vmul.f32 %v237, 10.0
    %v246 = vmul.f32 %v238, 10.0
    %v247 = vmul.f32 %v239, 10.0
    %v248 = vmul.f32 %v240, 10.0
    %v249 = vmul.f32 %v241, 10.0
    %v250 = vrot.slane %v226, 6
    %v251 = vrot.slane %v250, 4
    %v252 = vrot.slane %v227, 6
    %v253 = vrot.slane %v252, 4
    %v254 = vrot.slane %v228, 6
    %v255 = vrot.slane %v254, 4
    %v256 = vrot.slane %v229, 6
    %v257 = vrot.slane %v256, 4
    %v262 = vmul.f32 %v242, %v251
    %v263 = vmul.f32 %v243, %v253
    %v264 = vmul.f32 %v244, %v255
    %v265 = vmul.f32 %v245, %v257
    %v266 = vmul.f32 %v246, %v251
    %v267 = vmul.f32 %v247, %v253
    %v268 = vmul.f32 %v248, %v255
    %v269 = vmul.f32 %v249, %v257
    %v270 = vlog2.pop %v73
    %v271 = vmul.f32 %v270, 0.6931472
    %v272 = vlog2.pop %v74
    %v273 = vmul.f32 %v272, 0.6931472
    %v274 = vlog2.pop %v75
    %v275 = vmul.f32 %v274, 0.6931472
    %v276 = vlog2.pop %v76
    %v277 = vmul.f32 %v276, 0.6931472
    %v278 = vlog2.pop %v77
    %v279 = vmul.f32 %v278, 0.6931472
    %v280 = vlog2.pop %v78
    %v281 = vmul.f32 %v280, 0.6931472
    %v282 = vlog2.pop %v79
    %v283 = vmul.f32 %v282, 0.6931472
    %v284 = vlog2.pop %v80
    %v285 = vmul.f32 %v284, 0.6931472
    %v286 = vcombine.high %v83, %v84
    %v287 = vcombine.high %v85, %v86
    %v288 = vcombine.high %v87, %v88
    %v289 = vcombine.high %v89, %v90
    %v290 = vrot.slane %v286, 6
    %v291 = vrot.slane %v287, 6
    %v292 = vrot.slane %v288, 6
    %v293 = vrot.slane %v289, 6
    %v298 = vsub.f32 %v271, %v290
    %v299 = vsub.f32 %v273, %v291
    %v300 = vsub.f32 %v275, %v292
    %v301 = vsub.f32 %v277, %v293
    %v302 = vsub.f32 %v279, %v290
    %v303 = vsub.f32 %v281, %v291
    %v304 = vsub.f32 %v283, %v292
    %v305 = vsub.f32 %v285, %v293
    %v306 = vmul.f32 %v298, 5.0
    %v307 = vmul.f32 %v299, 5.0
    %v308 = vmul.f32 %v300, 5.0
    %v309 = vmul.f32 %v301, 5.0
    %v310 = vmul.f32 %v302, 5.0
    %v311 = vmul.f32 %v303, 5.0
    %v312 = vmul.f32 %v304, 5.0
    %v313 = vmul.f32 %v305, 5.0
    %v314 = vsub.f32 %v49, %v262
    %v315 = vsub.f32 %v50, %v263
    %v316 = vsub.f32 %v51, %v264
    %v317 = vsub.f32 %v52, %v265
    %v318 = vsub.f32 %v53, %v266
    %v319 = vsub.f32 %v54, %v267
    %v320 = vsub.f32 %v55, %v268
    %v321 = vsub.f32 %v56, %v269
    %v322 = vand.u32 2147483647, %v314
    %v323 = vand.u32 2147483647, %v315
    %v324 = vand.u32 2147483647, %v316
    %v325 = vand.u32 2147483647, %v317
    %v326 = vand.u32 2147483647, %v318
    %v327 = vand.u32 2147483647, %v319
    %v328 = vand.u32 2147483647, %v320
    %v329 = vand.u32 2147483647, %v321
    %vm330 = vcmp.lt.f32.partialorder %v322, 1.0
    %vm331 = vcmp.lt.f32.partialorder %v323, 1.0
    %vm332 = vcmp.lt.f32.partialorder %v324, 1.0
    %vm333 = vcmp.lt.f32.partialorder %v325, 1.0
    %vm334 = vcmp.lt.f32.partialorder %v326, 1.0
    %vm335 = vcmp.lt.f32.partialorder %v327, 1.0
    %vm336 = vcmp.lt.f32.partialorder %v328, 1.0
    %vm337 = vcmp.lt.f32.partialorder %v329, 1.0
    %v338 = vmul.f32 %v314, 0.5
    %v339 = vmul.f32 %v315, 0.5
    %v340 = vmul.f32 %v316, 0.5
    %v341 = vmul.f32 %v317, 0.5
    %v342 = vmul.f32 %v318, 0.5
    %v343 = vmul.f32 %v319, 0.5
    %v344 = vmul.f32 %v320, 0.5
    %v345 = vmul.f32 %v321, 0.5
    %v346 = vmul.f32 %v338, %v314
    %v347 = vmul.f32 %v339, %v315
    %v348 = vmul.f32 %v340, %v316
    %v349 = vmul.f32 %v341, %v317
    %v350 = vmul.f32 %v342, %v318
    %v351 = vmul.f32 %v343, %v319
    %v352 = vmul.f32 %v344, %v320
    %v353 = vmul.f32 %v345, %v321
    %v354 = vsub.f32 %v322, 0.5
    %v355 = vsub.f32 %v323, 0.5
    %v356 = vsub.f32 %v324, 0.5
    %v357 = vsub.f32 %v325, 0.5
    %v358 = vsub.f32 %v326, 0.5
    %v359 = vsub.f32 %v327, 0.5
    %v360 = vsub.f32 %v328, 0.5
    %v361 = vsub.f32 %v329, 0.5
    %v362 = vsel %vm330, %v346, %v354
    %v363 = vsel %vm331, %v347, %v355
    %v364 = vsel %vm332, %v348, %v356
    %v365 = vsel %vm333, %v349, %v357
    %v366 = vsel %vm334, %v350, %v358
    %v367 = vsel %vm335, %v351, %v359
    %v368 = vsel %vm336, %v352, %v360
    %v369 = vsel %vm337, %v353, %v361
    %v378 = vcombine.high %v362, %v362
    %v379 = vcombine.high %v363, %v363
    %v380 = vcombine.high %v364, %v364
    %v381 = vcombine.high %v365, %v365
    %v382 = vcombine.high %v366, %v366
    %v383 = vcombine.high %v367, %v367
    %v384 = vcombine.high %v368, %v368
    %v385 = vcombine.high %v369, %v369
    %vm394 = vcmask 1041408
    %v395 = vsel %vm394, %v362, 0.0
    %v396 = vrot.slane %v395, 4
    %v397 = vadd.f32 %v395, %v396
    %v398 = vrot.slane %v397, 2
    %v399 = vadd.f32 %v397, %v398
    %v400 = vrot.slane %v399, 1
    %v401 = vadd.f32 %v399, %v400
    %v402 = vsel %vm394, %v378, 0.0
    %v403 = vrot.slane %v402, 4
    %v404 = vadd.f32 %v402, %v403
    %v405 = vrot.slane %v404, 2
    %v406 = vadd.f32 %v404, %v405
    %v407 = vrot.slane %v406, 1
    %v408 = vadd.f32 %v406, %v407
    %v409 = vsel %vm394, %v363, 0.0
    %v410 = vrot.slane %v409, 4
    %v411 = vadd.f32 %v409, %v410
    %v412 = vrot.slane %v411, 2
    %v413 = vadd.f32 %v411, %v412
    %v414 = vrot.slane %v413, 1
    %v415 = vadd.f32 %v413, %v414
    %v416 = vsel %vm394, %v379, 0.0
    %v417 = vrot.slane %v416, 4
    %v418 = vadd.f32 %v416, %v417
    %v419 = vrot.slane %v418, 2
    %v420 = vadd.f32 %v418, %v419
    %v421 = vrot.slane %v420, 1
    %v422 = vadd.f32 %v420, %v421
    %v423 = vsel %vm394, %v364, 0.0
    %v424 = vrot.slane %v423, 4
    %v425 = vadd.f32 %v423, %v424
    %v426 = vrot.slane %v425, 2
    %v427 = vadd.f32 %v425, %v426
    %v428 = vrot.slane %v427, 1
    %v429 = vadd.f32 %v427, %v428
    %v430 = vsel %vm394, %v380, 0.0
    %v431 = vrot.slane %v430, 4
    %v432 = vadd.f32 %v430, %v431
    %v433 = vrot.slane %v432, 2
    %v434 = vadd.f32 %v432, %v433
    %v435 = vrot.slane %v434, 1
    %v436 = vadd.f32 %v434, %v435
    %v437 = vsel %vm394, %v365, 0.0
    %v438 = vrot.slane %v437, 4
    %v439 = vadd.f32 %v437, %v438
    %v440 = vrot.slane %v439, 2
    %v441 = vadd.f32 %v439, %v440
    %v442 = vrot.slane %v441, 1
    %v443 = vadd.f32 %v441, %v442
    %v444 = vsel %vm394, %v381, 0.0
    %v445 = vrot.slane %v444, 4
    %v446 = vadd.f32 %v444, %v445
    %v447 = vrot.slane %v446, 2
    %v448 = vadd.f32 %v446, %v447
    %v449 = vrot.slane %v448, 1
    %v450 = vadd.f32 %v448, %v449
    %v451 = vsel %vm394, %v366, 0.0
    %v452 = vrot.slane %v451, 4
    %v453 = vadd.f32 %v451, %v452
    %v454 = vrot.slane %v453, 2
    %v455 = vadd.f32 %v453, %v454
    %v456 = vrot.slane %v455, 1
    %v457 = vadd.f32 %v455, %v456
    %v458 = vsel %vm394, %v382, 0.0
    %v459 = vrot.slane %v458, 4
    %v460 = vadd.f32 %v458, %v459
    %v461 = vrot.slane %v460, 2
    %v462 = vadd.f32 %v460, %v461
    %v463 = vrot.slane %v462, 1
    %v464 = vadd.f32 %v462, %v463
    %v465 = vsel %vm394, %v367, 0.0
    %v466 = vrot.slane %v465, 4
    %v467 = vadd.f32 %v465, %v466
    %v468 = vrot.slane %v467, 2
    %v469 = vadd.f32 %v467, %v468
    %v470 = vrot.slane %v469, 1
    %v471 = vadd.f32 %v469, %v470
    %v472 = vsel %vm394, %v383, 0.0
    %v473 = vrot.slane %v472, 4
    %v474 = vadd.f32 %v472, %v473
    %v475 = vrot.slane %v474, 2
    %v476 = vadd.f32 %v474, %v475
    %v477 = vrot.slane %v476, 1
    %v478 = vadd.f32 %v476, %v477
    %v479 = vsel %vm394, %v368, 0.0
    %v480 = vrot.slane %v479, 4
    %v481 = vadd.f32 %v479, %v480
    %v482 = vrot.slane %v481, 2
    %v483 = vadd.f32 %v481, %v482
    %v484 = vrot.slane %v483, 1
    %v485 = vadd.f32 %v483, %v484
    %v486 = vsel %vm394, %v384, 0.0
    %v487 = vrot.slane %v486, 4
    %v488 = vadd.f32 %v486, %v487
    %v489 = vrot.slane %v488, 2
    %v490 = vadd.f32 %v488, %v489
    %v491 = vrot.slane %v490, 1
    %v492 = vadd.f32 %v490, %v491
    %v493 = vsel %vm394, %v369, 0.0
    %v494 = vrot.slane %v493, 4
    %v495 = vadd.f32 %v493, %v494
    %v496 = vrot.slane %v495, 2
    %v497 = vadd.f32 %v495, %v496
    %v498 = vrot.slane %v497, 1
    %v499 = vadd.f32 %v497, %v498
    %v500 = vsel %vm394, %v385, 0.0
    %v501 = vrot.slane %v500, 4
    %v502 = vadd.f32 %v500, %v501
    %v503 = vrot.slane %v502, 2
    %v504 = vadd.f32 %v502, %v503
    %v505 = vrot.slane %v504, 1
    %v506 = vadd.f32 %v504, %v505
    %v507 = vsub.f32 %v49, %v306
    %v508 = vsub.f32 %v50, %v307
    %v509 = vsub.f32 %v51, %v308
    %v510 = vsub.f32 %v52, %v309
    %v511 = vsub.f32 %v53, %v310
    %v512 = vsub.f32 %v54, %v311
    %v513 = vsub.f32 %v55, %v312
    %v514 = vsub.f32 %v56, %v313
    %v515 = vand.u32 2147483647, %v507
    %v516 = vand.u32 2147483647, %v508
    %v517 = vand.u32 2147483647, %v509
    %v518 = vand.u32 2147483647, %v510
    %v519 = vand.u32 2147483647, %v511
    %v520 = vand.u32 2147483647, %v512
    %v521 = vand.u32 2147483647, %v513
    %v522 = vand.u32 2147483647, %v514
    %vm523 = vcmp.lt.f32.partialorder %v515, 1.0
    %vm524 = vcmp.lt.f32.partialorder %v516, 1.0
    %vm525 = vcmp.lt.f32.partialorder %v517, 1.0
    %vm526 = vcmp.lt.f32.partialorder %v518, 1.0
    %vm527 = vcmp.lt.f32.partialorder %v519, 1.0
    %vm528 = vcmp.lt.f32.partialorder %v520, 1.0
    %vm529 = vcmp.lt.f32.partialorder %v521, 1.0
    %vm530 = vcmp.lt.f32.partialorder %v522, 1.0
    %v531 = vmul.f32 %v507, 0.5
    %v532 = vmul.f32 %v508, 0.5
    %v533 = vmul.f32 %v509, 0.5
    %v534 = vmul.f32 %v510, 0.5
    %v535 = vmul.f32 %v511, 0.5
    %v536 = vmul.f32 %v512, 0.5
    %v537 = vmul.f32 %v513, 0.5
    %v538 = vmul.f32 %v514, 0.5
    %v539 = vmul.f32 %v531, %v507
    %v540 = vmul.f32 %v532, %v508
    %v541 = vmul.f32 %v533, %v509
    %v542 = vmul.f32 %v534, %v510
    %v543 = vmul.f32 %v535, %v511
    %v544 = vmul.f32 %v536, %v512
    %v545 = vmul.f32 %v537, %v513
    %v546 = vmul.f32 %v538, %v514
    %v547 = vsub.f32 %v515, 0.5
    %v548 = vsub.f32 %v516, 0.5
    %v549 = vsub.f32 %v517, 0.5
    %v550 = vsub.f32 %v518, 0.5
    %v551 = vsub.f32 %v519, 0.5
    %v552 = vsub.f32 %v520, 0.5
    %v553 = vsub.f32 %v521, 0.5
    %v554 = vsub.f32 %v522, 0.5
    %v555 = vsel %vm523, %v539, %v547
    %v556 = vsel %vm524, %v540, %v548
    %v557 = vsel %vm525, %v541, %v549
    %v558 = vsel %vm526, %v542, %v550
    %v559 = vsel %vm527, %v543, %v551
    %v560 = vsel %vm528, %v544, %v552
    %v561 = vsel %vm529, %v545, %v553
    %v562 = vsel %vm530, %v546, %v554
    %v571 = vcombine.high %v555, %v555
    %v572 = vcombine.high %v556, %v556
    %v573 = vcombine.high %v557, %v557
    %v574 = vcombine.high %v558, %v558
    %v575 = vcombine.high %v559, %v559
    %v576 = vcombine.high %v560, %v560
    %v577 = vcombine.high %v561, %v561
    %v578 = vcombine.high %v562, %v562
    %v579 = vrot.slane %v555, 2
    %v580 = vrot.slane %v571, 2
    %v581 = vrot.slane %v556, 2
    %v582 = vrot.slane %v572, 2
    %v583 = vrot.slane %v557, 2
    %v584 = vrot.slane %v573, 2
    %v585 = vrot.slane %v558, 2
    %v586 = vrot.slane %v574, 2
    %v587 = vrot.slane %v559, 2
    %v588 = vrot.slane %v575, 2
    %v589 = vrot.slane %v560, 2
    %v590 = vrot.slane %v576, 2
    %v591 = vrot.slane %v561, 2
    %v592 = vrot.slane %v577, 2
    %v593 = vrot.slane %v562, 2
    %v594 = vrot.slane %v578, 2
    %v611 = vsel %vm394, %v579, 0.0
    %v612 = vrot.slane %v611, 4
    %v613 = vadd.f32 %v611, %v612
    %v614 = vrot.slane %v613, 2
    %v615 = vadd.f32 %v613, %v614
    %v616 = vrot.slane %v615, 1
    %v617 = vadd.f32 %v615, %v616
    %v618 = vsel %vm394, %v580, 0.0
    %v619 = vrot.slane %v618, 4
    %v620 = vadd.f32 %v618, %v619
    %v621 = vrot.slane %v620, 2
    %v622 = vadd.f32 %v620, %v621
    %v623 = vrot.slane %v622, 1
    %v624 = vadd.f32 %v622, %v623
    %v625 = vsel %vm394, %v581, 0.0
    %v626 = vrot.slane %v625, 4
    %v627 = vadd.f32 %v625, %v626
    %v628 = vrot.slane %v627, 2
    %v629 = vadd.f32 %v627, %v628
    %v630 = vrot.slane %v629, 1
    %v631 = vadd.f32 %v629, %v630
    %v632 = vsel %vm394, %v582, 0.0
    %v633 = vrot.slane %v632, 4
    %v634 = vadd.f32 %v632, %v633
    %v635 = vrot.slane %v634, 2
    %v636 = vadd.f32 %v634, %v635
    %v637 = vrot.slane %v636, 1
    %v638 = vadd.f32 %v636, %v637
    %v639 = vsel %vm394, %v583, 0.0
    %v640 = vrot.slane %v639, 4
    %v641 = vadd.f32 %v639, %v640
    %v642 = vrot.slane %v641, 2
    %v643 = vadd.f32 %v641, %v642
    %v644 = vrot.slane %v643, 1
    %v645 = vadd.f32 %v643, %v644
    %v646 = vsel %vm394, %v584, 0.0
    %v647 = vrot.slane %v646, 4
    %v648 = vadd.f32 %v646, %v647
    %v649 = vrot.slane %v648, 2
    %v650 = vadd.f32 %v648, %v649
    %v651 = vrot.slane %v650, 1
    %v652 = vadd.f32 %v650, %v651
    %v653 = vsel %vm394, %v585, 0.0
    %v654 = vrot.slane %v653, 4
    %v655 = vadd.f32 %v653, %v654
    %v656 = vrot.slane %v655, 2
    %v657 = vadd.f32 %v655, %v656
    %v658 = vrot.slane %v657, 1
    %v659 = vadd.f32 %v657, %v658
    %v660 = vsel %vm394, %v586, 0.0
    %v661 = vrot.slane %v660, 4
    %v662 = vadd.f32 %v660, %v661
    %v663 = vrot.slane %v662, 2
    %v664 = vadd.f32 %v662, %v663
    %v665 = vrot.slane %v664, 1
    %v666 = vadd.f32 %v664, %v665
    %v667 = vsel %vm394, %v587, 0.0
    %v668 = vrot.slane %v667, 4
    %v669 = vadd.f32 %v667, %v668
    %v670 = vrot.slane %v669, 2
    %v671 = vadd.f32 %v669, %v670
    %v672 = vrot.slane %v671, 1
    %v673 = vadd.f32 %v671, %v672
    %v674 = vsel %vm394, %v588, 0.0
    %v675 = vrot.slane %v674, 4
    %v676 = vadd.f32 %v674, %v675
    %v677 = vrot.slane %v676, 2
    %v678 = vadd.f32 %v676, %v677
    %v679 = vrot.slane %v678, 1
    %v680 = vadd.f32 %v678, %v679
    %v681 = vsel %vm394, %v589, 0.0
    %v682 = vrot.slane %v681, 4
    %v683 = vadd.f32 %v681, %v682
    %v684 = vrot.slane %v683, 2
    %v685 = vadd.f32 %v683, %v684
    %v686 = vrot.slane %v685, 1
    %v687 = vadd.f32 %v685, %v686
    %v688 = vsel %vm394, %v590, 0.0
    %v689 = vrot.slane %v688, 4
    %v690 = vadd.f32 %v688, %v689
    %v691 = vrot.slane %v690, 2
    %v692 = vadd.f32 %v690, %v691
    %v693 = vrot.slane %v692, 1
    %v694 = vadd.f32 %v692, %v693
    %v695 = vsel %vm394, %v591, 0.0
    %v696 = vrot.slane %v695, 4
    %v697 = vadd.f32 %v695, %v696
    %v698 = vrot.slane %v697, 2
    %v699 = vadd.f32 %v697, %v698
    %v700 = vrot.slane %v699, 1
    %v701 = vadd.f32 %v699, %v700
    %v702 = vsel %vm394, %v592, 0.0
    %v703 = vrot.slane %v702, 4
    %v704 = vadd.f32 %v702, %v703
    %v705 = vrot.slane %v704, 2
    %v706 = vadd.f32 %v704, %v705
    %v707 = vrot.slane %v706, 1
    %v708 = vadd.f32 %v706, %v707
    %v709 = vsel %vm394, %v593, 0.0
    %v710 = vrot.slane %v709, 4
    %v711 = vadd.f32 %v709, %v710
    %v712 = vrot.slane %v711, 2
    %v713 = vadd.f32 %v711, %v712
    %v714 = vrot.slane %v713, 1
    %v715 = vadd.f32 %v713, %v714
    %v716 = vsel %vm394, %v594, 0.0
    %v717 = vrot.slane %v716, 4
    %v718 = vadd.f32 %v716, %v717
    %v719 = vrot.slane %v718, 2
    %v720 = vadd.f32 %v718, %v719
    %v721 = vrot.slane %v720, 1
    %v722 = vadd.f32 %v720, %v721
    %v723 = vadd.f32 %v401, %v617
    %v724 = vadd.f32 %v408, %v624
    %v725 = vadd.f32 %v415, %v631
    %v726 = vadd.f32 %v422, %v638
    %v727 = vadd.f32 %v429, %v645
    %v728 = vadd.f32 %v436, %v652
    %v729 = vadd.f32 %v443, %v659
    %v730 = vadd.f32 %v450, %v666
    %v731 = vadd.f32 %v457, %v673
    %v732 = vadd.f32 %v464, %v680
    %v733 = vadd.f32 %v471, %v687
    %v734 = vadd.f32 %v478, %v694
    %v735 = vadd.f32 %v485, %v701
    %v736 = vadd.f32 %v492, %v708
    %v737 = vadd.f32 %v499, %v715
    %v738 = vadd.f32 %v506, %v722
    %v755 = vcombine.low %v723, %v724
    %v756 = vcombine.low %v725, %v726
    %v757 = vcombine.low %v727, %v728
    %v758 = vcombine.low %v729, %v730
    %v760 = vunpack.c.l.s4 1966171168
    %v761 = vunpack.c.0.s8 %v760
    %v762 = vlaneseq
    %v763 = vshrl.u32 %v762, 7
    %v764 = vsub.s32 %v761, %v763
    %v765 = vrot.slane %v755, %v764
    %v767 = vunpack.c.l.s4 1966171168
    %v768 = vunpack.c.0.s8 %v767
    %v769 = vlaneseq
    %v770 = vshrl.u32 %v769, 7
    %v771 = vsub.s32 %v768, %v770
    %v772 = vrot.slane %v756, %v771
    %v774 = vunpack.c.l.s4 1966171168
    %v775 = vunpack.c.0.s8 %v774
    %v776 = vlaneseq
    %v777 = vshrl.u32 %v776, 7
    %v778 = vsub.s32 %v775, %v777
    %v779 = vrot.slane %v757, %v778
    %v781 = vunpack.c.l.s4 1966171168
    %v782 = vunpack.c.0.s8 %v781
    %v783 = vlaneseq
    %v784 = vshrl.u32 %v783, 7
    %v785 = vsub.s32 %v782, %v784
    %v786 = vrot.slane %v758, %v785
    %v787 = vcombine.low %v765, %v772
    %v788 = vcombine.low %v779, %v786
    %v790 = vunpack.c.l.s4 1966171168
    %v791 = vunpack.c.0.s8 %v790
    %v792 = vlaneseq
    %v793 = vshrl.u32 %v792, 7
    %v794 = vsub.s32 %v791, %v793
    %v795 = vrot.slane %v787, %v794
    %v797 = vunpack.c.l.s4 1966171168
    %v798 = vunpack.c.0.s8 %v797
    %v799 = vlaneseq
    %v800 = vshrl.u32 %v799, 7
    %v801 = vsub.s32 %v798, %v800
    %v802 = vrot.slane %v788, %v801
    %v803 = vcombine.low %v795, %v802
    %v804 = vcombine.low %v731, %v732
    %v805 = vcombine.low %v733, %v734
    %v806 = vcombine.low %v735, %v736
    %v807 = vcombine.low %v737, %v738
    %v809 = vunpack.c.l.s4 1966171168
    %v810 = vunpack.c.0.s8 %v809
    %v811 = vlaneseq
    %v812 = vshrl.u32 %v811, 7
    %v813 = vsub.s32 %v810, %v812
    %v814 = vrot.slane %v804, %v813
    %v816 = vunpack.c.l.s4 1966171168
    %v817 = vunpack.c.0.s8 %v816
    %v818 = vlaneseq
    %v819 = vshrl.u32 %v818, 7
    %v820 = vsub.s32 %v817, %v819
    %v821 = vrot.slane %v805, %v820
    %v823 = vunpack.c.l.s4 1966171168
    %v824 = vunpack.c.0.s8 %v823
    %v825 = vlaneseq
    %v826 = vshrl.u32 %v825, 7
    %v827 = vsub.s32 %v824, %v826
    %v828 = vrot.slane %v806, %v827
    %v830 = vunpack.c.l.s4 1966171168
    %v831 = vunpack.c.0.s8 %v830
    %v832 = vlaneseq
    %v833 = vshrl.u32 %v832, 7
    %v834 = vsub.s32 %v831, %v833
    %v835 = vrot.slane %v807, %v834
    %v836 = vcombine.low %v814, %v821
    %v837 = vcombine.low %v828, %v835
    %v839 = vunpack.c.l.s4 1966171168
    %v840 = vunpack.c.0.s8 %v839
    %v841 = vlaneseq
    %v842 = vshrl.u32 %v841, 7
    %v843 = vsub.s32 %v840, %v842
    %v844 = vrot.slane %v836, %v843
    %v846 = vunpack.c.l.s4 1966171168
    %v847 = vunpack.c.0.s8 %v846
    %v848 = vlaneseq
    %v849 = vshrl.u32 %v848, 7
    %v850 = vsub.s32 %v847, %v849
    %v851 = vrot.slane %v837, %v850
    %v852 = vcombine.low %v844, %v851
    %v855 = vmul.f32 %v95, %v803
    %v856 = vmul.f32 %v96, %v852
    %v859 = vlaneseq
    %v860 = vshrl.u32 %v859, 7
    %v861 = vsub.s32 0, %v860
    %v862 = vrot.slane %v855, %v861
    %v863 = vlaneseq
    %v864 = vshrl.u32 %v863, 7
    %v865 = vsub.s32 1, %v864
    %v866 = vrot.slane %v855, %v865
    %v867 = vlaneseq
    %v868 = vshrl.u32 %v867, 7
    %v869 = vsub.s32 2, %v868
    %v870 = vrot.slane %v855, %v869
    %v871 = vlaneseq
    %v872 = vshrl.u32 %v871, 7
    %v873 = vsub.s32 3, %v872
    %v874 = vrot.slane %v855, %v873
    %v875 = vlaneseq
    %v876 = vshrl.u32 %v875, 7
    %v877 = vsub.s32 4, %v876
    %v878 = vrot.slane %v855, %v877
    %v879 = vlaneseq
    %v880 = vshrl.u32 %v879, 7
    %v881 = vsub.s32 5, %v880
    %v882 = vrot.slane %v855, %v881
    %v883 = vlaneseq
    %v884 = vshrl.u32 %v883, 7
    %v885 = vsub.s32 6, %v884
    %v886 = vrot.slane %v855, %v885
    %v887 = vlaneseq
    %v888 = vshrl.u32 %v887, 7
    %v889 = vsub.s32 7, %v888
    %v890 = vrot.slane %v855, %v889
    %v891 = vlaneseq
    %v892 = vshrl.u32 %v891, 7
    %v893 = vsub.s32 0, %v892
    %v894 = vrot.slane %v856, %v893
    %v895 = vlaneseq
    %v896 = vshrl.u32 %v895, 7
    %v897 = vsub.s32 1, %v896
    %v898 = vrot.slane %v856, %v897
    %v899 = vlaneseq
    %v900 = vshrl.u32 %v899, 7
    %v901 = vsub.s32 2, %v900
    %v902 = vrot.slane %v856, %v901
    %v903 = vlaneseq
    %v904 = vshrl.u32 %v903, 7
    %v905 = vsub.s32 3, %v904
    %v906 = vrot.slane %v856, %v905
    %v907 = vlaneseq
    %v908 = vshrl.u32 %v907, 7
    %v909 = vsub.s32 4, %v908
    %v910 = vrot.slane %v856, %v909
    %v911 = vlaneseq
    %v912 = vshrl.u32 %v911, 7
    %v913 = vsub.s32 5, %v912
    %v914 = vrot.slane %v856, %v913
    %v915 = vlaneseq
    %v916 = vshrl.u32 %v915, 7
    %v917 = vsub.s32 6, %v916
    %v918 = vrot.slane %v856, %v917
    %v919 = vlaneseq
    %v920 = vshrl.u32 %v919, 7
    %v921 = vsub.s32 7, %v920
    %v922 = vrot.slane %v856, %v921
    %v939 = vsel %vm161, %v862, 0.0
    %v940 = vsel %vm161, %v866, 0.0
    %v941 = vadd.f32 %v939, %v940
    %v942 = vsel %vm161, %v870, 0.0
    %v943 = vadd.f32 %v941, %v942
    %v944 = vsel %vm161, %v874, 0.0
    %v945 = vadd.f32 %v943, %v944
    %v946 = vsel %vm161, %v878, 0.0
    %v947 = vadd.f32 %v945, %v946
    %v948 = vsel %vm161, %v882, 0.0
    %v949 = vadd.f32 %v947, %v948
    %v950 = vsel %vm161, %v886, 0.0
    %v951 = vadd.f32 %v949, %v950
    %v952 = vsel %vm161, %v890, 0.0
    %v953 = vadd.f32 %v951, %v952
    %954 = vadd.xlane.f32.xlu0 %v953
    %v955 = vpop.xlane.xlu0 %954
    %v956 = vsel %vm161, %v894, 0.0
    %v957 = vsel %vm161, %v898, 0.0
    %v958 = vadd.f32 %v956, %v957
    %v959 = vsel %vm161, %v902, 0.0
    %v960 = vadd.f32 %v958, %v959
    %v961 = vsel %vm161, %v906, 0.0
    %v962 = vadd.f32 %v960, %v961
    %v963 = vsel %vm161, %v910, 0.0
    %v964 = vadd.f32 %v962, %v963
    %v965 = vsel %vm161, %v914, 0.0
    %v966 = vadd.f32 %v964, %v965
    %v967 = vsel %vm161, %v918, 0.0
    %v968 = vadd.f32 %v966, %v967
    %v969 = vsel %vm161, %v922, 0.0
    %v970 = vadd.f32 %v968, %v969
    %971 = vadd.xlane.f32.xlu0 %v970
    %v972 = vpop.xlane.xlu0 %971
    %v973 = vrot.slane %v57, 4
    %v974 = vmax.f32 %v57, %v973
    %v975 = vrot.slane %v974, 2
    %v976 = vmax.f32 %v974, %v975
    %v977 = vrot.slane %v976, 1
    %v978 = vmax.f32 %v976, %v977
    %v979 = vrot.slane %v58, 4
    %v980 = vmax.f32 %v58, %v979
    %v981 = vrot.slane %v980, 2
    %v982 = vmax.f32 %v980, %v981
    %v983 = vrot.slane %v982, 1
    %v984 = vmax.f32 %v982, %v983
    %v985 = vrot.slane %v59, 4
    %v986 = vmax.f32 %v59, %v985
    %v987 = vrot.slane %v986, 2
    %v988 = vmax.f32 %v986, %v987
    %v989 = vrot.slane %v988, 1
    %v990 = vmax.f32 %v988, %v989
    %v991 = vrot.slane %v60, 4
    %v992 = vmax.f32 %v60, %v991
    %v993 = vrot.slane %v992, 2
    %v994 = vmax.f32 %v992, %v993
    %v995 = vrot.slane %v994, 1
    %v996 = vmax.f32 %v994, %v995
    %v997 = vrot.slane %v61, 4
    %v998 = vmax.f32 %v61, %v997
    %v999 = vrot.slane %v998, 2
    %v1000 = vmax.f32 %v998, %v999
    %v1001 = vrot.slane %v1000, 1
    %v1002 = vmax.f32 %v1000, %v1001
    %v1003 = vrot.slane %v62, 4
    %v1004 = vmax.f32 %v62, %v1003
    %v1005 = vrot.slane %v1004, 2
    %v1006 = vmax.f32 %v1004, %v1005
    %v1007 = vrot.slane %v1006, 1
    %v1008 = vmax.f32 %v1006, %v1007
    %v1009 = vrot.slane %v63, 4
    %v1010 = vmax.f32 %v63, %v1009
    %v1011 = vrot.slane %v1010, 2
    %v1012 = vmax.f32 %v1010, %v1011
    %v1013 = vrot.slane %v1012, 1
    %v1014 = vmax.f32 %v1012, %v1013
    %v1015 = vrot.slane %v64, 4
    %v1016 = vmax.f32 %v64, %v1015
    %v1017 = vrot.slane %v1016, 2
    %v1018 = vmax.f32 %v1016, %v1017
    %v1019 = vrot.slane %v1018, 1
    %v1020 = vmax.f32 %v1018, %v1019
    %v1021 = vrot.slane %v65, 4
    %v1022 = vmax.f32 %v65, %v1021
    %v1023 = vrot.slane %v1022, 2
    %v1024 = vmax.f32 %v1022, %v1023
    %v1025 = vrot.slane %v1024, 1
    %v1026 = vmax.f32 %v1024, %v1025
    %v1027 = vrot.slane %v66, 4
    %v1028 = vmax.f32 %v66, %v1027
    %v1029 = vrot.slane %v1028, 2
    %v1030 = vmax.f32 %v1028, %v1029
    %v1031 = vrot.slane %v1030, 1
    %v1032 = vmax.f32 %v1030, %v1031
    %v1033 = vrot.slane %v67, 4
    %v1034 = vmax.f32 %v67, %v1033
    %v1035 = vrot.slane %v1034, 2
    %v1036 = vmax.f32 %v1034, %v1035
    %v1037 = vrot.slane %v1036, 1
    %v1038 = vmax.f32 %v1036, %v1037
    %v1039 = vrot.slane %v68, 4
    %v1040 = vmax.f32 %v68, %v1039
    %v1041 = vrot.slane %v1040, 2
    %v1042 = vmax.f32 %v1040, %v1041
    %v1043 = vrot.slane %v1042, 1
    %v1044 = vmax.f32 %v1042, %v1043
    %v1045 = vrot.slane %v69, 4
    %v1046 = vmax.f32 %v69, %v1045
    %v1047 = vrot.slane %v1046, 2
    %v1048 = vmax.f32 %v1046, %v1047
    %v1049 = vrot.slane %v1048, 1
    %v1050 = vmax.f32 %v1048, %v1049
    %v1051 = vrot.slane %v70, 4
    %v1052 = vmax.f32 %v70, %v1051
    %v1053 = vrot.slane %v1052, 2
    %v1054 = vmax.f32 %v1052, %v1053
    %v1055 = vrot.slane %v1054, 1
    %v1056 = vmax.f32 %v1054, %v1055
    %v1057 = vrot.slane %v71, 4
    %v1058 = vmax.f32 %v71, %v1057
    %v1059 = vrot.slane %v1058, 2
    %v1060 = vmax.f32 %v1058, %v1059
    %v1061 = vrot.slane %v1060, 1
    %v1062 = vmax.f32 %v1060, %v1061
    %v1063 = vrot.slane %v72, 4
    %v1064 = vmax.f32 %v72, %v1063
    %v1065 = vrot.slane %v1064, 2
    %v1066 = vmax.f32 %v1064, %v1065
    %v1067 = vrot.slane %v1066, 1
    %v1068 = vmax.f32 %v1066, %v1067
    %v1069 = vsub.f32 %v57, %v978
    %v1070 = vsub.f32 %v58, %v984
    %v1071 = vsub.f32 %v59, %v990
    %v1072 = vsub.f32 %v60, %v996
    %v1073 = vsub.f32 %v61, %v1002
    %v1074 = vsub.f32 %v62, %v1008
    %v1075 = vsub.f32 %v63, %v1014
    %v1076 = vsub.f32 %v64, %v1020
    %v1077 = vsub.f32 %v65, %v1026
    %v1078 = vsub.f32 %v66, %v1032
    %v1079 = vsub.f32 %v67, %v1038
    %v1080 = vsub.f32 %v68, %v1044
    %v1081 = vsub.f32 %v69, %v1050
    %v1082 = vsub.f32 %v70, %v1056
    %v1083 = vsub.f32 %v71, %v1062
    %v1084 = vsub.f32 %v72, %v1068
    %v1085 = vmul.f32 %v1069, 1.442695
    %v1086 = vpow.pop %v1085
    %v1087 = vmul.f32 %v1070, 1.442695
    %v1088 = vpow.pop %v1087
    %v1089 = vmul.f32 %v1071, 1.442695
    %v1090 = vpow.pop %v1089
    %v1091 = vmul.f32 %v1072, 1.442695
    %v1092 = vpow.pop %v1091
    %v1093 = vmul.f32 %v1073, 1.442695
    %v1094 = vpow.pop %v1093
    %v1095 = vmul.f32 %v1074, 1.442695
    %v1096 = vpow.pop %v1095
    %v1097 = vmul.f32 %v1075, 1.442695
    %v1098 = vpow.pop %v1097
    %v1099 = vmul.f32 %v1076, 1.442695
    %v1100 = vpow.pop %v1099
    %v1101 = vmul.f32 %v1077, 1.442695
    %v1102 = vpow.pop %v1101
    %v1103 = vmul.f32 %v1078, 1.442695
    %v1104 = vpow.pop %v1103
    %v1105 = vmul.f32 %v1079, 1.442695
    %v1106 = vpow.pop %v1105
    %v1107 = vmul.f32 %v1080, 1.442695
    %v1108 = vpow.pop %v1107
    %v1109 = vmul.f32 %v1081, 1.442695
    %v1110 = vpow.pop %v1109
    %v1111 = vmul.f32 %v1082, 1.442695
    %v1112 = vpow.pop %v1111
    %v1113 = vmul.f32 %v1083, 1.442695
    %v1114 = vpow.pop %v1113
    %v1115 = vmul.f32 %v1084, 1.442695
    %v1116 = vpow.pop %v1115
    %v1117 = vrot.slane %v1086, 4
    %v1118 = vadd.f32 %v1086, %v1117
    %v1119 = vrot.slane %v1118, 2
    %v1120 = vadd.f32 %v1118, %v1119
    %v1121 = vrot.slane %v1120, 1
    %v1122 = vadd.f32 %v1120, %v1121
    %v1123 = vrot.slane %v1088, 4
    %v1124 = vadd.f32 %v1088, %v1123
    %v1125 = vrot.slane %v1124, 2
    %v1126 = vadd.f32 %v1124, %v1125
    %v1127 = vrot.slane %v1126, 1
    %v1128 = vadd.f32 %v1126, %v1127
    %v1129 = vrot.slane %v1090, 4
    %v1130 = vadd.f32 %v1090, %v1129
    %v1131 = vrot.slane %v1130, 2
    %v1132 = vadd.f32 %v1130, %v1131
    %v1133 = vrot.slane %v1132, 1
    %v1134 = vadd.f32 %v1132, %v1133
    %v1135 = vrot.slane %v1092, 4
    %v1136 = vadd.f32 %v1092, %v1135
    %v1137 = vrot.slane %v1136, 2
    %v1138 = vadd.f32 %v1136, %v1137
    %v1139 = vrot.slane %v1138, 1
    %v1140 = vadd.f32 %v1138, %v1139
    %v1141 = vrot.slane %v1094, 4
    %v1142 = vadd.f32 %v1094, %v1141
    %v1143 = vrot.slane %v1142, 2
    %v1144 = vadd.f32 %v1142, %v1143
    %v1145 = vrot.slane %v1144, 1
    %v1146 = vadd.f32 %v1144, %v1145
    %v1147 = vrot.slane %v1096, 4
    %v1148 = vadd.f32 %v1096, %v1147
    %v1149 = vrot.slane %v1148, 2
    %v1150 = vadd.f32 %v1148, %v1149
    %v1151 = vrot.slane %v1150, 1
    %v1152 = vadd.f32 %v1150, %v1151
    %v1153 = vrot.slane %v1098, 4
    %v1154 = vadd.f32 %v1098, %v1153
    %v1155 = vrot.slane %v1154, 2
    %v1156 = vadd.f32 %v1154, %v1155
    %v1157 = vrot.slane %v1156, 1
    %v1158 = vadd.f32 %v1156, %v1157
    %v1159 = vrot.slane %v1100, 4
    %v1160 = vadd.f32 %v1100, %v1159
    %v1161 = vrot.slane %v1160, 2
    %v1162 = vadd.f32 %v1160, %v1161
    %v1163 = vrot.slane %v1162, 1
    %v1164 = vadd.f32 %v1162, %v1163
    %v1165 = vrot.slane %v1102, 4
    %v1166 = vadd.f32 %v1102, %v1165
    %v1167 = vrot.slane %v1166, 2
    %v1168 = vadd.f32 %v1166, %v1167
    %v1169 = vrot.slane %v1168, 1
    %v1170 = vadd.f32 %v1168, %v1169
    %v1171 = vrot.slane %v1104, 4
    %v1172 = vadd.f32 %v1104, %v1171
    %v1173 = vrot.slane %v1172, 2
    %v1174 = vadd.f32 %v1172, %v1173
    %v1175 = vrot.slane %v1174, 1
    %v1176 = vadd.f32 %v1174, %v1175
    %v1177 = vrot.slane %v1106, 4
    %v1178 = vadd.f32 %v1106, %v1177
    %v1179 = vrot.slane %v1178, 2
    %v1180 = vadd.f32 %v1178, %v1179
    %v1181 = vrot.slane %v1180, 1
    %v1182 = vadd.f32 %v1180, %v1181
    %v1183 = vrot.slane %v1108, 4
    %v1184 = vadd.f32 %v1108, %v1183
    %v1185 = vrot.slane %v1184, 2
    %v1186 = vadd.f32 %v1184, %v1185
    %v1187 = vrot.slane %v1186, 1
    %v1188 = vadd.f32 %v1186, %v1187
    %v1189 = vrot.slane %v1110, 4
    %v1190 = vadd.f32 %v1110, %v1189
    %v1191 = vrot.slane %v1190, 2
    %v1192 = vadd.f32 %v1190, %v1191
    %v1193 = vrot.slane %v1192, 1
    %v1194 = vadd.f32 %v1192, %v1193
    %v1195 = vrot.slane %v1112, 4
    %v1196 = vadd.f32 %v1112, %v1195
    %v1197 = vrot.slane %v1196, 2
    %v1198 = vadd.f32 %v1196, %v1197
    %v1199 = vrot.slane %v1198, 1
    %v1200 = vadd.f32 %v1198, %v1199
    %v1201 = vrot.slane %v1114, 4
    %v1202 = vadd.f32 %v1114, %v1201
    %v1203 = vrot.slane %v1202, 2
    %v1204 = vadd.f32 %v1202, %v1203
    %v1205 = vrot.slane %v1204, 1
    %v1206 = vadd.f32 %v1204, %v1205
    %v1207 = vrot.slane %v1116, 4
    %v1208 = vadd.f32 %v1116, %v1207
    %v1209 = vrot.slane %v1208, 2
    %v1210 = vadd.f32 %v1208, %v1209
    %v1211 = vrot.slane %v1210, 1
    %v1212 = vadd.f32 %v1210, %v1211
    %v1213 = vlog2.pop %v1122
    %v1214 = vmul.f32 %v1213, 0.6931472
    %v1215 = vlog2.pop %v1128
    %v1216 = vmul.f32 %v1215, 0.6931472
    %v1217 = vlog2.pop %v1134
    %v1218 = vmul.f32 %v1217, 0.6931472
    %v1219 = vlog2.pop %v1140
    %v1220 = vmul.f32 %v1219, 0.6931472
    %v1221 = vlog2.pop %v1146
    %v1222 = vmul.f32 %v1221, 0.6931472
    %v1223 = vlog2.pop %v1152
    %v1224 = vmul.f32 %v1223, 0.6931472
    %v1225 = vlog2.pop %v1158
    %v1226 = vmul.f32 %v1225, 0.6931472
    %v1227 = vlog2.pop %v1164
    %v1228 = vmul.f32 %v1227, 0.6931472
    %v1229 = vlog2.pop %v1170
    %v1230 = vmul.f32 %v1229, 0.6931472
    %v1231 = vlog2.pop %v1176
    %v1232 = vmul.f32 %v1231, 0.6931472
    %v1233 = vlog2.pop %v1182
    %v1234 = vmul.f32 %v1233, 0.6931472
    %v1235 = vlog2.pop %v1188
    %v1236 = vmul.f32 %v1235, 0.6931472
    %v1237 = vlog2.pop %v1194
    %v1238 = vmul.f32 %v1237, 0.6931472
    %v1239 = vlog2.pop %v1200
    %v1240 = vmul.f32 %v1239, 0.6931472
    %v1241 = vlog2.pop %v1206
    %v1242 = vmul.f32 %v1241, 0.6931472
    %v1243 = vlog2.pop %v1212
    %v1244 = vmul.f32 %v1243, 0.6931472
    %v1245 = vadd.f32 %v1214, %v978
    %v1246 = vadd.f32 %v1216, %v984
    %v1247 = vadd.f32 %v1218, %v990
    %v1248 = vadd.f32 %v1220, %v996
    %v1249 = vadd.f32 %v1222, %v1002
    %v1250 = vadd.f32 %v1224, %v1008
    %v1251 = vadd.f32 %v1226, %v1014
    %v1252 = vadd.f32 %v1228, %v1020
    %v1253 = vadd.f32 %v1230, %v1026
    %v1254 = vadd.f32 %v1232, %v1032
    %v1255 = vadd.f32 %v1234, %v1038
    %v1256 = vadd.f32 %v1236, %v1044
    %v1257 = vadd.f32 %v1238, %v1050
    %v1258 = vadd.f32 %v1240, %v1056
    %v1259 = vadd.f32 %v1242, %v1062
    %v1260 = vadd.f32 %v1244, %v1068
    %v1261 = vlaneseq
    %v1262 = vshrl.u32 %v1261, 7
    %v1263 = vlaneseq
    %v1264 = vshrl.u32 %v1263, 7
    %v1265 = vsub.s32 0, %v1264
    %v1266 = vrot.slane %v81, %v1265
    %v1267 = vlaneseq
    %v1268 = vshrl.u32 %v1267, 7
    %v1269 = vsub.s32 1, %v1268
    %v1270 = vrot.slane %v81, %v1269
    %v1271 = vlaneseq
    %v1272 = vshrl.u32 %v1271, 7
    %v1273 = vsub.s32 2, %v1272
    %v1274 = vrot.slane %v81, %v1273
    %v1275 = vlaneseq
    %v1276 = vshrl.u32 %v1275, 7
    %v1277 = vsub.s32 3, %v1276
    %v1278 = vrot.slane %v81, %v1277
    %v1279 = vlaneseq
    %v1280 = vshrl.u32 %v1279, 7
    %v1281 = vsub.s32 4, %v1280
    %v1282 = vrot.slane %v81, %v1281
    %v1283 = vlaneseq
    %v1284 = vshrl.u32 %v1283, 7
    %v1285 = vsub.s32 5, %v1284
    %v1286 = vrot.slane %v81, %v1285
    %v1287 = vlaneseq
    %v1288 = vshrl.u32 %v1287, 7
    %v1289 = vsub.s32 6, %v1288
    %v1290 = vrot.slane %v81, %v1289
    %v1291 = vlaneseq
    %v1292 = vshrl.u32 %v1291, 7
    %v1293 = vsub.s32 7, %v1292
    %v1294 = vrot.slane %v81, %v1293
    %v1295 = vlaneseq
    %v1296 = vshrl.u32 %v1295, 7
    %v1297 = vsub.s32 0, %v1296
    %v1298 = vrot.slane %v82, %v1297
    %v1299 = vlaneseq
    %v1300 = vshrl.u32 %v1299, 7
    %v1301 = vsub.s32 1, %v1300
    %v1302 = vrot.slane %v82, %v1301
    %v1303 = vlaneseq
    %v1304 = vshrl.u32 %v1303, 7
    %v1305 = vsub.s32 2, %v1304
    %v1306 = vrot.slane %v82, %v1305
    %v1307 = vlaneseq
    %v1308 = vshrl.u32 %v1307, 7
    %v1309 = vsub.s32 3, %v1308
    %v1310 = vrot.slane %v82, %v1309
    %v1311 = vlaneseq
    %v1312 = vshrl.u32 %v1311, 7
    %v1313 = vsub.s32 4, %v1312
    %v1314 = vrot.slane %v82, %v1313
    %v1315 = vlaneseq
    %v1316 = vshrl.u32 %v1315, 7
    %v1317 = vsub.s32 5, %v1316
    %v1318 = vrot.slane %v82, %v1317
    %v1319 = vlaneseq
    %v1320 = vshrl.u32 %v1319, 7
    %v1321 = vsub.s32 6, %v1320
    %v1322 = vrot.slane %v82, %v1321
    %v1323 = vlaneseq
    %v1324 = vshrl.u32 %v1323, 7
    %v1325 = vsub.s32 7, %v1324
    %v1326 = vrot.slane %v82, %v1325
    %vm1327 = vcmp.eq.s32.totalorder %v1262, %v1266
    %vm1328 = vcmp.eq.s32.totalorder %v1262, %v1270
    %vm1329 = vcmp.eq.s32.totalorder %v1262, %v1274
    %vm1330 = vcmp.eq.s32.totalorder %v1262, %v1278
    %vm1331 = vcmp.eq.s32.totalorder %v1262, %v1282
    %vm1332 = vcmp.eq.s32.totalorder %v1262, %v1286
    %vm1333 = vcmp.eq.s32.totalorder %v1262, %v1290
    %vm1334 = vcmp.eq.s32.totalorder %v1262, %v1294
    %vm1335 = vcmp.eq.s32.totalorder %v1262, %v1298
    %vm1336 = vcmp.eq.s32.totalorder %v1262, %v1302
    %vm1337 = vcmp.eq.s32.totalorder %v1262, %v1306
    %vm1338 = vcmp.eq.s32.totalorder %v1262, %v1310
    %vm1339 = vcmp.eq.s32.totalorder %v1262, %v1314
    %vm1340 = vcmp.eq.s32.totalorder %v1262, %v1318
    %vm1341 = vcmp.eq.s32.totalorder %v1262, %v1322
    %vm1342 = vcmp.eq.s32.totalorder %v1262, %v1326
    %v1343 = vsel %vm1327, %v57, 0.0
    %v1344 = vsel %vm1328, %v58, 0.0
    %v1345 = vsel %vm1329, %v59, 0.0
    %v1346 = vsel %vm1330, %v60, 0.0
    %v1347 = vsel %vm1331, %v61, 0.0
    %v1348 = vsel %vm1332, %v62, 0.0
    %v1349 = vsel %vm1333, %v63, 0.0
    %v1350 = vsel %vm1334, %v64, 0.0
    %v1351 = vsel %vm1335, %v65, 0.0
    %v1352 = vsel %vm1336, %v66, 0.0
    %v1353 = vsel %vm1337, %v67, 0.0
    %v1354 = vsel %vm1338, %v68, 0.0
    %v1355 = vsel %vm1339, %v69, 0.0
    %v1356 = vsel %vm1340, %v70, 0.0
    %v1357 = vsel %vm1341, %v71, 0.0
    %v1358 = vsel %vm1342, %v72, 0.0
    %v1359 = vrot.slane %v1343, 4
    %v1360 = vadd.f32 %v1343, %v1359
    %v1361 = vrot.slane %v1360, 2
    %v1362 = vadd.f32 %v1360, %v1361
    %v1363 = vrot.slane %v1362, 1
    %v1364 = vadd.f32 %v1362, %v1363
    %v1365 = vrot.slane %v1344, 4
    %v1366 = vadd.f32 %v1344, %v1365
    %v1367 = vrot.slane %v1366, 2
    %v1368 = vadd.f32 %v1366, %v1367
    %v1369 = vrot.slane %v1368, 1
    %v1370 = vadd.f32 %v1368, %v1369
    %v1371 = vrot.slane %v1345, 4
    %v1372 = vadd.f32 %v1345, %v1371
    %v1373 = vrot.slane %v1372, 2
    %v1374 = vadd.f32 %v1372, %v1373
    %v1375 = vrot.slane %v1374, 1
    %v1376 = vadd.f32 %v1374, %v1375
    %v1377 = vrot.slane %v1346, 4
    %v1378 = vadd.f32 %v1346, %v1377
    %v1379 = vrot.slane %v1378, 2
    %v1380 = vadd.f32 %v1378, %v1379
    %v1381 = vrot.slane %v1380, 1
    %v1382 = vadd.f32 %v1380, %v1381
    %v1383 = vrot.slane %v1347, 4
    %v1384 = vadd.f32 %v1347, %v1383
    %v1385 = vrot.slane %v1384, 2
    %v1386 = vadd.f32 %v1384, %v1385
    %v1387 = vrot.slane %v1386, 1
    %v1388 = vadd.f32 %v1386, %v1387
    %v1389 = vrot.slane %v1348, 4
    %v1390 = vadd.f32 %v1348, %v1389
    %v1391 = vrot.slane %v1390, 2
    %v1392 = vadd.f32 %v1390, %v1391
    %v1393 = vrot.slane %v1392, 1
    %v1394 = vadd.f32 %v1392, %v1393
    %v1395 = vrot.slane %v1349, 4
    %v1396 = vadd.f32 %v1349, %v1395
    %v1397 = vrot.slane %v1396, 2
    %v1398 = vadd.f32 %v1396, %v1397
    %v1399 = vrot.slane %v1398, 1
    %v1400 = vadd.f32 %v1398, %v1399
    %v1401 = vrot.slane %v1350, 4
    %v1402 = vadd.f32 %v1350, %v1401
    %v1403 = vrot.slane %v1402, 2
    %v1404 = vadd.f32 %v1402, %v1403
    %v1405 = vrot.slane %v1404, 1
    %v1406 = vadd.f32 %v1404, %v1405
    %v1407 = vrot.slane %v1351, 4
    %v1408 = vadd.f32 %v1351, %v1407
    %v1409 = vrot.slane %v1408, 2
    %v1410 = vadd.f32 %v1408, %v1409
    %v1411 = vrot.slane %v1410, 1
    %v1412 = vadd.f32 %v1410, %v1411
    %v1413 = vrot.slane %v1352, 4
    %v1414 = vadd.f32 %v1352, %v1413
    %v1415 = vrot.slane %v1414, 2
    %v1416 = vadd.f32 %v1414, %v1415
    %v1417 = vrot.slane %v1416, 1
    %v1418 = vadd.f32 %v1416, %v1417
    %v1419 = vrot.slane %v1353, 4
    %v1420 = vadd.f32 %v1353, %v1419
    %v1421 = vrot.slane %v1420, 2
    %v1422 = vadd.f32 %v1420, %v1421
    %v1423 = vrot.slane %v1422, 1
    %v1424 = vadd.f32 %v1422, %v1423
    %v1425 = vrot.slane %v1354, 4
    %v1426 = vadd.f32 %v1354, %v1425
    %v1427 = vrot.slane %v1426, 2
    %v1428 = vadd.f32 %v1426, %v1427
    %v1429 = vrot.slane %v1428, 1
    %v1430 = vadd.f32 %v1428, %v1429
    %v1431 = vrot.slane %v1355, 4
    %v1432 = vadd.f32 %v1355, %v1431
    %v1433 = vrot.slane %v1432, 2
    %v1434 = vadd.f32 %v1432, %v1433
    %v1435 = vrot.slane %v1434, 1
    %v1436 = vadd.f32 %v1434, %v1435
    %v1437 = vrot.slane %v1356, 4
    %v1438 = vadd.f32 %v1356, %v1437
    %v1439 = vrot.slane %v1438, 2
    %v1440 = vadd.f32 %v1438, %v1439
    %v1441 = vrot.slane %v1440, 1
    %v1442 = vadd.f32 %v1440, %v1441
    %v1443 = vrot.slane %v1357, 4
    %v1444 = vadd.f32 %v1357, %v1443
    %v1445 = vrot.slane %v1444, 2
    %v1446 = vadd.f32 %v1444, %v1445
    %v1447 = vrot.slane %v1446, 1
    %v1448 = vadd.f32 %v1446, %v1447
    %v1449 = vrot.slane %v1358, 4
    %v1450 = vadd.f32 %v1358, %v1449
    %v1451 = vrot.slane %v1450, 2
    %v1452 = vadd.f32 %v1450, %v1451
    %v1453 = vrot.slane %v1452, 1
    %v1454 = vadd.f32 %v1452, %v1453
    %v1455 = vsub.f32 %v1245, %v1364
    %v1456 = vsub.f32 %v1246, %v1370
    %v1457 = vsub.f32 %v1247, %v1376
    %v1458 = vsub.f32 %v1248, %v1382
    %v1459 = vsub.f32 %v1249, %v1388
    %v1460 = vsub.f32 %v1250, %v1394
    %v1461 = vsub.f32 %v1251, %v1400
    %v1462 = vsub.f32 %v1252, %v1406
    %v1463 = vsub.f32 %v1253, %v1412
    %v1464 = vsub.f32 %v1254, %v1418
    %v1465 = vsub.f32 %v1255, %v1424
    %v1466 = vsub.f32 %v1256, %v1430
    %v1467 = vsub.f32 %v1257, %v1436
    %v1468 = vsub.f32 %v1258, %v1442
    %v1469 = vsub.f32 %v1259, %v1448
    %v1470 = vsub.f32 %v1260, %v1454
    %v1471 = vlaneseq
    %v1472 = vand.u32 %v1471, 127
    %v1473 = vadd.s32 %v1472, 128
    %v1474 = vadd.s32 %v1472, 256
    %v1475 = vadd.s32 %v1472, 384
    %v1476 = vadd.s32 %v1472, 512
    %v1477 = vadd.s32 %v1472, 640
    %v1478 = vadd.s32 %v1472, 768
    %v1479 = vadd.s32 %v1472, 896
    %vm1480 = vcmp.lt.s32.totalorder %v1472, 256
    %vm1481 = vcmp.lt.s32.totalorder %v1473, 256
    %vm1482 = vcmp.lt.s32.totalorder %v1474, 256
    %vm1483 = vcmp.lt.s32.totalorder %v1475, 256
    %vm1484 = vcmp.lt.s32.totalorder %v1476, 256
    %vm1485 = vcmp.lt.s32.totalorder %v1477, 256
    %vm1486 = vcmp.lt.s32.totalorder %v1478, 256
    %vm1487 = vcmp.lt.s32.totalorder %v1479, 256
    %vm1488 = vmxor %vm91, 1
    %vm1489 = vmxor %vm92, 1
    %v1490 = vsel %vm1480, 1, 0
    %v1491 = vsel %vm1481, 1, 0
    %v1492 = vsel %vm1482, 1, 0
    %v1493 = vsel %vm1483, 1, 0
    %v1494 = vsel %vm1484, 1, 0
    %v1495 = vsel %vm1485, 1, 0
    %v1496 = vsel %vm1486, 1, 0
    %v1497 = vsel %vm1487, 1, 0
    %vm1498 = vcmp.eq.s32.totalorder %v1490, 1
    %vm1499 = vcmp.eq.s32.totalorder %v1491, 1
    %vm1500 = vcmp.eq.s32.totalorder %v1492, 1
    %vm1501 = vcmp.eq.s32.totalorder %v1493, 1
    %vm1502 = vcmp.eq.s32.totalorder %v1494, 1
    %vm1503 = vcmp.eq.s32.totalorder %v1495, 1
    %vm1504 = vcmp.eq.s32.totalorder %v1496, 1
    %vm1505 = vcmp.eq.s32.totalorder %v1497, 1
    %v1506 = vsel %vm1488, 1, 0
    %v1507 = vsel %vm1489, 1, 0
    %v1508 = vlaneseq
    %v1509 = vshrl.u32 %v1508, 7
    %v1510 = vsub.s32 0, %v1509
    %v1511 = vrot.slane %v1506, %v1510
    %v1512 = vlaneseq
    %v1513 = vshrl.u32 %v1512, 7
    %v1514 = vsub.s32 1, %v1513
    %v1515 = vrot.slane %v1506, %v1514
    %v1516 = vlaneseq
    %v1517 = vshrl.u32 %v1516, 7
    %v1518 = vsub.s32 2, %v1517
    %v1519 = vrot.slane %v1506, %v1518
    %v1520 = vlaneseq
    %v1521 = vshrl.u32 %v1520, 7
    %v1522 = vsub.s32 3, %v1521
    %v1523 = vrot.slane %v1506, %v1522
    %v1524 = vlaneseq
    %v1525 = vshrl.u32 %v1524, 7
    %v1526 = vsub.s32 4, %v1525
    %v1527 = vrot.slane %v1506, %v1526
    %v1528 = vlaneseq
    %v1529 = vshrl.u32 %v1528, 7
    %v1530 = vsub.s32 5, %v1529
    %v1531 = vrot.slane %v1506, %v1530
    %v1532 = vlaneseq
    %v1533 = vshrl.u32 %v1532, 7
    %v1534 = vsub.s32 6, %v1533
    %v1535 = vrot.slane %v1506, %v1534
    %v1536 = vlaneseq
    %v1537 = vshrl.u32 %v1536, 7
    %v1538 = vsub.s32 7, %v1537
    %v1539 = vrot.slane %v1506, %v1538
    %v1540 = vlaneseq
    %v1541 = vshrl.u32 %v1540, 7
    %v1542 = vsub.s32 0, %v1541
    %v1543 = vrot.slane %v1507, %v1542
    %v1544 = vlaneseq
    %v1545 = vshrl.u32 %v1544, 7
    %v1546 = vsub.s32 1, %v1545
    %v1547 = vrot.slane %v1507, %v1546
    %v1548 = vlaneseq
    %v1549 = vshrl.u32 %v1548, 7
    %v1550 = vsub.s32 2, %v1549
    %v1551 = vrot.slane %v1507, %v1550
    %v1552 = vlaneseq
    %v1553 = vshrl.u32 %v1552, 7
    %v1554 = vsub.s32 3, %v1553
    %v1555 = vrot.slane %v1507, %v1554
    %v1556 = vlaneseq
    %v1557 = vshrl.u32 %v1556, 7
    %v1558 = vsub.s32 4, %v1557
    %v1559 = vrot.slane %v1507, %v1558
    %v1560 = vlaneseq
    %v1561 = vshrl.u32 %v1560, 7
    %v1562 = vsub.s32 5, %v1561
    %v1563 = vrot.slane %v1507, %v1562
    %v1564 = vlaneseq
    %v1565 = vshrl.u32 %v1564, 7
    %v1566 = vsub.s32 6, %v1565
    %v1567 = vrot.slane %v1507, %v1566
    %v1568 = vlaneseq
    %v1569 = vshrl.u32 %v1568, 7
    %v1570 = vsub.s32 7, %v1569
    %v1571 = vrot.slane %v1507, %v1570
    %vm1572 = vcmp.ne.s32.totalorder %v1511, 0
    %vm1573 = vcmp.ne.s32.totalorder %v1515, 0
    %vm1574 = vcmp.ne.s32.totalorder %v1519, 0
    %vm1575 = vcmp.ne.s32.totalorder %v1523, 0
    %vm1576 = vcmp.ne.s32.totalorder %v1527, 0
    %vm1577 = vcmp.ne.s32.totalorder %v1531, 0
    %vm1578 = vcmp.ne.s32.totalorder %v1535, 0
    %vm1579 = vcmp.ne.s32.totalorder %v1539, 0
    %vm1580 = vcmp.ne.s32.totalorder %v1543, 0
    %vm1581 = vcmp.ne.s32.totalorder %v1547, 0
    %vm1582 = vcmp.ne.s32.totalorder %v1551, 0
    %vm1583 = vcmp.ne.s32.totalorder %v1555, 0
    %vm1584 = vcmp.ne.s32.totalorder %v1559, 0
    %vm1585 = vcmp.ne.s32.totalorder %v1563, 0
    %vm1586 = vcmp.ne.s32.totalorder %v1567, 0
    %vm1587 = vcmp.ne.s32.totalorder %v1571, 0
    %vm1588 = vmand %vm1498, %vm1572
    %vm1589 = vmand %vm1499, %vm1573
    %vm1590 = vmand %vm1500, %vm1574
    %vm1591 = vmand %vm1501, %vm1575
    %vm1592 = vmand %vm1502, %vm1576
    %vm1593 = vmand %vm1503, %vm1577
    %vm1594 = vmand %vm1504, %vm1578
    %vm1595 = vmand %vm1505, %vm1579
    %vm1596 = vmand %vm1498, %vm1580
    %vm1597 = vmand %vm1499, %vm1581
    %vm1598 = vmand %vm1500, %vm1582
    %vm1599 = vmand %vm1501, %vm1583
    %vm1600 = vmand %vm1502, %vm1584
    %vm1601 = vmand %vm1503, %vm1585
    %vm1602 = vmand %vm1504, %vm1586
    %vm1603 = vmand %vm1505, %vm1587
    %v1604 = vsel %vm1588, %v1455, 0.0
    %v1605 = vsel %vm1589, %v1456, 0.0
    %v1606 = vsel %vm1590, %v1457, 0.0
    %v1607 = vsel %vm1591, %v1458, 0.0
    %v1608 = vsel %vm1592, %v1459, 0.0
    %v1609 = vsel %vm1593, %v1460, 0.0
    %v1610 = vsel %vm1594, %v1461, 0.0
    %v1611 = vsel %vm1595, %v1462, 0.0
    %v1612 = vsel %vm1596, %v1463, 0.0
    %v1613 = vsel %vm1597, %v1464, 0.0
    %v1614 = vsel %vm1598, %v1465, 0.0
    %v1615 = vsel %vm1599, %v1466, 0.0
    %v1616 = vsel %vm1600, %v1467, 0.0
    %v1617 = vsel %vm1601, %v1468, 0.0
    %v1618 = vsel %vm1602, %v1469, 0.0
    %v1619 = vsel %vm1603, %v1470, 0.0
    %v1622 = vrot.slane %v1605, 7
    %v1623 = vrot.slane %v1613, 7
    %v1628 = vrot.slane %v1606, 6
    %v1629 = vrot.slane %v1614, 6
    %v1634 = vrot.slane %v1607, 5
    %v1635 = vrot.slane %v1615, 5
    %v1640 = vrot.slane %v1608, 4
    %v1641 = vrot.slane %v1616, 4
    %v1646 = vrot.slane %v1609, 3
    %v1647 = vrot.slane %v1617, 3
    %v1652 = vrot.slane %v1610, 2
    %v1653 = vrot.slane %v1618, 2
    %v1658 = vrot.slane %v1611, 1
    %v1659 = vrot.slane %v1619, 1
    %v1662 = vsel %vm161, %v1604, %v1622
    %v1663 = vsel %vm161, %v1612, %v1623
    %v1664 = vsel %vm394, %v1662, %v1628
    %v1665 = vsel %vm394, %v1663, %v1629
    %vm1666 = vcmask 1042432
    %v1667 = vsel %vm1666, %v1664, %v1634
    %v1668 = vsel %vm1666, %v1665, %v1635
    %vm1669 = vcmask 1043456
    %v1670 = vsel %vm1669, %v1667, %v1640
    %v1671 = vsel %vm1669, %v1668, %v1641
    %vm1672 = vcmask 1044480
    %v1673 = vsel %vm1672, %v1670, %v1646
    %v1674 = vsel %vm1672, %v1671, %v1647
    %vm1675 = vcmask 1045504
    %v1676 = vsel %vm1675, %v1673, %v1652
    %v1677 = vsel %vm1675, %v1674, %v1653
    %vm1678 = vcmask 1046528
    %v1679 = vsel %vm1678, %v1676, %v1658
    %v1680 = vsel %vm1678, %v1677, %v1659
    %vm1683 = vcmp.gt.s32.totalorder %v1679, 0
    %v1684 = vsel %vm1683, %v1679, 0
    %vm1685 = vcmp.gt.s32.totalorder %v1680, 0
    %v1686 = vsel %vm1685, %v1680, 0
    %v1687 = vmul.u32 %v188, 3
    %v1688 = vmul.u32 %v215, 3
    %vm1689 = vcmp.lt.s32.totalorder %v1687, 256
    %v1690 = vsel %vm1689, %v1687, 256
    %vm1691 = vcmp.lt.s32.totalorder %v1688, 256
    %v1692 = vsel %vm1691, %v1688, 256
    %vm1693 = vcmp.ge.s32.totalorder %v1684, 536870912
    %vm1694 = vcmp.ge.s32.totalorder %v1686, 536870912
    %v1695 = vsel %vm1693, 1, 0
    %v1696 = vsel %vm1694, 1, 0
    %v1697 = vand.u32 %v1695, 65535
    %v1698 = vshrl.u32 %v1695, 16
    %v1699 = vcvt.s32.f32 %v1697
    %v1700 = vcvt.s32.f32 %v1698
    %1701 = vadd.xlane.f32.xlu0 %v1699
    %v1702 = vpop.xlane.xlu0 %1701
    %1703 = vadd.xlane.f32.xlu0 %v1700
    %v1704 = vpop.xlane.xlu0 %1703
    %v1705 = vcvt.f32.s32 %v1702
    %v1706 = vcvt.f32.s32 %v1704
    %v1707 = vshll.u32 %v1706, 16
    %v1708 = vadd.s32 %v1707, %v1705
    %v1709 = vand.u32 %v1696, 65535
    %v1710 = vshrl.u32 %v1696, 16
    %v1711 = vcvt.s32.f32 %v1709
    %v1712 = vcvt.s32.f32 %v1710
    %1713 = vadd.xlane.f32.xlu0 %v1711
    %v1714 = vpop.xlane.xlu0 %1713
    %1715 = vadd.xlane.f32.xlu0 %v1712
    %v1716 = vpop.xlane.xlu0 %1715
    %v1717 = vcvt.f32.s32 %v1714
    %v1718 = vcvt.f32.s32 %v1716
    %v1719 = vshll.u32 %v1718, 16
    %v1720 = vadd.s32 %v1719, %v1717
    %v1721 = vrot.slane %v1708, 4
    %v1722 = vadd.s32 %v1708, %v1721
    %v1723 = vrot.slane %v1722, 2
    %v1724 = vadd.s32 %v1722, %v1723
    %v1725 = vrot.slane %v1724, 1
    %v1726 = vadd.s32 %v1724, %v1725
    %v1727 = vrot.slane %v1720, 4
    %v1728 = vadd.s32 %v1720, %v1727
    %v1729 = vrot.slane %v1728, 2
    %v1730 = vadd.s32 %v1728, %v1729
    %v1731 = vrot.slane %v1730, 1
    %v1732 = vadd.s32 %v1730, %v1731
    %vm1733 = vcmp.ge.s32.totalorder %v1684, 1073741824
    %vm1734 = vcmp.ge.s32.totalorder %v1686, 1073741824
    %v1735 = vsel %vm1733, 1, 0
    %v1736 = vsel %vm1734, 1, 0
    %v1737 = vand.u32 %v1735, 65535
    %v1738 = vshrl.u32 %v1735, 16
    %v1739 = vcvt.s32.f32 %v1737
    %v1740 = vcvt.s32.f32 %v1738
    %1741 = vadd.xlane.f32.xlu0 %v1739
    %v1742 = vpop.xlane.xlu0 %1741
    %1743 = vadd.xlane.f32.xlu0 %v1740
    %v1744 = vpop.xlane.xlu0 %1743
    %v1745 = vcvt.f32.s32 %v1742
    %v1746 = vcvt.f32.s32 %v1744
    %v1747 = vshll.u32 %v1746, 16
    %v1748 = vadd.s32 %v1747, %v1745
    %v1749 = vand.u32 %v1736, 65535
    %v1750 = vshrl.u32 %v1736, 16
    %v1751 = vcvt.s32.f32 %v1749
    %v1752 = vcvt.s32.f32 %v1750
    %1753 = vadd.xlane.f32.xlu0 %v1751
    %v1754 = vpop.xlane.xlu0 %1753
    %1755 = vadd.xlane.f32.xlu0 %v1752
    %v1756 = vpop.xlane.xlu0 %1755
    %v1757 = vcvt.f32.s32 %v1754
    %v1758 = vcvt.f32.s32 %v1756
    %v1759 = vshll.u32 %v1758, 16
    %v1760 = vadd.s32 %v1759, %v1757
    %v1761 = vrot.slane %v1748, 4
    %v1762 = vadd.s32 %v1748, %v1761
    %v1763 = vrot.slane %v1762, 2
    %v1764 = vadd.s32 %v1762, %v1763
    %v1765 = vrot.slane %v1764, 1
    %v1766 = vadd.s32 %v1764, %v1765
    %v1767 = vrot.slane %v1760, 4
    %v1768 = vadd.s32 %v1760, %v1767
    %v1769 = vrot.slane %v1768, 2
    %v1770 = vadd.s32 %v1768, %v1769
    %v1771 = vrot.slane %v1770, 1
    %v1772 = vadd.s32 %v1770, %v1771
    %vm1773 = vcmp.ge.s32.totalorder %v1684, 1610612736
    %vm1774 = vcmp.ge.s32.totalorder %v1686, 1610612736
    %v1775 = vsel %vm1773, 1, 0
    %v1776 = vsel %vm1774, 1, 0
    %v1777 = vand.u32 %v1775, 65535
    %v1778 = vshrl.u32 %v1775, 16
    %v1779 = vcvt.s32.f32 %v1777
    %v1780 = vcvt.s32.f32 %v1778
    %1781 = vadd.xlane.f32.xlu0 %v1779
    %v1782 = vpop.xlane.xlu0 %1781
    %1783 = vadd.xlane.f32.xlu0 %v1780
    %v1784 = vpop.xlane.xlu0 %1783
    %v1785 = vcvt.f32.s32 %v1782
    %v1786 = vcvt.f32.s32 %v1784
    %v1787 = vshll.u32 %v1786, 16
    %v1788 = vadd.s32 %v1787, %v1785
    %v1789 = vand.u32 %v1776, 65535
    %v1790 = vshrl.u32 %v1776, 16
    %v1791 = vcvt.s32.f32 %v1789
    %v1792 = vcvt.s32.f32 %v1790
    %1793 = vadd.xlane.f32.xlu0 %v1791
    %v1794 = vpop.xlane.xlu0 %1793
    %1795 = vadd.xlane.f32.xlu0 %v1792
    %v1796 = vpop.xlane.xlu0 %1795
    %v1797 = vcvt.f32.s32 %v1794
    %v1798 = vcvt.f32.s32 %v1796
    %v1799 = vshll.u32 %v1798, 16
    %v1800 = vadd.s32 %v1799, %v1797
    %v1801 = vrot.slane %v1788, 4
    %v1802 = vadd.s32 %v1788, %v1801
    %v1803 = vrot.slane %v1802, 2
    %v1804 = vadd.s32 %v1802, %v1803
    %v1805 = vrot.slane %v1804, 1
    %v1806 = vadd.s32 %v1804, %v1805
    %v1807 = vrot.slane %v1800, 4
    %v1808 = vadd.s32 %v1800, %v1807
    %v1809 = vrot.slane %v1808, 2
    %v1810 = vadd.s32 %v1808, %v1809
    %v1811 = vrot.slane %v1810, 1
    %v1812 = vadd.s32 %v1810, %v1811
    %vm1813 = vcmp.ge.s32.totalorder %v1806, %v1690
    %vm1814 = vcmp.ge.s32.totalorder %v1812, %v1692
    %vm1815 = vcmp.ge.s32.totalorder %v1766, %v1690
    %vm1816 = vcmp.ge.s32.totalorder %v1772, %v1692
    %vm1817 = vcmp.ge.s32.totalorder %v1726, %v1690
    %vm1818 = vcmp.ge.s32.totalorder %v1732, %v1692
    %v1819 = vsel %vm1817, 536870912, 0
    %v1820 = vsel %vm1818, 536870912, 0
    %v1821 = vsel %vm1815, 1073741824, %v1819
    %v1822 = vsel %vm1816, 1073741824, %v1820
    %v1823 = vsel %vm1813, 1610612736, %v1821
    %v1824 = vsel %vm1814, 1610612736, %v1822
    %v1825 = vor.u32 %v1823, 134217728
    %v1826 = vor.u32 %v1824, 134217728
    %v1827 = vor.u32 %v1823, 268435456
    %v1828 = vor.u32 %v1824, 268435456
    %v1829 = vor.u32 %v1823, 402653184
    %v1830 = vor.u32 %v1824, 402653184
    %v1831 = vlaneseq
    %v1832 = vshrl.u32 %v1831, 7
    %v1833 = vsub.s32 0, %v1832
    %v1834 = vrot.slane %v1825, %v1833
    %v1835 = vlaneseq
    %v1836 = vshrl.u32 %v1835, 7
    %v1837 = vsub.s32 0, %v1836
    %v1838 = vrot.slane %v1826, %v1837
    %vm1839 = vcmp.ge.s32.totalorder %v1684, %v1834
    %vm1840 = vcmp.ge.s32.totalorder %v1686, %v1838
    %v1841 = vsel %vm1839, 1, 0
    %v1842 = vsel %vm1840, 1, 0
    %v1843 = vand.u32 %v1841, 65535
    %v1844 = vshrl.u32 %v1841, 16
    %v1845 = vcvt.s32.f32 %v1843
    %v1846 = vcvt.s32.f32 %v1844
    %1847 = vadd.xlane.f32.xlu0 %v1845
    %v1848 = vpop.xlane.xlu0 %1847
    %1849 = vadd.xlane.f32.xlu0 %v1846
    %v1850 = vpop.xlane.xlu0 %1849
    %v1851 = vcvt.f32.s32 %v1848
    %v1852 = vcvt.f32.s32 %v1850
    %v1853 = vshll.u32 %v1852, 16
    %v1854 = vadd.s32 %v1853, %v1851
    %v1855 = vand.u32 %v1842, 65535
    %v1856 = vshrl.u32 %v1842, 16
    %v1857 = vcvt.s32.f32 %v1855
    %v1858 = vcvt.s32.f32 %v1856
    %1859 = vadd.xlane.f32.xlu0 %v1857
    %v1860 = vpop.xlane.xlu0 %1859
    %1861 = vadd.xlane.f32.xlu0 %v1858
    %v1862 = vpop.xlane.xlu0 %1861
    %v1863 = vcvt.f32.s32 %v1860
    %v1864 = vcvt.f32.s32 %v1862
    %v1865 = vshll.u32 %v1864, 16
    %v1866 = vadd.s32 %v1865, %v1863
    %v1867 = vrot.slane %v1854, 4
    %v1868 = vadd.s32 %v1854, %v1867
    %v1869 = vrot.slane %v1868, 2
    %v1870 = vadd.s32 %v1868, %v1869
    %v1871 = vrot.slane %v1870, 1
    %v1872 = vadd.s32 %v1870, %v1871
    %v1873 = vrot.slane %v1866, 4
    %v1874 = vadd.s32 %v1866, %v1873
    %v1875 = vrot.slane %v1874, 2
    %v1876 = vadd.s32 %v1874, %v1875
    %v1877 = vrot.slane %v1876, 1
    %v1878 = vadd.s32 %v1876, %v1877
    %v1879 = vlaneseq
    %v1880 = vshrl.u32 %v1879, 7
    %v1881 = vsub.s32 0, %v1880
    %v1882 = vrot.slane %v1827, %v1881
    %v1883 = vlaneseq
    %v1884 = vshrl.u32 %v1883, 7
    %v1885 = vsub.s32 0, %v1884
    %v1886 = vrot.slane %v1828, %v1885
    %vm1887 = vcmp.ge.s32.totalorder %v1684, %v1882
    %vm1888 = vcmp.ge.s32.totalorder %v1686, %v1886
    %v1889 = vsel %vm1887, 1, 0
    %v1890 = vsel %vm1888, 1, 0
    %v1891 = vand.u32 %v1889, 65535
    %v1892 = vshrl.u32 %v1889, 16
    %v1893 = vcvt.s32.f32 %v1891
    %v1894 = vcvt.s32.f32 %v1892
    %1895 = vadd.xlane.f32.xlu0 %v1893
    %v1896 = vpop.xlane.xlu0 %1895
    %1897 = vadd.xlane.f32.xlu0 %v1894
    %v1898 = vpop.xlane.xlu0 %1897
    %v1899 = vcvt.f32.s32 %v1896
    %v1900 = vcvt.f32.s32 %v1898
    %v1901 = vshll.u32 %v1900, 16
    %v1902 = vadd.s32 %v1901, %v1899
    %v1903 = vand.u32 %v1890, 65535
    %v1904 = vshrl.u32 %v1890, 16
    %v1905 = vcvt.s32.f32 %v1903
    %v1906 = vcvt.s32.f32 %v1904
    %1907 = vadd.xlane.f32.xlu0 %v1905
    %v1908 = vpop.xlane.xlu0 %1907
    %1909 = vadd.xlane.f32.xlu0 %v1906
    %v1910 = vpop.xlane.xlu0 %1909
    %v1911 = vcvt.f32.s32 %v1908
    %v1912 = vcvt.f32.s32 %v1910
    %v1913 = vshll.u32 %v1912, 16
    %v1914 = vadd.s32 %v1913, %v1911
    %v1915 = vrot.slane %v1902, 4
    %v1916 = vadd.s32 %v1902, %v1915
    %v1917 = vrot.slane %v1916, 2
    %v1918 = vadd.s32 %v1916, %v1917
    %v1919 = vrot.slane %v1918, 1
    %v1920 = vadd.s32 %v1918, %v1919
    %v1921 = vrot.slane %v1914, 4
    %v1922 = vadd.s32 %v1914, %v1921
    %v1923 = vrot.slane %v1922, 2
    %v1924 = vadd.s32 %v1922, %v1923
    %v1925 = vrot.slane %v1924, 1
    %v1926 = vadd.s32 %v1924, %v1925
    %v1927 = vlaneseq
    %v1928 = vshrl.u32 %v1927, 7
    %v1929 = vsub.s32 0, %v1928
    %v1930 = vrot.slane %v1829, %v1929
    %v1931 = vlaneseq
    %v1932 = vshrl.u32 %v1931, 7
    %v1933 = vsub.s32 0, %v1932
    %v1934 = vrot.slane %v1830, %v1933
    %vm1935 = vcmp.ge.s32.totalorder %v1684, %v1930
    %vm1936 = vcmp.ge.s32.totalorder %v1686, %v1934
    %v1937 = vsel %vm1935, 1, 0
    %v1938 = vsel %vm1936, 1, 0
    %v1939 = vand.u32 %v1937, 65535
    %v1940 = vshrl.u32 %v1937, 16
    %v1941 = vcvt.s32.f32 %v1939
    %v1942 = vcvt.s32.f32 %v1940
    %1943 = vadd.xlane.f32.xlu0 %v1941
    %v1944 = vpop.xlane.xlu0 %1943
    %1945 = vadd.xlane.f32.xlu0 %v1942
    %v1946 = vpop.xlane.xlu0 %1945
    %v1947 = vcvt.f32.s32 %v1944
    %v1948 = vcvt.f32.s32 %v1946
    %v1949 = vshll.u32 %v1948, 16
    %v1950 = vadd.s32 %v1949, %v1947
    %v1951 = vand.u32 %v1938, 65535
    %v1952 = vshrl.u32 %v1938, 16
    %v1953 = vcvt.s32.f32 %v1951
    %v1954 = vcvt.s32.f32 %v1952
    %1955 = vadd.xlane.f32.xlu0 %v1953
    %v1956 = vpop.xlane.xlu0 %1955
    %1957 = vadd.xlane.f32.xlu0 %v1954
    %v1958 = vpop.xlane.xlu0 %1957
    %v1959 = vcvt.f32.s32 %v1956
    %v1960 = vcvt.f32.s32 %v1958
    %v1961 = vshll.u32 %v1960, 16
    %v1962 = vadd.s32 %v1961, %v1959
    %v1963 = vrot.slane %v1950, 4
    %v1964 = vadd.s32 %v1950, %v1963
    %v1965 = vrot.slane %v1964, 2
    %v1966 = vadd.s32 %v1964, %v1965
    %v1967 = vrot.slane %v1966, 1
    %v1968 = vadd.s32 %v1966, %v1967
    %v1969 = vrot.slane %v1962, 4
    %v1970 = vadd.s32 %v1962, %v1969
    %v1971 = vrot.slane %v1970, 2
    %v1972 = vadd.s32 %v1970, %v1971
    %v1973 = vrot.slane %v1972, 1
    %v1974 = vadd.s32 %v1972, %v1973
    %vm1975 = vcmp.ge.s32.totalorder %v1968, %v1690
    %vm1976 = vcmp.ge.s32.totalorder %v1974, %v1692
    %vm1977 = vcmp.ge.s32.totalorder %v1920, %v1690
    %vm1978 = vcmp.ge.s32.totalorder %v1926, %v1692
    %vm1979 = vcmp.ge.s32.totalorder %v1872, %v1690
    %vm1980 = vcmp.ge.s32.totalorder %v1878, %v1692
    %v1981 = vsel %vm1979, %v1825, %v1823
    %v1982 = vsel %vm1980, %v1826, %v1824
    %v1983 = vsel %vm1977, %v1827, %v1981
    %v1984 = vsel %vm1978, %v1828, %v1982
    %v1985 = vsel %vm1975, %v1829, %v1983
    %v1986 = vsel %vm1976, %v1830, %v1984
    %v1987 = vor.u32 %v1985, 33554432
    %v1988 = vor.u32 %v1986, 33554432
    %v1989 = vor.u32 %v1985, 67108864
    %v1990 = vor.u32 %v1986, 67108864
    %v1991 = vor.u32 %v1985, 100663296
    %v1992 = vor.u32 %v1986, 100663296
    %v1993 = vlaneseq
    %v1994 = vshrl.u32 %v1993, 7
    %v1995 = vsub.s32 0, %v1994
    %v1996 = vrot.slane %v1987, %v1995
    %v1997 = vlaneseq
    %v1998 = vshrl.u32 %v1997, 7
    %v1999 = vsub.s32 0, %v1998
    %v2000 = vrot.slane %v1988, %v1999
    %vm2001 = vcmp.ge.s32.totalorder %v1684, %v1996
    %vm2002 = vcmp.ge.s32.totalorder %v1686, %v2000
    %v2003 = vsel %vm2001, 1, 0
    %v2004 = vsel %vm2002, 1, 0
    %v2005 = vand.u32 %v2003, 65535
    %v2006 = vshrl.u32 %v2003, 16
    %v2007 = vcvt.s32.f32 %v2005
    %v2008 = vcvt.s32.f32 %v2006
    %2009 = vadd.xlane.f32.xlu0 %v2007
    %v2010 = vpop.xlane.xlu0 %2009
    %2011 = vadd.xlane.f32.xlu0 %v2008
    %v2012 = vpop.xlane.xlu0 %2011
    %v2013 = vcvt.f32.s32 %v2010
    %v2014 = vcvt.f32.s32 %v2012
    %v2015 = vshll.u32 %v2014, 16
    %v2016 = vadd.s32 %v2015, %v2013
    %v2017 = vand.u32 %v2004, 65535
    %v2018 = vshrl.u32 %v2004, 16
    %v2019 = vcvt.s32.f32 %v2017
    %v2020 = vcvt.s32.f32 %v2018
    %2021 = vadd.xlane.f32.xlu0 %v2019
    %v2022 = vpop.xlane.xlu0 %2021
    %2023 = vadd.xlane.f32.xlu0 %v2020
    %v2024 = vpop.xlane.xlu0 %2023
    %v2025 = vcvt.f32.s32 %v2022
    %v2026 = vcvt.f32.s32 %v2024
    %v2027 = vshll.u32 %v2026, 16
    %v2028 = vadd.s32 %v2027, %v2025
    %v2029 = vrot.slane %v2016, 4
    %v2030 = vadd.s32 %v2016, %v2029
    %v2031 = vrot.slane %v2030, 2
    %v2032 = vadd.s32 %v2030, %v2031
    %v2033 = vrot.slane %v2032, 1
    %v2034 = vadd.s32 %v2032, %v2033
    %v2035 = vrot.slane %v2028, 4
    %v2036 = vadd.s32 %v2028, %v2035
    %v2037 = vrot.slane %v2036, 2
    %v2038 = vadd.s32 %v2036, %v2037
    %v2039 = vrot.slane %v2038, 1
    %v2040 = vadd.s32 %v2038, %v2039
    %v2041 = vlaneseq
    %v2042 = vshrl.u32 %v2041, 7
    %v2043 = vsub.s32 0, %v2042
    %v2044 = vrot.slane %v1989, %v2043
    %v2045 = vlaneseq
    %v2046 = vshrl.u32 %v2045, 7
    %v2047 = vsub.s32 0, %v2046
    %v2048 = vrot.slane %v1990, %v2047
    %vm2049 = vcmp.ge.s32.totalorder %v1684, %v2044
    %vm2050 = vcmp.ge.s32.totalorder %v1686, %v2048
    %v2051 = vsel %vm2049, 1, 0
    %v2052 = vsel %vm2050, 1, 0
    %v2053 = vand.u32 %v2051, 65535
    %v2054 = vshrl.u32 %v2051, 16
    %v2055 = vcvt.s32.f32 %v2053
    %v2056 = vcvt.s32.f32 %v2054
    %2057 = vadd.xlane.f32.xlu0 %v2055
    %v2058 = vpop.xlane.xlu0 %2057
    %2059 = vadd.xlane.f32.xlu0 %v2056
    %v2060 = vpop.xlane.xlu0 %2059
    %v2061 = vcvt.f32.s32 %v2058
    %v2062 = vcvt.f32.s32 %v2060
    %v2063 = vshll.u32 %v2062, 16
    %v2064 = vadd.s32 %v2063, %v2061
    %v2065 = vand.u32 %v2052, 65535
    %v2066 = vshrl.u32 %v2052, 16
    %v2067 = vcvt.s32.f32 %v2065
    %v2068 = vcvt.s32.f32 %v2066
    %2069 = vadd.xlane.f32.xlu0 %v2067
    %v2070 = vpop.xlane.xlu0 %2069
    %2071 = vadd.xlane.f32.xlu0 %v2068
    %v2072 = vpop.xlane.xlu0 %2071
    %v2073 = vcvt.f32.s32 %v2070
    %v2074 = vcvt.f32.s32 %v2072
    %v2075 = vshll.u32 %v2074, 16
    %v2076 = vadd.s32 %v2075, %v2073
    %v2077 = vrot.slane %v2064, 4
    %v2078 = vadd.s32 %v2064, %v2077
    %v2079 = vrot.slane %v2078, 2
    %v2080 = vadd.s32 %v2078, %v2079
    %v2081 = vrot.slane %v2080, 1
    %v2082 = vadd.s32 %v2080, %v2081
    %v2083 = vrot.slane %v2076, 4
    %v2084 = vadd.s32 %v2076, %v2083
    %v2085 = vrot.slane %v2084, 2
    %v2086 = vadd.s32 %v2084, %v2085
    %v2087 = vrot.slane %v2086, 1
    %v2088 = vadd.s32 %v2086, %v2087
    %v2089 = vlaneseq
    %v2090 = vshrl.u32 %v2089, 7
    %v2091 = vsub.s32 0, %v2090
    %v2092 = vrot.slane %v1991, %v2091
    %v2093 = vlaneseq
    %v2094 = vshrl.u32 %v2093, 7
    %v2095 = vsub.s32 0, %v2094
    %v2096 = vrot.slane %v1992, %v2095
    %vm2097 = vcmp.ge.s32.totalorder %v1684, %v2092
    %vm2098 = vcmp.ge.s32.totalorder %v1686, %v2096
    %v2099 = vsel %vm2097, 1, 0
    %v2100 = vsel %vm2098, 1, 0
    %v2101 = vand.u32 %v2099, 65535
    %v2102 = vshrl.u32 %v2099, 16
    %v2103 = vcvt.s32.f32 %v2101
    %v2104 = vcvt.s32.f32 %v2102
    %2105 = vadd.xlane.f32.xlu0 %v2103
    %v2106 = vpop.xlane.xlu0 %2105
    %2107 = vadd.xlane.f32.xlu0 %v2104
    %v2108 = vpop.xlane.xlu0 %2107
    %v2109 = vcvt.f32.s32 %v2106
    %v2110 = vcvt.f32.s32 %v2108
    %v2111 = vshll.u32 %v2110, 16
    %v2112 = vadd.s32 %v2111, %v2109
    %v2113 = vand.u32 %v2100, 65535
    %v2114 = vshrl.u32 %v2100, 16
    %v2115 = vcvt.s32.f32 %v2113
    %v2116 = vcvt.s32.f32 %v2114
    %2117 = vadd.xlane.f32.xlu0 %v2115
    %v2118 = vpop.xlane.xlu0 %2117
    %2119 = vadd.xlane.f32.xlu0 %v2116
    %v2120 = vpop.xlane.xlu0 %2119
    %v2121 = vcvt.f32.s32 %v2118
    %v2122 = vcvt.f32.s32 %v2120
    %v2123 = vshll.u32 %v2122, 16
    %v2124 = vadd.s32 %v2123, %v2121
    %v2125 = vrot.slane %v2112, 4
    %v2126 = vadd.s32 %v2112, %v2125
    %v2127 = vrot.slane %v2126, 2
    %v2128 = vadd.s32 %v2126, %v2127
    %v2129 = vrot.slane %v2128, 1
    %v2130 = vadd.s32 %v2128, %v2129
    %v2131 = vrot.slane %v2124, 4
    %v2132 = vadd.s32 %v2124, %v2131
    %v2133 = vrot.slane %v2132, 2
    %v2134 = vadd.s32 %v2132, %v2133
    %v2135 = vrot.slane %v2134, 1
    %v2136 = vadd.s32 %v2134, %v2135
    %vm2137 = vcmp.ge.s32.totalorder %v2130, %v1690
    %vm2138 = vcmp.ge.s32.totalorder %v2136, %v1692
    %vm2139 = vcmp.ge.s32.totalorder %v2082, %v1690
    %vm2140 = vcmp.ge.s32.totalorder %v2088, %v1692
    %vm2141 = vcmp.ge.s32.totalorder %v2034, %v1690
    %vm2142 = vcmp.ge.s32.totalorder %v2040, %v1692
    %v2143 = vsel %vm2141, %v1987, %v1985
    %v2144 = vsel %vm2142, %v1988, %v1986
    %v2145 = vsel %vm2139, %v1989, %v2143
    %v2146 = vsel %vm2140, %v1990, %v2144
    %v2147 = vsel %vm2137, %v1991, %v2145
    %v2148 = vsel %vm2138, %v1992, %v2146
    %v2149 = vor.u32 %v2147, 8388608
    %v2150 = vor.u32 %v2148, 8388608
    %v2151 = vor.u32 %v2147, 16777216
    %v2152 = vor.u32 %v2148, 16777216
    %v2153 = vor.u32 %v2147, 25165824
    %v2154 = vor.u32 %v2148, 25165824
    %v2155 = vlaneseq
    %v2156 = vshrl.u32 %v2155, 7
    %v2157 = vsub.s32 0, %v2156
    %v2158 = vrot.slane %v2149, %v2157
    %v2159 = vlaneseq
    %v2160 = vshrl.u32 %v2159, 7
    %v2161 = vsub.s32 0, %v2160
    %v2162 = vrot.slane %v2150, %v2161
    %vm2163 = vcmp.ge.s32.totalorder %v1684, %v2158
    %vm2164 = vcmp.ge.s32.totalorder %v1686, %v2162
    %v2165 = vsel %vm2163, 1, 0
    %v2166 = vsel %vm2164, 1, 0
    %v2167 = vand.u32 %v2165, 65535
    %v2168 = vshrl.u32 %v2165, 16
    %v2169 = vcvt.s32.f32 %v2167
    %v2170 = vcvt.s32.f32 %v2168
    %2171 = vadd.xlane.f32.xlu0 %v2169
    %v2172 = vpop.xlane.xlu0 %2171
    %2173 = vadd.xlane.f32.xlu0 %v2170
    %v2174 = vpop.xlane.xlu0 %2173
    %v2175 = vcvt.f32.s32 %v2172
    %v2176 = vcvt.f32.s32 %v2174
    %v2177 = vshll.u32 %v2176, 16
    %v2178 = vadd.s32 %v2177, %v2175
    %v2179 = vand.u32 %v2166, 65535
    %v2180 = vshrl.u32 %v2166, 16
    %v2181 = vcvt.s32.f32 %v2179
    %v2182 = vcvt.s32.f32 %v2180
    %2183 = vadd.xlane.f32.xlu0 %v2181
    %v2184 = vpop.xlane.xlu0 %2183
    %2185 = vadd.xlane.f32.xlu0 %v2182
    %v2186 = vpop.xlane.xlu0 %2185
    %v2187 = vcvt.f32.s32 %v2184
    %v2188 = vcvt.f32.s32 %v2186
    %v2189 = vshll.u32 %v2188, 16
    %v2190 = vadd.s32 %v2189, %v2187
    %v2191 = vrot.slane %v2178, 4
    %v2192 = vadd.s32 %v2178, %v2191
    %v2193 = vrot.slane %v2192, 2
    %v2194 = vadd.s32 %v2192, %v2193
    %v2195 = vrot.slane %v2194, 1
    %v2196 = vadd.s32 %v2194, %v2195
    %v2197 = vrot.slane %v2190, 4
    %v2198 = vadd.s32 %v2190, %v2197
    %v2199 = vrot.slane %v2198, 2
    %v2200 = vadd.s32 %v2198, %v2199
    %v2201 = vrot.slane %v2200, 1
    %v2202 = vadd.s32 %v2200, %v2201
    %v2203 = vlaneseq
    %v2204 = vshrl.u32 %v2203, 7
    %v2205 = vsub.s32 0, %v2204
    %v2206 = vrot.slane %v2151, %v2205
    %v2207 = vlaneseq
    %v2208 = vshrl.u32 %v2207, 7
    %v2209 = vsub.s32 0, %v2208
    %v2210 = vrot.slane %v2152, %v2209
    %vm2211 = vcmp.ge.s32.totalorder %v1684, %v2206
    %vm2212 = vcmp.ge.s32.totalorder %v1686, %v2210
    %v2213 = vsel %vm2211, 1, 0
    %v2214 = vsel %vm2212, 1, 0
    %v2215 = vand.u32 %v2213, 65535
    %v2216 = vshrl.u32 %v2213, 16
    %v2217 = vcvt.s32.f32 %v2215
    %v2218 = vcvt.s32.f32 %v2216
    %2219 = vadd.xlane.f32.xlu0 %v2217
    %v2220 = vpop.xlane.xlu0 %2219
    %2221 = vadd.xlane.f32.xlu0 %v2218
    %v2222 = vpop.xlane.xlu0 %2221
    %v2223 = vcvt.f32.s32 %v2220
    %v2224 = vcvt.f32.s32 %v2222
    %v2225 = vshll.u32 %v2224, 16
    %v2226 = vadd.s32 %v2225, %v2223
    %v2227 = vand.u32 %v2214, 65535
    %v2228 = vshrl.u32 %v2214, 16
    %v2229 = vcvt.s32.f32 %v2227
    %v2230 = vcvt.s32.f32 %v2228
    %2231 = vadd.xlane.f32.xlu0 %v2229
    %v2232 = vpop.xlane.xlu0 %2231
    %2233 = vadd.xlane.f32.xlu0 %v2230
    %v2234 = vpop.xlane.xlu0 %2233
    %v2235 = vcvt.f32.s32 %v2232
    %v2236 = vcvt.f32.s32 %v2234
    %v2237 = vshll.u32 %v2236, 16
    %v2238 = vadd.s32 %v2237, %v2235
    %v2239 = vrot.slane %v2226, 4
    %v2240 = vadd.s32 %v2226, %v2239
    %v2241 = vrot.slane %v2240, 2
    %v2242 = vadd.s32 %v2240, %v2241
    %v2243 = vrot.slane %v2242, 1
    %v2244 = vadd.s32 %v2242, %v2243
    %v2245 = vrot.slane %v2238, 4
    %v2246 = vadd.s32 %v2238, %v2245
    %v2247 = vrot.slane %v2246, 2
    %v2248 = vadd.s32 %v2246, %v2247
    %v2249 = vrot.slane %v2248, 1
    %v2250 = vadd.s32 %v2248, %v2249
    %v2251 = vlaneseq
    %v2252 = vshrl.u32 %v2251, 7
    %v2253 = vsub.s32 0, %v2252
    %v2254 = vrot.slane %v2153, %v2253
    %v2255 = vlaneseq
    %v2256 = vshrl.u32 %v2255, 7
    %v2257 = vsub.s32 0, %v2256
    %v2258 = vrot.slane %v2154, %v2257
    %vm2259 = vcmp.ge.s32.totalorder %v1684, %v2254
    %vm2260 = vcmp.ge.s32.totalorder %v1686, %v2258
    %v2261 = vsel %vm2259, 1, 0
    %v2262 = vsel %vm2260, 1, 0
    %v2263 = vand.u32 %v2261, 65535
    %v2264 = vshrl.u32 %v2261, 16
    %v2265 = vcvt.s32.f32 %v2263
    %v2266 = vcvt.s32.f32 %v2264
    %2267 = vadd.xlane.f32.xlu0 %v2265
    %v2268 = vpop.xlane.xlu0 %2267
    %2269 = vadd.xlane.f32.xlu0 %v2266
    %v2270 = vpop.xlane.xlu0 %2269
    %v2271 = vcvt.f32.s32 %v2268
    %v2272 = vcvt.f32.s32 %v2270
    %v2273 = vshll.u32 %v2272, 16
    %v2274 = vadd.s32 %v2273, %v2271
    %v2275 = vand.u32 %v2262, 65535
    %v2276 = vshrl.u32 %v2262, 16
    %v2277 = vcvt.s32.f32 %v2275
    %v2278 = vcvt.s32.f32 %v2276
    %2279 = vadd.xlane.f32.xlu0 %v2277
    %v2280 = vpop.xlane.xlu0 %2279
    %2281 = vadd.xlane.f32.xlu0 %v2278
    %v2282 = vpop.xlane.xlu0 %2281
    %v2283 = vcvt.f32.s32 %v2280
    %v2284 = vcvt.f32.s32 %v2282
    %v2285 = vshll.u32 %v2284, 16
    %v2286 = vadd.s32 %v2285, %v2283
    %v2287 = vrot.slane %v2274, 4
    %v2288 = vadd.s32 %v2274, %v2287
    %v2289 = vrot.slane %v2288, 2
    %v2290 = vadd.s32 %v2288, %v2289
    %v2291 = vrot.slane %v2290, 1
    %v2292 = vadd.s32 %v2290, %v2291
    %v2293 = vrot.slane %v2286, 4
    %v2294 = vadd.s32 %v2286, %v2293
    %v2295 = vrot.slane %v2294, 2
    %v2296 = vadd.s32 %v2294, %v2295
    %v2297 = vrot.slane %v2296, 1
    %v2298 = vadd.s32 %v2296, %v2297
    %vm2299 = vcmp.ge.s32.totalorder %v2292, %v1690
    %vm2300 = vcmp.ge.s32.totalorder %v2298, %v1692
    %vm2301 = vcmp.ge.s32.totalorder %v2244, %v1690
    %vm2302 = vcmp.ge.s32.totalorder %v2250, %v1692
    %vm2303 = vcmp.ge.s32.totalorder %v2196, %v1690
    %vm2304 = vcmp.ge.s32.totalorder %v2202, %v1692
    %v2305 = vsel %vm2303, %v2149, %v2147
    %v2306 = vsel %vm2304, %v2150, %v2148
    %v2307 = vsel %vm2301, %v2151, %v2305
    %v2308 = vsel %vm2302, %v2152, %v2306
    %v2309 = vsel %vm2299, %v2153, %v2307
    %v2310 = vsel %vm2300, %v2154, %v2308
    %v2311 = vor.u32 %v2309, 2097152
    %v2312 = vor.u32 %v2310, 2097152
    %v2313 = vor.u32 %v2309, 4194304
    %v2314 = vor.u32 %v2310, 4194304
    %v2315 = vor.u32 %v2309, 6291456
    %v2316 = vor.u32 %v2310, 6291456
    %v2317 = vlaneseq
    %v2318 = vshrl.u32 %v2317, 7
    %v2319 = vsub.s32 0, %v2318
    %v2320 = vrot.slane %v2311, %v2319
    %v2321 = vlaneseq
    %v2322 = vshrl.u32 %v2321, 7
    %v2323 = vsub.s32 0, %v2322
    %v2324 = vrot.slane %v2312, %v2323
    %vm2325 = vcmp.ge.s32.totalorder %v1684, %v2320
    %vm2326 = vcmp.ge.s32.totalorder %v1686, %v2324
    %v2327 = vsel %vm2325, 1, 0
    %v2328 = vsel %vm2326, 1, 0
    %v2329 = vand.u32 %v2327, 65535
    %v2330 = vshrl.u32 %v2327, 16
    %v2331 = vcvt.s32.f32 %v2329
    %v2332 = vcvt.s32.f32 %v2330
    %2333 = vadd.xlane.f32.xlu0 %v2331
    %v2334 = vpop.xlane.xlu0 %2333
    %2335 = vadd.xlane.f32.xlu0 %v2332
    %v2336 = vpop.xlane.xlu0 %2335
    %v2337 = vcvt.f32.s32 %v2334
    %v2338 = vcvt.f32.s32 %v2336
    %v2339 = vshll.u32 %v2338, 16
    %v2340 = vadd.s32 %v2339, %v2337
    %v2341 = vand.u32 %v2328, 65535
    %v2342 = vshrl.u32 %v2328, 16
    %v2343 = vcvt.s32.f32 %v2341
    %v2344 = vcvt.s32.f32 %v2342
    %2345 = vadd.xlane.f32.xlu0 %v2343
    %v2346 = vpop.xlane.xlu0 %2345
    %2347 = vadd.xlane.f32.xlu0 %v2344
    %v2348 = vpop.xlane.xlu0 %2347
    %v2349 = vcvt.f32.s32 %v2346
    %v2350 = vcvt.f32.s32 %v2348
    %v2351 = vshll.u32 %v2350, 16
    %v2352 = vadd.s32 %v2351, %v2349
    %v2353 = vrot.slane %v2340, 4
    %v2354 = vadd.s32 %v2340, %v2353
    %v2355 = vrot.slane %v2354, 2
    %v2356 = vadd.s32 %v2354, %v2355
    %v2357 = vrot.slane %v2356, 1
    %v2358 = vadd.s32 %v2356, %v2357
    %v2359 = vrot.slane %v2352, 4
    %v2360 = vadd.s32 %v2352, %v2359
    %v2361 = vrot.slane %v2360, 2
    %v2362 = vadd.s32 %v2360, %v2361
    %v2363 = vrot.slane %v2362, 1
    %v2364 = vadd.s32 %v2362, %v2363
    %v2365 = vlaneseq
    %v2366 = vshrl.u32 %v2365, 7
    %v2367 = vsub.s32 0, %v2366
    %v2368 = vrot.slane %v2313, %v2367
    %v2369 = vlaneseq
    %v2370 = vshrl.u32 %v2369, 7
    %v2371 = vsub.s32 0, %v2370
    %v2372 = vrot.slane %v2314, %v2371
    %vm2373 = vcmp.ge.s32.totalorder %v1684, %v2368
    %vm2374 = vcmp.ge.s32.totalorder %v1686, %v2372
    %v2375 = vsel %vm2373, 1, 0
    %v2376 = vsel %vm2374, 1, 0
    %v2377 = vand.u32 %v2375, 65535
    %v2378 = vshrl.u32 %v2375, 16
    %v2379 = vcvt.s32.f32 %v2377
    %v2380 = vcvt.s32.f32 %v2378
    %2381 = vadd.xlane.f32.xlu0 %v2379
    %v2382 = vpop.xlane.xlu0 %2381
    %2383 = vadd.xlane.f32.xlu0 %v2380
    %v2384 = vpop.xlane.xlu0 %2383
    %v2385 = vcvt.f32.s32 %v2382
    %v2386 = vcvt.f32.s32 %v2384
    %v2387 = vshll.u32 %v2386, 16
    %v2388 = vadd.s32 %v2387, %v2385
    %v2389 = vand.u32 %v2376, 65535
    %v2390 = vshrl.u32 %v2376, 16
    %v2391 = vcvt.s32.f32 %v2389
    %v2392 = vcvt.s32.f32 %v2390
    %2393 = vadd.xlane.f32.xlu0 %v2391
    %v2394 = vpop.xlane.xlu0 %2393
    %2395 = vadd.xlane.f32.xlu0 %v2392
    %v2396 = vpop.xlane.xlu0 %2395
    %v2397 = vcvt.f32.s32 %v2394
    %v2398 = vcvt.f32.s32 %v2396
    %v2399 = vshll.u32 %v2398, 16
    %v2400 = vadd.s32 %v2399, %v2397
    %v2401 = vrot.slane %v2388, 4
    %v2402 = vadd.s32 %v2388, %v2401
    %v2403 = vrot.slane %v2402, 2
    %v2404 = vadd.s32 %v2402, %v2403
    %v2405 = vrot.slane %v2404, 1
    %v2406 = vadd.s32 %v2404, %v2405
    %v2407 = vrot.slane %v2400, 4
    %v2408 = vadd.s32 %v2400, %v2407
    %v2409 = vrot.slane %v2408, 2
    %v2410 = vadd.s32 %v2408, %v2409
    %v2411 = vrot.slane %v2410, 1
    %v2412 = vadd.s32 %v2410, %v2411
    %v2413 = vlaneseq
    %v2414 = vshrl.u32 %v2413, 7
    %v2415 = vsub.s32 0, %v2414
    %v2416 = vrot.slane %v2315, %v2415
    %v2417 = vlaneseq
    %v2418 = vshrl.u32 %v2417, 7
    %v2419 = vsub.s32 0, %v2418
    %v2420 = vrot.slane %v2316, %v2419
    %vm2421 = vcmp.ge.s32.totalorder %v1684, %v2416
    %vm2422 = vcmp.ge.s32.totalorder %v1686, %v2420
    %v2423 = vsel %vm2421, 1, 0
    %v2424 = vsel %vm2422, 1, 0
    %v2425 = vand.u32 %v2423, 65535
    %v2426 = vshrl.u32 %v2423, 16
    %v2427 = vcvt.s32.f32 %v2425
    %v2428 = vcvt.s32.f32 %v2426
    %2429 = vadd.xlane.f32.xlu0 %v2427
    %v2430 = vpop.xlane.xlu0 %2429
    %2431 = vadd.xlane.f32.xlu0 %v2428
    %v2432 = vpop.xlane.xlu0 %2431
    %v2433 = vcvt.f32.s32 %v2430
    %v2434 = vcvt.f32.s32 %v2432
    %v2435 = vshll.u32 %v2434, 16
    %v2436 = vadd.s32 %v2435, %v2433
    %v2437 = vand.u32 %v2424, 65535
    %v2438 = vshrl.u32 %v2424, 16
    %v2439 = vcvt.s32.f32 %v2437
    %v2440 = vcvt.s32.f32 %v2438
    %2441 = vadd.xlane.f32.xlu0 %v2439
    %v2442 = vpop.xlane.xlu0 %2441
    %2443 = vadd.xlane.f32.xlu0 %v2440
    %v2444 = vpop.xlane.xlu0 %2443
    %v2445 = vcvt.f32.s32 %v2442
    %v2446 = vcvt.f32.s32 %v2444
    %v2447 = vshll.u32 %v2446, 16
    %v2448 = vadd.s32 %v2447, %v2445
    %v2449 = vrot.slane %v2436, 4
    %v2450 = vadd.s32 %v2436, %v2449
    %v2451 = vrot.slane %v2450, 2
    %v2452 = vadd.s32 %v2450, %v2451
    %v2453 = vrot.slane %v2452, 1
    %v2454 = vadd.s32 %v2452, %v2453
    %v2455 = vrot.slane %v2448, 4
    %v2456 = vadd.s32 %v2448, %v2455
    %v2457 = vrot.slane %v2456, 2
    %v2458 = vadd.s32 %v2456, %v2457
    %v2459 = vrot.slane %v2458, 1
    %v2460 = vadd.s32 %v2458, %v2459
    %vm2461 = vcmp.ge.s32.totalorder %v2454, %v1690
    %vm2462 = vcmp.ge.s32.totalorder %v2460, %v1692
    %vm2463 = vcmp.ge.s32.totalorder %v2406, %v1690
    %vm2464 = vcmp.ge.s32.totalorder %v2412, %v1692
    %vm2465 = vcmp.ge.s32.totalorder %v2358, %v1690
    %vm2466 = vcmp.ge.s32.totalorder %v2364, %v1692
    %v2467 = vsel %vm2465, %v2311, %v2309
    %v2468 = vsel %vm2466, %v2312, %v2310
    %v2469 = vsel %vm2463, %v2313, %v2467
    %v2470 = vsel %vm2464, %v2314, %v2468
    %v2471 = vsel %vm2461, %v2315, %v2469
    %v2472 = vsel %vm2462, %v2316, %v2470
    %v2473 = vor.u32 %v2471, 524288
    %v2474 = vor.u32 %v2472, 524288
    %v2475 = vor.u32 %v2471, 1048576
    %v2476 = vor.u32 %v2472, 1048576
    %v2477 = vor.u32 %v2471, 1572864
    %v2478 = vor.u32 %v2472, 1572864
    %v2479 = vlaneseq
    %v2480 = vshrl.u32 %v2479, 7
    %v2481 = vsub.s32 0, %v2480
    %v2482 = vrot.slane %v2473, %v2481
    %v2483 = vlaneseq
    %v2484 = vshrl.u32 %v2483, 7
    %v2485 = vsub.s32 0, %v2484
    %v2486 = vrot.slane %v2474, %v2485
    %vm2487 = vcmp.ge.s32.totalorder %v1684, %v2482
    %vm2488 = vcmp.ge.s32.totalorder %v1686, %v2486
    %v2489 = vsel %vm2487, 1, 0
    %v2490 = vsel %vm2488, 1, 0
    %v2491 = vand.u32 %v2489, 65535
    %v2492 = vshrl.u32 %v2489, 16
    %v2493 = vcvt.s32.f32 %v2491
    %v2494 = vcvt.s32.f32 %v2492
    %2495 = vadd.xlane.f32.xlu0 %v2493
    %v2496 = vpop.xlane.xlu0 %2495
    %2497 = vadd.xlane.f32.xlu0 %v2494
    %v2498 = vpop.xlane.xlu0 %2497
    %v2499 = vcvt.f32.s32 %v2496
    %v2500 = vcvt.f32.s32 %v2498
    %v2501 = vshll.u32 %v2500, 16
    %v2502 = vadd.s32 %v2501, %v2499
    %v2503 = vand.u32 %v2490, 65535
    %v2504 = vshrl.u32 %v2490, 16
    %v2505 = vcvt.s32.f32 %v2503
    %v2506 = vcvt.s32.f32 %v2504
    %2507 = vadd.xlane.f32.xlu0 %v2505
    %v2508 = vpop.xlane.xlu0 %2507
    %2509 = vadd.xlane.f32.xlu0 %v2506
    %v2510 = vpop.xlane.xlu0 %2509
    %v2511 = vcvt.f32.s32 %v2508
    %v2512 = vcvt.f32.s32 %v2510
    %v2513 = vshll.u32 %v2512, 16
    %v2514 = vadd.s32 %v2513, %v2511
    %v2515 = vrot.slane %v2502, 4
    %v2516 = vadd.s32 %v2502, %v2515
    %v2517 = vrot.slane %v2516, 2
    %v2518 = vadd.s32 %v2516, %v2517
    %v2519 = vrot.slane %v2518, 1
    %v2520 = vadd.s32 %v2518, %v2519
    %v2521 = vrot.slane %v2514, 4
    %v2522 = vadd.s32 %v2514, %v2521
    %v2523 = vrot.slane %v2522, 2
    %v2524 = vadd.s32 %v2522, %v2523
    %v2525 = vrot.slane %v2524, 1
    %v2526 = vadd.s32 %v2524, %v2525
    %v2527 = vlaneseq
    %v2528 = vshrl.u32 %v2527, 7
    %v2529 = vsub.s32 0, %v2528
    %v2530 = vrot.slane %v2475, %v2529
    %v2531 = vlaneseq
    %v2532 = vshrl.u32 %v2531, 7
    %v2533 = vsub.s32 0, %v2532
    %v2534 = vrot.slane %v2476, %v2533
    %vm2535 = vcmp.ge.s32.totalorder %v1684, %v2530
    %vm2536 = vcmp.ge.s32.totalorder %v1686, %v2534
    %v2537 = vsel %vm2535, 1, 0
    %v2538 = vsel %vm2536, 1, 0
    %v2539 = vand.u32 %v2537, 65535
    %v2540 = vshrl.u32 %v2537, 16
    %v2541 = vcvt.s32.f32 %v2539
    %v2542 = vcvt.s32.f32 %v2540
    %2543 = vadd.xlane.f32.xlu0 %v2541
    %v2544 = vpop.xlane.xlu0 %2543
    %2545 = vadd.xlane.f32.xlu0 %v2542
    %v2546 = vpop.xlane.xlu0 %2545
    %v2547 = vcvt.f32.s32 %v2544
    %v2548 = vcvt.f32.s32 %v2546
    %v2549 = vshll.u32 %v2548, 16
    %v2550 = vadd.s32 %v2549, %v2547
    %v2551 = vand.u32 %v2538, 65535
    %v2552 = vshrl.u32 %v2538, 16
    %v2553 = vcvt.s32.f32 %v2551
    %v2554 = vcvt.s32.f32 %v2552
    %2555 = vadd.xlane.f32.xlu0 %v2553
    %v2556 = vpop.xlane.xlu0 %2555
    %2557 = vadd.xlane.f32.xlu0 %v2554
    %v2558 = vpop.xlane.xlu0 %2557
    %v2559 = vcvt.f32.s32 %v2556
    %v2560 = vcvt.f32.s32 %v2558
    %v2561 = vshll.u32 %v2560, 16
    %v2562 = vadd.s32 %v2561, %v2559
    %v2563 = vrot.slane %v2550, 4
    %v2564 = vadd.s32 %v2550, %v2563
    %v2565 = vrot.slane %v2564, 2
    %v2566 = vadd.s32 %v2564, %v2565
    %v2567 = vrot.slane %v2566, 1
    %v2568 = vadd.s32 %v2566, %v2567
    %v2569 = vrot.slane %v2562, 4
    %v2570 = vadd.s32 %v2562, %v2569
    %v2571 = vrot.slane %v2570, 2
    %v2572 = vadd.s32 %v2570, %v2571
    %v2573 = vrot.slane %v2572, 1
    %v2574 = vadd.s32 %v2572, %v2573
    %v2575 = vlaneseq
    %v2576 = vshrl.u32 %v2575, 7
    %v2577 = vsub.s32 0, %v2576
    %v2578 = vrot.slane %v2477, %v2577
    %v2579 = vlaneseq
    %v2580 = vshrl.u32 %v2579, 7
    %v2581 = vsub.s32 0, %v2580
    %v2582 = vrot.slane %v2478, %v2581
    %vm2583 = vcmp.ge.s32.totalorder %v1684, %v2578
    %vm2584 = vcmp.ge.s32.totalorder %v1686, %v2582
    %v2585 = vsel %vm2583, 1, 0
    %v2586 = vsel %vm2584, 1, 0
    %v2587 = vand.u32 %v2585, 65535
    %v2588 = vshrl.u32 %v2585, 16
    %v2589 = vcvt.s32.f32 %v2587
    %v2590 = vcvt.s32.f32 %v2588
    %2591 = vadd.xlane.f32.xlu0 %v2589
    %v2592 = vpop.xlane.xlu0 %2591
    %2593 = vadd.xlane.f32.xlu0 %v2590
    %v2594 = vpop.xlane.xlu0 %2593
    %v2595 = vcvt.f32.s32 %v2592
    %v2596 = vcvt.f32.s32 %v2594
    %v2597 = vshll.u32 %v2596, 16
    %v2598 = vadd.s32 %v2597, %v2595
    %v2599 = vand.u32 %v2586, 65535
    %v2600 = vshrl.u32 %v2586, 16
    %v2601 = vcvt.s32.f32 %v2599
    %v2602 = vcvt.s32.f32 %v2600
    %2603 = vadd.xlane.f32.xlu0 %v2601
    %v2604 = vpop.xlane.xlu0 %2603
    %2605 = vadd.xlane.f32.xlu0 %v2602
    %v2606 = vpop.xlane.xlu0 %2605
    %v2607 = vcvt.f32.s32 %v2604
    %v2608 = vcvt.f32.s32 %v2606
    %v2609 = vshll.u32 %v2608, 16
    %v2610 = vadd.s32 %v2609, %v2607
    %v2611 = vrot.slane %v2598, 4
    %v2612 = vadd.s32 %v2598, %v2611
    %v2613 = vrot.slane %v2612, 2
    %v2614 = vadd.s32 %v2612, %v2613
    %v2615 = vrot.slane %v2614, 1
    %v2616 = vadd.s32 %v2614, %v2615
    %v2617 = vrot.slane %v2610, 4
    %v2618 = vadd.s32 %v2610, %v2617
    %v2619 = vrot.slane %v2618, 2
    %v2620 = vadd.s32 %v2618, %v2619
    %v2621 = vrot.slane %v2620, 1
    %v2622 = vadd.s32 %v2620, %v2621
    %vm2623 = vcmp.ge.s32.totalorder %v2616, %v1690
    %vm2624 = vcmp.ge.s32.totalorder %v2622, %v1692
    %vm2625 = vcmp.ge.s32.totalorder %v2568, %v1690
    %vm2626 = vcmp.ge.s32.totalorder %v2574, %v1692
    %vm2627 = vcmp.ge.s32.totalorder %v2520, %v1690
    %vm2628 = vcmp.ge.s32.totalorder %v2526, %v1692
    %v2629 = vsel %vm2627, %v2473, %v2471
    %v2630 = vsel %vm2628, %v2474, %v2472
    %v2631 = vsel %vm2625, %v2475, %v2629
    %v2632 = vsel %vm2626, %v2476, %v2630
    %v2633 = vsel %vm2623, %v2477, %v2631
    %v2634 = vsel %vm2624, %v2478, %v2632
    %v2635 = vor.u32 %v2633, 131072
    %v2636 = vor.u32 %v2634, 131072
    %v2637 = vor.u32 %v2633, 262144
    %v2638 = vor.u32 %v2634, 262144
    %v2639 = vor.u32 %v2633, 393216
    %v2640 = vor.u32 %v2634, 393216
    %v2641 = vlaneseq
    %v2642 = vshrl.u32 %v2641, 7
    %v2643 = vsub.s32 0, %v2642
    %v2644 = vrot.slane %v2635, %v2643
    %v2645 = vlaneseq
    %v2646 = vshrl.u32 %v2645, 7
    %v2647 = vsub.s32 0, %v2646
    %v2648 = vrot.slane %v2636, %v2647
    %vm2649 = vcmp.ge.s32.totalorder %v1684, %v2644
    %vm2650 = vcmp.ge.s32.totalorder %v1686, %v2648
    %v2651 = vsel %vm2649, 1, 0
    %v2652 = vsel %vm2650, 1, 0
    %v2653 = vand.u32 %v2651, 65535
    %v2654 = vshrl.u32 %v2651, 16
    %v2655 = vcvt.s32.f32 %v2653
    %v2656 = vcvt.s32.f32 %v2654
    %2657 = vadd.xlane.f32.xlu0 %v2655
    %v2658 = vpop.xlane.xlu0 %2657
    %2659 = vadd.xlane.f32.xlu0 %v2656
    %v2660 = vpop.xlane.xlu0 %2659
    %v2661 = vcvt.f32.s32 %v2658
    %v2662 = vcvt.f32.s32 %v2660
    %v2663 = vshll.u32 %v2662, 16
    %v2664 = vadd.s32 %v2663, %v2661
    %v2665 = vand.u32 %v2652, 65535
    %v2666 = vshrl.u32 %v2652, 16
    %v2667 = vcvt.s32.f32 %v2665
    %v2668 = vcvt.s32.f32 %v2666
    %2669 = vadd.xlane.f32.xlu0 %v2667
    %v2670 = vpop.xlane.xlu0 %2669
    %2671 = vadd.xlane.f32.xlu0 %v2668
    %v2672 = vpop.xlane.xlu0 %2671
    %v2673 = vcvt.f32.s32 %v2670
    %v2674 = vcvt.f32.s32 %v2672
    %v2675 = vshll.u32 %v2674, 16
    %v2676 = vadd.s32 %v2675, %v2673
    %v2677 = vrot.slane %v2664, 4
    %v2678 = vadd.s32 %v2664, %v2677
    %v2679 = vrot.slane %v2678, 2
    %v2680 = vadd.s32 %v2678, %v2679
    %v2681 = vrot.slane %v2680, 1
    %v2682 = vadd.s32 %v2680, %v2681
    %v2683 = vrot.slane %v2676, 4
    %v2684 = vadd.s32 %v2676, %v2683
    %v2685 = vrot.slane %v2684, 2
    %v2686 = vadd.s32 %v2684, %v2685
    %v2687 = vrot.slane %v2686, 1
    %v2688 = vadd.s32 %v2686, %v2687
    %v2689 = vlaneseq
    %v2690 = vshrl.u32 %v2689, 7
    %v2691 = vsub.s32 0, %v2690
    %v2692 = vrot.slane %v2637, %v2691
    %v2693 = vlaneseq
    %v2694 = vshrl.u32 %v2693, 7
    %v2695 = vsub.s32 0, %v2694
    %v2696 = vrot.slane %v2638, %v2695
    %vm2697 = vcmp.ge.s32.totalorder %v1684, %v2692
    %vm2698 = vcmp.ge.s32.totalorder %v1686, %v2696
    %v2699 = vsel %vm2697, 1, 0
    %v2700 = vsel %vm2698, 1, 0
    %v2701 = vand.u32 %v2699, 65535
    %v2702 = vshrl.u32 %v2699, 16
    %v2703 = vcvt.s32.f32 %v2701
    %v2704 = vcvt.s32.f32 %v2702
    %2705 = vadd.xlane.f32.xlu0 %v2703
    %v2706 = vpop.xlane.xlu0 %2705
    %2707 = vadd.xlane.f32.xlu0 %v2704
    %v2708 = vpop.xlane.xlu0 %2707
    %v2709 = vcvt.f32.s32 %v2706
    %v2710 = vcvt.f32.s32 %v2708
    %v2711 = vshll.u32 %v2710, 16
    %v2712 = vadd.s32 %v2711, %v2709
    %v2713 = vand.u32 %v2700, 65535
    %v2714 = vshrl.u32 %v2700, 16
    %v2715 = vcvt.s32.f32 %v2713
    %v2716 = vcvt.s32.f32 %v2714
    %2717 = vadd.xlane.f32.xlu0 %v2715
    %v2718 = vpop.xlane.xlu0 %2717
    %2719 = vadd.xlane.f32.xlu0 %v2716
    %v2720 = vpop.xlane.xlu0 %2719
    %v2721 = vcvt.f32.s32 %v2718
    %v2722 = vcvt.f32.s32 %v2720
    %v2723 = vshll.u32 %v2722, 16
    %v2724 = vadd.s32 %v2723, %v2721
    %v2725 = vrot.slane %v2712, 4
    %v2726 = vadd.s32 %v2712, %v2725
    %v2727 = vrot.slane %v2726, 2
    %v2728 = vadd.s32 %v2726, %v2727
    %v2729 = vrot.slane %v2728, 1
    %v2730 = vadd.s32 %v2728, %v2729
    %v2731 = vrot.slane %v2724, 4
    %v2732 = vadd.s32 %v2724, %v2731
    %v2733 = vrot.slane %v2732, 2
    %v2734 = vadd.s32 %v2732, %v2733
    %v2735 = vrot.slane %v2734, 1
    %v2736 = vadd.s32 %v2734, %v2735
    %v2737 = vlaneseq
    %v2738 = vshrl.u32 %v2737, 7
    %v2739 = vsub.s32 0, %v2738
    %v2740 = vrot.slane %v2639, %v2739
    %v2741 = vlaneseq
    %v2742 = vshrl.u32 %v2741, 7
    %v2743 = vsub.s32 0, %v2742
    %v2744 = vrot.slane %v2640, %v2743
    %vm2745 = vcmp.ge.s32.totalorder %v1684, %v2740
    %vm2746 = vcmp.ge.s32.totalorder %v1686, %v2744
    %v2747 = vsel %vm2745, 1, 0
    %v2748 = vsel %vm2746, 1, 0
    %v2749 = vand.u32 %v2747, 65535
    %v2750 = vshrl.u32 %v2747, 16
    %v2751 = vcvt.s32.f32 %v2749
    %v2752 = vcvt.s32.f32 %v2750
    %2753 = vadd.xlane.f32.xlu0 %v2751
    %v2754 = vpop.xlane.xlu0 %2753
    %2755 = vadd.xlane.f32.xlu0 %v2752
    %v2756 = vpop.xlane.xlu0 %2755
    %v2757 = vcvt.f32.s32 %v2754
    %v2758 = vcvt.f32.s32 %v2756
    %v2759 = vshll.u32 %v2758, 16
    %v2760 = vadd.s32 %v2759, %v2757
    %v2761 = vand.u32 %v2748, 65535
    %v2762 = vshrl.u32 %v2748, 16
    %v2763 = vcvt.s32.f32 %v2761
    %v2764 = vcvt.s32.f32 %v2762
    %2765 = vadd.xlane.f32.xlu0 %v2763
    %v2766 = vpop.xlane.xlu0 %2765
    %2767 = vadd.xlane.f32.xlu0 %v2764
    %v2768 = vpop.xlane.xlu0 %2767
    %v2769 = vcvt.f32.s32 %v2766
    %v2770 = vcvt.f32.s32 %v2768
    %v2771 = vshll.u32 %v2770, 16
    %v2772 = vadd.s32 %v2771, %v2769
    %v2773 = vrot.slane %v2760, 4
    %v2774 = vadd.s32 %v2760, %v2773
    %v2775 = vrot.slane %v2774, 2
    %v2776 = vadd.s32 %v2774, %v2775
    %v2777 = vrot.slane %v2776, 1
    %v2778 = vadd.s32 %v2776, %v2777
    %v2779 = vrot.slane %v2772, 4
    %v2780 = vadd.s32 %v2772, %v2779
    %v2781 = vrot.slane %v2780, 2
    %v2782 = vadd.s32 %v2780, %v2781
    %v2783 = vrot.slane %v2782, 1
    %v2784 = vadd.s32 %v2782, %v2783
    %vm2785 = vcmp.ge.s32.totalorder %v2778, %v1690
    %vm2786 = vcmp.ge.s32.totalorder %v2784, %v1692
    %vm2787 = vcmp.ge.s32.totalorder %v2730, %v1690
    %vm2788 = vcmp.ge.s32.totalorder %v2736, %v1692
    %vm2789 = vcmp.ge.s32.totalorder %v2682, %v1690
    %vm2790 = vcmp.ge.s32.totalorder %v2688, %v1692
    %v2791 = vsel %vm2789, %v2635, %v2633
    %v2792 = vsel %vm2790, %v2636, %v2634
    %v2793 = vsel %vm2787, %v2637, %v2791
    %v2794 = vsel %vm2788, %v2638, %v2792
    %v2795 = vsel %vm2785, %v2639, %v2793
    %v2796 = vsel %vm2786, %v2640, %v2794
    %v2797 = vor.u32 %v2795, 32768
    %v2798 = vor.u32 %v2796, 32768
    %v2799 = vor.u32 %v2795, 65536
    %v2800 = vor.u32 %v2796, 65536
    %v2801 = vor.u32 %v2795, 98304
    %v2802 = vor.u32 %v2796, 98304
    %v2803 = vlaneseq
    %v2804 = vshrl.u32 %v2803, 7
    %v2805 = vsub.s32 0, %v2804
    %v2806 = vrot.slane %v2797, %v2805
    %v2807 = vlaneseq
    %v2808 = vshrl.u32 %v2807, 7
    %v2809 = vsub.s32 0, %v2808
    %v2810 = vrot.slane %v2798, %v2809
    %vm2811 = vcmp.ge.s32.totalorder %v1684, %v2806
    %vm2812 = vcmp.ge.s32.totalorder %v1686, %v2810
    %v2813 = vsel %vm2811, 1, 0
    %v2814 = vsel %vm2812, 1, 0
    %v2815 = vand.u32 %v2813, 65535
    %v2816 = vshrl.u32 %v2813, 16
    %v2817 = vcvt.s32.f32 %v2815
    %v2818 = vcvt.s32.f32 %v2816
    %2819 = vadd.xlane.f32.xlu0 %v2817
    %v2820 = vpop.xlane.xlu0 %2819
    %2821 = vadd.xlane.f32.xlu0 %v2818
    %v2822 = vpop.xlane.xlu0 %2821
    %v2823 = vcvt.f32.s32 %v2820
    %v2824 = vcvt.f32.s32 %v2822
    %v2825 = vshll.u32 %v2824, 16
    %v2826 = vadd.s32 %v2825, %v2823
    %v2827 = vand.u32 %v2814, 65535
    %v2828 = vshrl.u32 %v2814, 16
    %v2829 = vcvt.s32.f32 %v2827
    %v2830 = vcvt.s32.f32 %v2828
    %2831 = vadd.xlane.f32.xlu0 %v2829
    %v2832 = vpop.xlane.xlu0 %2831
    %2833 = vadd.xlane.f32.xlu0 %v2830
    %v2834 = vpop.xlane.xlu0 %2833
    %v2835 = vcvt.f32.s32 %v2832
    %v2836 = vcvt.f32.s32 %v2834
    %v2837 = vshll.u32 %v2836, 16
    %v2838 = vadd.s32 %v2837, %v2835
    %v2839 = vrot.slane %v2826, 4
    %v2840 = vadd.s32 %v2826, %v2839
    %v2841 = vrot.slane %v2840, 2
    %v2842 = vadd.s32 %v2840, %v2841
    %v2843 = vrot.slane %v2842, 1
    %v2844 = vadd.s32 %v2842, %v2843
    %v2845 = vrot.slane %v2838, 4
    %v2846 = vadd.s32 %v2838, %v2845
    %v2847 = vrot.slane %v2846, 2
    %v2848 = vadd.s32 %v2846, %v2847
    %v2849 = vrot.slane %v2848, 1
    %v2850 = vadd.s32 %v2848, %v2849
    %v2851 = vlaneseq
    %v2852 = vshrl.u32 %v2851, 7
    %v2853 = vsub.s32 0, %v2852
    %v2854 = vrot.slane %v2799, %v2853
    %v2855 = vlaneseq
    %v2856 = vshrl.u32 %v2855, 7
    %v2857 = vsub.s32 0, %v2856
    %v2858 = vrot.slane %v2800, %v2857
    %vm2859 = vcmp.ge.s32.totalorder %v1684, %v2854
    %vm2860 = vcmp.ge.s32.totalorder %v1686, %v2858
    %v2861 = vsel %vm2859, 1, 0
    %v2862 = vsel %vm2860, 1, 0
    %v2863 = vand.u32 %v2861, 65535
    %v2864 = vshrl.u32 %v2861, 16
    %v2865 = vcvt.s32.f32 %v2863
    %v2866 = vcvt.s32.f32 %v2864
    %2867 = vadd.xlane.f32.xlu0 %v2865
    %v2868 = vpop.xlane.xlu0 %2867
    %2869 = vadd.xlane.f32.xlu0 %v2866
    %v2870 = vpop.xlane.xlu0 %2869
    %v2871 = vcvt.f32.s32 %v2868
    %v2872 = vcvt.f32.s32 %v2870
    %v2873 = vshll.u32 %v2872, 16
    %v2874 = vadd.s32 %v2873, %v2871
    %v2875 = vand.u32 %v2862, 65535
    %v2876 = vshrl.u32 %v2862, 16
    %v2877 = vcvt.s32.f32 %v2875
    %v2878 = vcvt.s32.f32 %v2876
    %2879 = vadd.xlane.f32.xlu0 %v2877
    %v2880 = vpop.xlane.xlu0 %2879
    %2881 = vadd.xlane.f32.xlu0 %v2878
    %v2882 = vpop.xlane.xlu0 %2881
    %v2883 = vcvt.f32.s32 %v2880
    %v2884 = vcvt.f32.s32 %v2882
    %v2885 = vshll.u32 %v2884, 16
    %v2886 = vadd.s32 %v2885, %v2883
    %v2887 = vrot.slane %v2874, 4
    %v2888 = vadd.s32 %v2874, %v2887
    %v2889 = vrot.slane %v2888, 2
    %v2890 = vadd.s32 %v2888, %v2889
    %v2891 = vrot.slane %v2890, 1
    %v2892 = vadd.s32 %v2890, %v2891
    %v2893 = vrot.slane %v2886, 4
    %v2894 = vadd.s32 %v2886, %v2893
    %v2895 = vrot.slane %v2894, 2
    %v2896 = vadd.s32 %v2894, %v2895
    %v2897 = vrot.slane %v2896, 1
    %v2898 = vadd.s32 %v2896, %v2897
    %v2899 = vlaneseq
    %v2900 = vshrl.u32 %v2899, 7
    %v2901 = vsub.s32 0, %v2900
    %v2902 = vrot.slane %v2801, %v2901
    %v2903 = vlaneseq
    %v2904 = vshrl.u32 %v2903, 7
    %v2905 = vsub.s32 0, %v2904
    %v2906 = vrot.slane %v2802, %v2905
    %vm2907 = vcmp.ge.s32.totalorder %v1684, %v2902
    %vm2908 = vcmp.ge.s32.totalorder %v1686, %v2906
    %v2909 = vsel %vm2907, 1, 0
    %v2910 = vsel %vm2908, 1, 0
    %v2911 = vand.u32 %v2909, 65535
    %v2912 = vshrl.u32 %v2909, 16
    %v2913 = vcvt.s32.f32 %v2911
    %v2914 = vcvt.s32.f32 %v2912
    %2915 = vadd.xlane.f32.xlu0 %v2913
    %v2916 = vpop.xlane.xlu0 %2915
    %2917 = vadd.xlane.f32.xlu0 %v2914
    %v2918 = vpop.xlane.xlu0 %2917
    %v2919 = vcvt.f32.s32 %v2916
    %v2920 = vcvt.f32.s32 %v2918
    %v2921 = vshll.u32 %v2920, 16
    %v2922 = vadd.s32 %v2921, %v2919
    %v2923 = vand.u32 %v2910, 65535
    %v2924 = vshrl.u32 %v2910, 16
    %v2925 = vcvt.s32.f32 %v2923
    %v2926 = vcvt.s32.f32 %v2924
    %2927 = vadd.xlane.f32.xlu0 %v2925
    %v2928 = vpop.xlane.xlu0 %2927
    %2929 = vadd.xlane.f32.xlu0 %v2926
    %v2930 = vpop.xlane.xlu0 %2929
    %v2931 = vcvt.f32.s32 %v2928
    %v2932 = vcvt.f32.s32 %v2930
    %v2933 = vshll.u32 %v2932, 16
    %v2934 = vadd.s32 %v2933, %v2931
    %v2935 = vrot.slane %v2922, 4
    %v2936 = vadd.s32 %v2922, %v2935
    %v2937 = vrot.slane %v2936, 2
    %v2938 = vadd.s32 %v2936, %v2937
    %v2939 = vrot.slane %v2938, 1
    %v2940 = vadd.s32 %v2938, %v2939
    %v2941 = vrot.slane %v2934, 4
    %v2942 = vadd.s32 %v2934, %v2941
    %v2943 = vrot.slane %v2942, 2
    %v2944 = vadd.s32 %v2942, %v2943
    %v2945 = vrot.slane %v2944, 1
    %v2946 = vadd.s32 %v2944, %v2945
    %vm2947 = vcmp.ge.s32.totalorder %v2940, %v1690
    %vm2948 = vcmp.ge.s32.totalorder %v2946, %v1692
    %vm2949 = vcmp.ge.s32.totalorder %v2892, %v1690
    %vm2950 = vcmp.ge.s32.totalorder %v2898, %v1692
    %vm2951 = vcmp.ge.s32.totalorder %v2844, %v1690
    %vm2952 = vcmp.ge.s32.totalorder %v2850, %v1692
    %v2953 = vsel %vm2951, %v2797, %v2795
    %v2954 = vsel %vm2952, %v2798, %v2796
    %v2955 = vsel %vm2949, %v2799, %v2953
    %v2956 = vsel %vm2950, %v2800, %v2954
    %v2957 = vsel %vm2947, %v2801, %v2955
    %v2958 = vsel %vm2948, %v2802, %v2956
    %v2959 = vor.u32 %v2957, 8192
    %v2960 = vor.u32 %v2958, 8192
    %v2961 = vor.u32 %v2957, 16384
    %v2962 = vor.u32 %v2958, 16384
    %v2963 = vor.u32 %v2957, 24576
    %v2964 = vor.u32 %v2958, 24576
    %v2965 = vlaneseq
    %v2966 = vshrl.u32 %v2965, 7
    %v2967 = vsub.s32 0, %v2966
    %v2968 = vrot.slane %v2959, %v2967
    %v2969 = vlaneseq
    %v2970 = vshrl.u32 %v2969, 7
    %v2971 = vsub.s32 0, %v2970
    %v2972 = vrot.slane %v2960, %v2971
    %vm2973 = vcmp.ge.s32.totalorder %v1684, %v2968
    %vm2974 = vcmp.ge.s32.totalorder %v1686, %v2972
    %v2975 = vsel %vm2973, 1, 0
    %v2976 = vsel %vm2974, 1, 0
    %v2977 = vand.u32 %v2975, 65535
    %v2978 = vshrl.u32 %v2975, 16
    %v2979 = vcvt.s32.f32 %v2977
    %v2980 = vcvt.s32.f32 %v2978
    %2981 = vadd.xlane.f32.xlu0 %v2979
    %v2982 = vpop.xlane.xlu0 %2981
    %2983 = vadd.xlane.f32.xlu0 %v2980
    %v2984 = vpop.xlane.xlu0 %2983
    %v2985 = vcvt.f32.s32 %v2982
    %v2986 = vcvt.f32.s32 %v2984
    %v2987 = vshll.u32 %v2986, 16
    %v2988 = vadd.s32 %v2987, %v2985
    %v2989 = vand.u32 %v2976, 65535
    %v2990 = vshrl.u32 %v2976, 16
    %v2991 = vcvt.s32.f32 %v2989
    %v2992 = vcvt.s32.f32 %v2990
    %2993 = vadd.xlane.f32.xlu0 %v2991
    %v2994 = vpop.xlane.xlu0 %2993
    %2995 = vadd.xlane.f32.xlu0 %v2992
    %v2996 = vpop.xlane.xlu0 %2995
    %v2997 = vcvt.f32.s32 %v2994
    %v2998 = vcvt.f32.s32 %v2996
    %v2999 = vshll.u32 %v2998, 16
    %v3000 = vadd.s32 %v2999, %v2997
    %v3001 = vrot.slane %v2988, 4
    %v3002 = vadd.s32 %v2988, %v3001
    %v3003 = vrot.slane %v3002, 2
    %v3004 = vadd.s32 %v3002, %v3003
    %v3005 = vrot.slane %v3004, 1
    %v3006 = vadd.s32 %v3004, %v3005
    %v3007 = vrot.slane %v3000, 4
    %v3008 = vadd.s32 %v3000, %v3007
    %v3009 = vrot.slane %v3008, 2
    %v3010 = vadd.s32 %v3008, %v3009
    %v3011 = vrot.slane %v3010, 1
    %v3012 = vadd.s32 %v3010, %v3011
    %v3013 = vlaneseq
    %v3014 = vshrl.u32 %v3013, 7
    %v3015 = vsub.s32 0, %v3014
    %v3016 = vrot.slane %v2961, %v3015
    %v3017 = vlaneseq
    %v3018 = vshrl.u32 %v3017, 7
    %v3019 = vsub.s32 0, %v3018
    %v3020 = vrot.slane %v2962, %v3019
    %vm3021 = vcmp.ge.s32.totalorder %v1684, %v3016
    %vm3022 = vcmp.ge.s32.totalorder %v1686, %v3020
    %v3023 = vsel %vm3021, 1, 0
    %v3024 = vsel %vm3022, 1, 0
    %v3025 = vand.u32 %v3023, 65535
    %v3026 = vshrl.u32 %v3023, 16
    %v3027 = vcvt.s32.f32 %v3025
    %v3028 = vcvt.s32.f32 %v3026
    %3029 = vadd.xlane.f32.xlu0 %v3027
    %v3030 = vpop.xlane.xlu0 %3029
    %3031 = vadd.xlane.f32.xlu0 %v3028
    %v3032 = vpop.xlane.xlu0 %3031
    %v3033 = vcvt.f32.s32 %v3030
    %v3034 = vcvt.f32.s32 %v3032
    %v3035 = vshll.u32 %v3034, 16
    %v3036 = vadd.s32 %v3035, %v3033
    %v3037 = vand.u32 %v3024, 65535
    %v3038 = vshrl.u32 %v3024, 16
    %v3039 = vcvt.s32.f32 %v3037
    %v3040 = vcvt.s32.f32 %v3038
    %3041 = vadd.xlane.f32.xlu0 %v3039
    %v3042 = vpop.xlane.xlu0 %3041
    %3043 = vadd.xlane.f32.xlu0 %v3040
    %v3044 = vpop.xlane.xlu0 %3043
    %v3045 = vcvt.f32.s32 %v3042
    %v3046 = vcvt.f32.s32 %v3044
    %v3047 = vshll.u32 %v3046, 16
    %v3048 = vadd.s32 %v3047, %v3045
    %v3049 = vrot.slane %v3036, 4
    %v3050 = vadd.s32 %v3036, %v3049
    %v3051 = vrot.slane %v3050, 2
    %v3052 = vadd.s32 %v3050, %v3051
    %v3053 = vrot.slane %v3052, 1
    %v3054 = vadd.s32 %v3052, %v3053
    %v3055 = vrot.slane %v3048, 4
    %v3056 = vadd.s32 %v3048, %v3055
    %v3057 = vrot.slane %v3056, 2
    %v3058 = vadd.s32 %v3056, %v3057
    %v3059 = vrot.slane %v3058, 1
    %v3060 = vadd.s32 %v3058, %v3059
    %v3061 = vlaneseq
    %v3062 = vshrl.u32 %v3061, 7
    %v3063 = vsub.s32 0, %v3062
    %v3064 = vrot.slane %v2963, %v3063
    %v3065 = vlaneseq
    %v3066 = vshrl.u32 %v3065, 7
    %v3067 = vsub.s32 0, %v3066
    %v3068 = vrot.slane %v2964, %v3067
    %vm3069 = vcmp.ge.s32.totalorder %v1684, %v3064
    %vm3070 = vcmp.ge.s32.totalorder %v1686, %v3068
    %v3071 = vsel %vm3069, 1, 0
    %v3072 = vsel %vm3070, 1, 0
    %v3073 = vand.u32 %v3071, 65535
    %v3074 = vshrl.u32 %v3071, 16
    %v3075 = vcvt.s32.f32 %v3073
    %v3076 = vcvt.s32.f32 %v3074
    %3077 = vadd.xlane.f32.xlu0 %v3075
    %v3078 = vpop.xlane.xlu0 %3077
    %3079 = vadd.xlane.f32.xlu0 %v3076
    %v3080 = vpop.xlane.xlu0 %3079
    %v3081 = vcvt.f32.s32 %v3078
    %v3082 = vcvt.f32.s32 %v3080
    %v3083 = vshll.u32 %v3082, 16
    %v3084 = vadd.s32 %v3083, %v3081
    %v3085 = vand.u32 %v3072, 65535
    %v3086 = vshrl.u32 %v3072, 16
    %v3087 = vcvt.s32.f32 %v3085
    %v3088 = vcvt.s32.f32 %v3086
    %3089 = vadd.xlane.f32.xlu0 %v3087
    %v3090 = vpop.xlane.xlu0 %3089
    %3091 = vadd.xlane.f32.xlu0 %v3088
    %v3092 = vpop.xlane.xlu0 %3091
    %v3093 = vcvt.f32.s32 %v3090
    %v3094 = vcvt.f32.s32 %v3092
    %v3095 = vshll.u32 %v3094, 16
    %v3096 = vadd.s32 %v3095, %v3093
    %v3097 = vrot.slane %v3084, 4
    %v3098 = vadd.s32 %v3084, %v3097
    %v3099 = vrot.slane %v3098, 2
    %v3100 = vadd.s32 %v3098, %v3099
    %v3101 = vrot.slane %v3100, 1
    %v3102 = vadd.s32 %v3100, %v3101
    %v3103 = vrot.slane %v3096, 4
    %v3104 = vadd.s32 %v3096, %v3103
    %v3105 = vrot.slane %v3104, 2
    %v3106 = vadd.s32 %v3104, %v3105
    %v3107 = vrot.slane %v3106, 1
    %v3108 = vadd.s32 %v3106, %v3107
    %vm3109 = vcmp.ge.s32.totalorder %v3102, %v1690
    %vm3110 = vcmp.ge.s32.totalorder %v3108, %v1692
    %vm3111 = vcmp.ge.s32.totalorder %v3054, %v1690
    %vm3112 = vcmp.ge.s32.totalorder %v3060, %v1692
    %vm3113 = vcmp.ge.s32.totalorder %v3006, %v1690
    %vm3114 = vcmp.ge.s32.totalorder %v3012, %v1692
    %v3115 = vsel %vm3113, %v2959, %v2957
    %v3116 = vsel %vm3114, %v2960, %v2958
    %v3117 = vsel %vm3111, %v2961, %v3115
    %v3118 = vsel %vm3112, %v2962, %v3116
    %v3119 = vsel %vm3109, %v2963, %v3117
    %v3120 = vsel %vm3110, %v2964, %v3118
    %v3121 = vor.u32 %v3119, 2048
    %v3122 = vor.u32 %v3120, 2048
    %v3123 = vor.u32 %v3119, 4096
    %v3124 = vor.u32 %v3120, 4096
    %v3125 = vor.u32 %v3119, 6144
    %v3126 = vor.u32 %v3120, 6144
    %v3127 = vlaneseq
    %v3128 = vshrl.u32 %v3127, 7
    %v3129 = vsub.s32 0, %v3128
    %v3130 = vrot.slane %v3121, %v3129
    %v3131 = vlaneseq
    %v3132 = vshrl.u32 %v3131, 7
    %v3133 = vsub.s32 0, %v3132
    %v3134 = vrot.slane %v3122, %v3133
    %vm3135 = vcmp.ge.s32.totalorder %v1684, %v3130
    %vm3136 = vcmp.ge.s32.totalorder %v1686, %v3134
    %v3137 = vsel %vm3135, 1, 0
    %v3138 = vsel %vm3136, 1, 0
    %v3139 = vand.u32 %v3137, 65535
    %v3140 = vshrl.u32 %v3137, 16
    %v3141 = vcvt.s32.f32 %v3139
    %v3142 = vcvt.s32.f32 %v3140
    %3143 = vadd.xlane.f32.xlu0 %v3141
    %v3144 = vpop.xlane.xlu0 %3143
    %3145 = vadd.xlane.f32.xlu0 %v3142
    %v3146 = vpop.xlane.xlu0 %3145
    %v3147 = vcvt.f32.s32 %v3144
    %v3148 = vcvt.f32.s32 %v3146
    %v3149 = vshll.u32 %v3148, 16
    %v3150 = vadd.s32 %v3149, %v3147
    %v3151 = vand.u32 %v3138, 65535
    %v3152 = vshrl.u32 %v3138, 16
    %v3153 = vcvt.s32.f32 %v3151
    %v3154 = vcvt.s32.f32 %v3152
    %3155 = vadd.xlane.f32.xlu0 %v3153
    %v3156 = vpop.xlane.xlu0 %3155
    %3157 = vadd.xlane.f32.xlu0 %v3154
    %v3158 = vpop.xlane.xlu0 %3157
    %v3159 = vcvt.f32.s32 %v3156
    %v3160 = vcvt.f32.s32 %v3158
    %v3161 = vshll.u32 %v3160, 16
    %v3162 = vadd.s32 %v3161, %v3159
    %v3163 = vrot.slane %v3150, 4
    %v3164 = vadd.s32 %v3150, %v3163
    %v3165 = vrot.slane %v3164, 2
    %v3166 = vadd.s32 %v3164, %v3165
    %v3167 = vrot.slane %v3166, 1
    %v3168 = vadd.s32 %v3166, %v3167
    %v3169 = vrot.slane %v3162, 4
    %v3170 = vadd.s32 %v3162, %v3169
    %v3171 = vrot.slane %v3170, 2
    %v3172 = vadd.s32 %v3170, %v3171
    %v3173 = vrot.slane %v3172, 1
    %v3174 = vadd.s32 %v3172, %v3173
    %v3175 = vlaneseq
    %v3176 = vshrl.u32 %v3175, 7
    %v3177 = vsub.s32 0, %v3176
    %v3178 = vrot.slane %v3123, %v3177
    %v3179 = vlaneseq
    %v3180 = vshrl.u32 %v3179, 7
    %v3181 = vsub.s32 0, %v3180
    %v3182 = vrot.slane %v3124, %v3181
    %vm3183 = vcmp.ge.s32.totalorder %v1684, %v3178
    %vm3184 = vcmp.ge.s32.totalorder %v1686, %v3182
    %v3185 = vsel %vm3183, 1, 0
    %v3186 = vsel %vm3184, 1, 0
    %v3187 = vand.u32 %v3185, 65535
    %v3188 = vshrl.u32 %v3185, 16
    %v3189 = vcvt.s32.f32 %v3187
    %v3190 = vcvt.s32.f32 %v3188
    %3191 = vadd.xlane.f32.xlu0 %v3189
    %v3192 = vpop.xlane.xlu0 %3191
    %3193 = vadd.xlane.f32.xlu0 %v3190
    %v3194 = vpop.xlane.xlu0 %3193
    %v3195 = vcvt.f32.s32 %v3192
    %v3196 = vcvt.f32.s32 %v3194
    %v3197 = vshll.u32 %v3196, 16
    %v3198 = vadd.s32 %v3197, %v3195
    %v3199 = vand.u32 %v3186, 65535
    %v3200 = vshrl.u32 %v3186, 16
    %v3201 = vcvt.s32.f32 %v3199
    %v3202 = vcvt.s32.f32 %v3200
    %3203 = vadd.xlane.f32.xlu0 %v3201
    %v3204 = vpop.xlane.xlu0 %3203
    %3205 = vadd.xlane.f32.xlu0 %v3202
    %v3206 = vpop.xlane.xlu0 %3205
    %v3207 = vcvt.f32.s32 %v3204
    %v3208 = vcvt.f32.s32 %v3206
    %v3209 = vshll.u32 %v3208, 16
    %v3210 = vadd.s32 %v3209, %v3207
    %v3211 = vrot.slane %v3198, 4
    %v3212 = vadd.s32 %v3198, %v3211
    %v3213 = vrot.slane %v3212, 2
    %v3214 = vadd.s32 %v3212, %v3213
    %v3215 = vrot.slane %v3214, 1
    %v3216 = vadd.s32 %v3214, %v3215
    %v3217 = vrot.slane %v3210, 4
    %v3218 = vadd.s32 %v3210, %v3217
    %v3219 = vrot.slane %v3218, 2
    %v3220 = vadd.s32 %v3218, %v3219
    %v3221 = vrot.slane %v3220, 1
    %v3222 = vadd.s32 %v3220, %v3221
    %v3223 = vlaneseq
    %v3224 = vshrl.u32 %v3223, 7
    %v3225 = vsub.s32 0, %v3224
    %v3226 = vrot.slane %v3125, %v3225
    %v3227 = vlaneseq
    %v3228 = vshrl.u32 %v3227, 7
    %v3229 = vsub.s32 0, %v3228
    %v3230 = vrot.slane %v3126, %v3229
    %vm3231 = vcmp.ge.s32.totalorder %v1684, %v3226
    %vm3232 = vcmp.ge.s32.totalorder %v1686, %v3230
    %v3233 = vsel %vm3231, 1, 0
    %v3234 = vsel %vm3232, 1, 0
    %v3235 = vand.u32 %v3233, 65535
    %v3236 = vshrl.u32 %v3233, 16
    %v3237 = vcvt.s32.f32 %v3235
    %v3238 = vcvt.s32.f32 %v3236
    %3239 = vadd.xlane.f32.xlu0 %v3237
    %v3240 = vpop.xlane.xlu0 %3239
    %3241 = vadd.xlane.f32.xlu0 %v3238
    %v3242 = vpop.xlane.xlu0 %3241
    %v3243 = vcvt.f32.s32 %v3240
    %v3244 = vcvt.f32.s32 %v3242
    %v3245 = vshll.u32 %v3244, 16
    %v3246 = vadd.s32 %v3245, %v3243
    %v3247 = vand.u32 %v3234, 65535
    %v3248 = vshrl.u32 %v3234, 16
    %v3249 = vcvt.s32.f32 %v3247
    %v3250 = vcvt.s32.f32 %v3248
    %3251 = vadd.xlane.f32.xlu0 %v3249
    %v3252 = vpop.xlane.xlu0 %3251
    %3253 = vadd.xlane.f32.xlu0 %v3250
    %v3254 = vpop.xlane.xlu0 %3253
    %v3255 = vcvt.f32.s32 %v3252
    %v3256 = vcvt.f32.s32 %v3254
    %v3257 = vshll.u32 %v3256, 16
    %v3258 = vadd.s32 %v3257, %v3255
    %v3259 = vrot.slane %v3246, 4
    %v3260 = vadd.s32 %v3246, %v3259
    %v3261 = vrot.slane %v3260, 2
    %v3262 = vadd.s32 %v3260, %v3261
    %v3263 = vrot.slane %v3262, 1
    %v3264 = vadd.s32 %v3262, %v3263
    %v3265 = vrot.slane %v3258, 4
    %v3266 = vadd.s32 %v3258, %v3265
    %v3267 = vrot.slane %v3266, 2
    %v3268 = vadd.s32 %v3266, %v3267
    %v3269 = vrot.slane %v3268, 1
    %v3270 = vadd.s32 %v3268, %v3269
    %vm3271 = vcmp.ge.s32.totalorder %v3264, %v1690
    %vm3272 = vcmp.ge.s32.totalorder %v3270, %v1692
    %vm3273 = vcmp.ge.s32.totalorder %v3216, %v1690
    %vm3274 = vcmp.ge.s32.totalorder %v3222, %v1692
    %vm3275 = vcmp.ge.s32.totalorder %v3168, %v1690
    %vm3276 = vcmp.ge.s32.totalorder %v3174, %v1692
    %v3277 = vsel %vm3275, %v3121, %v3119
    %v3278 = vsel %vm3276, %v3122, %v3120
    %v3279 = vsel %vm3273, %v3123, %v3277
    %v3280 = vsel %vm3274, %v3124, %v3278
    %v3281 = vsel %vm3271, %v3125, %v3279
    %v3282 = vsel %vm3272, %v3126, %v3280
    %v3283 = vor.u32 %v3281, 512
    %v3284 = vor.u32 %v3282, 512
    %v3285 = vor.u32 %v3281, 1024
    %v3286 = vor.u32 %v3282, 1024
    %v3287 = vor.u32 %v3281, 1536
    %v3288 = vor.u32 %v3282, 1536
    %v3289 = vlaneseq
    %v3290 = vshrl.u32 %v3289, 7
    %v3291 = vsub.s32 0, %v3290
    %v3292 = vrot.slane %v3283, %v3291
    %v3293 = vlaneseq
    %v3294 = vshrl.u32 %v3293, 7
    %v3295 = vsub.s32 0, %v3294
    %v3296 = vrot.slane %v3284, %v3295
    %vm3297 = vcmp.ge.s32.totalorder %v1684, %v3292
    %vm3298 = vcmp.ge.s32.totalorder %v1686, %v3296
    %v3299 = vsel %vm3297, 1, 0
    %v3300 = vsel %vm3298, 1, 0
    %v3301 = vand.u32 %v3299, 65535
    %v3302 = vshrl.u32 %v3299, 16
    %v3303 = vcvt.s32.f32 %v3301
    %v3304 = vcvt.s32.f32 %v3302
    %3305 = vadd.xlane.f32.xlu0 %v3303
    %v3306 = vpop.xlane.xlu0 %3305
    %3307 = vadd.xlane.f32.xlu0 %v3304
    %v3308 = vpop.xlane.xlu0 %3307
    %v3309 = vcvt.f32.s32 %v3306
    %v3310 = vcvt.f32.s32 %v3308
    %v3311 = vshll.u32 %v3310, 16
    %v3312 = vadd.s32 %v3311, %v3309
    %v3313 = vand.u32 %v3300, 65535
    %v3314 = vshrl.u32 %v3300, 16
    %v3315 = vcvt.s32.f32 %v3313
    %v3316 = vcvt.s32.f32 %v3314
    %3317 = vadd.xlane.f32.xlu0 %v3315
    %v3318 = vpop.xlane.xlu0 %3317
    %3319 = vadd.xlane.f32.xlu0 %v3316
    %v3320 = vpop.xlane.xlu0 %3319
    %v3321 = vcvt.f32.s32 %v3318
    %v3322 = vcvt.f32.s32 %v3320
    %v3323 = vshll.u32 %v3322, 16
    %v3324 = vadd.s32 %v3323, %v3321
    %v3325 = vrot.slane %v3312, 4
    %v3326 = vadd.s32 %v3312, %v3325
    %v3327 = vrot.slane %v3326, 2
    %v3328 = vadd.s32 %v3326, %v3327
    %v3329 = vrot.slane %v3328, 1
    %v3330 = vadd.s32 %v3328, %v3329
    %v3331 = vrot.slane %v3324, 4
    %v3332 = vadd.s32 %v3324, %v3331
    %v3333 = vrot.slane %v3332, 2
    %v3334 = vadd.s32 %v3332, %v3333
    %v3335 = vrot.slane %v3334, 1
    %v3336 = vadd.s32 %v3334, %v3335
    %v3337 = vlaneseq
    %v3338 = vshrl.u32 %v3337, 7
    %v3339 = vsub.s32 0, %v3338
    %v3340 = vrot.slane %v3285, %v3339
    %v3341 = vlaneseq
    %v3342 = vshrl.u32 %v3341, 7
    %v3343 = vsub.s32 0, %v3342
    %v3344 = vrot.slane %v3286, %v3343
    %vm3345 = vcmp.ge.s32.totalorder %v1684, %v3340
    %vm3346 = vcmp.ge.s32.totalorder %v1686, %v3344
    %v3347 = vsel %vm3345, 1, 0
    %v3348 = vsel %vm3346, 1, 0
    %v3349 = vand.u32 %v3347, 65535
    %v3350 = vshrl.u32 %v3347, 16
    %v3351 = vcvt.s32.f32 %v3349
    %v3352 = vcvt.s32.f32 %v3350
    %3353 = vadd.xlane.f32.xlu0 %v3351
    %v3354 = vpop.xlane.xlu0 %3353
    %3355 = vadd.xlane.f32.xlu0 %v3352
    %v3356 = vpop.xlane.xlu0 %3355
    %v3357 = vcvt.f32.s32 %v3354
    %v3358 = vcvt.f32.s32 %v3356
    %v3359 = vshll.u32 %v3358, 16
    %v3360 = vadd.s32 %v3359, %v3357
    %v3361 = vand.u32 %v3348, 65535
    %v3362 = vshrl.u32 %v3348, 16
    %v3363 = vcvt.s32.f32 %v3361
    %v3364 = vcvt.s32.f32 %v3362
    %3365 = vadd.xlane.f32.xlu0 %v3363
    %v3366 = vpop.xlane.xlu0 %3365
    %3367 = vadd.xlane.f32.xlu0 %v3364
    %v3368 = vpop.xlane.xlu0 %3367
    %v3369 = vcvt.f32.s32 %v3366
    %v3370 = vcvt.f32.s32 %v3368
    %v3371 = vshll.u32 %v3370, 16
    %v3372 = vadd.s32 %v3371, %v3369
    %v3373 = vrot.slane %v3360, 4
    %v3374 = vadd.s32 %v3360, %v3373
    %v3375 = vrot.slane %v3374, 2
    %v3376 = vadd.s32 %v3374, %v3375
    %v3377 = vrot.slane %v3376, 1
    %v3378 = vadd.s32 %v3376, %v3377
    %v3379 = vrot.slane %v3372, 4
    %v3380 = vadd.s32 %v3372, %v3379
    %v3381 = vrot.slane %v3380, 2
    %v3382 = vadd.s32 %v3380, %v3381
    %v3383 = vrot.slane %v3382, 1
    %v3384 = vadd.s32 %v3382, %v3383
    %v3385 = vlaneseq
    %v3386 = vshrl.u32 %v3385, 7
    %v3387 = vsub.s32 0, %v3386
    %v3388 = vrot.slane %v3287, %v3387
    %v3389 = vlaneseq
    %v3390 = vshrl.u32 %v3389, 7
    %v3391 = vsub.s32 0, %v3390
    %v3392 = vrot.slane %v3288, %v3391
    %vm3393 = vcmp.ge.s32.totalorder %v1684, %v3388
    %vm3394 = vcmp.ge.s32.totalorder %v1686, %v3392
    %v3395 = vsel %vm3393, 1, 0
    %v3396 = vsel %vm3394, 1, 0
    %v3397 = vand.u32 %v3395, 65535
    %v3398 = vshrl.u32 %v3395, 16
    %v3399 = vcvt.s32.f32 %v3397
    %v3400 = vcvt.s32.f32 %v3398
    %3401 = vadd.xlane.f32.xlu0 %v3399
    %v3402 = vpop.xlane.xlu0 %3401
    %3403 = vadd.xlane.f32.xlu0 %v3400
    %v3404 = vpop.xlane.xlu0 %3403
    %v3405 = vcvt.f32.s32 %v3402
    %v3406 = vcvt.f32.s32 %v3404
    %v3407 = vshll.u32 %v3406, 16
    %v3408 = vadd.s32 %v3407, %v3405
    %v3409 = vand.u32 %v3396, 65535
    %v3410 = vshrl.u32 %v3396, 16
    %v3411 = vcvt.s32.f32 %v3409
    %v3412 = vcvt.s32.f32 %v3410
    %3413 = vadd.xlane.f32.xlu0 %v3411
    %v3414 = vpop.xlane.xlu0 %3413
    %3415 = vadd.xlane.f32.xlu0 %v3412
    %v3416 = vpop.xlane.xlu0 %3415
    %v3417 = vcvt.f32.s32 %v3414
    %v3418 = vcvt.f32.s32 %v3416
    %v3419 = vshll.u32 %v3418, 16
    %v3420 = vadd.s32 %v3419, %v3417
    %v3421 = vrot.slane %v3408, 4
    %v3422 = vadd.s32 %v3408, %v3421
    %v3423 = vrot.slane %v3422, 2
    %v3424 = vadd.s32 %v3422, %v3423
    %v3425 = vrot.slane %v3424, 1
    %v3426 = vadd.s32 %v3424, %v3425
    %v3427 = vrot.slane %v3420, 4
    %v3428 = vadd.s32 %v3420, %v3427
    %v3429 = vrot.slane %v3428, 2
    %v3430 = vadd.s32 %v3428, %v3429
    %v3431 = vrot.slane %v3430, 1
    %v3432 = vadd.s32 %v3430, %v3431
    %vm3433 = vcmp.ge.s32.totalorder %v3426, %v1690
    %vm3434 = vcmp.ge.s32.totalorder %v3432, %v1692
    %vm3435 = vcmp.ge.s32.totalorder %v3378, %v1690
    %vm3436 = vcmp.ge.s32.totalorder %v3384, %v1692
    %vm3437 = vcmp.ge.s32.totalorder %v3330, %v1690
    %vm3438 = vcmp.ge.s32.totalorder %v3336, %v1692
    %v3439 = vsel %vm3437, %v3283, %v3281
    %v3440 = vsel %vm3438, %v3284, %v3282
    %v3441 = vsel %vm3435, %v3285, %v3439
    %v3442 = vsel %vm3436, %v3286, %v3440
    %v3443 = vsel %vm3433, %v3287, %v3441
    %v3444 = vsel %vm3434, %v3288, %v3442
    %v3445 = vor.u32 %v3443, 128
    %v3446 = vor.u32 %v3444, 128
    %v3447 = vor.u32 %v3443, 256
    %v3448 = vor.u32 %v3444, 256
    %v3449 = vor.u32 %v3443, 384
    %v3450 = vor.u32 %v3444, 384
    %v3451 = vlaneseq
    %v3452 = vshrl.u32 %v3451, 7
    %v3453 = vsub.s32 0, %v3452
    %v3454 = vrot.slane %v3445, %v3453
    %v3455 = vlaneseq
    %v3456 = vshrl.u32 %v3455, 7
    %v3457 = vsub.s32 0, %v3456
    %v3458 = vrot.slane %v3446, %v3457
    %vm3459 = vcmp.ge.s32.totalorder %v1684, %v3454
    %vm3460 = vcmp.ge.s32.totalorder %v1686, %v3458
    %v3461 = vsel %vm3459, 1, 0
    %v3462 = vsel %vm3460, 1, 0
    %v3463 = vand.u32 %v3461, 65535
    %v3464 = vshrl.u32 %v3461, 16
    %v3465 = vcvt.s32.f32 %v3463
    %v3466 = vcvt.s32.f32 %v3464
    %3467 = vadd.xlane.f32.xlu0 %v3465
    %v3468 = vpop.xlane.xlu0 %3467
    %3469 = vadd.xlane.f32.xlu0 %v3466
    %v3470 = vpop.xlane.xlu0 %3469
    %v3471 = vcvt.f32.s32 %v3468
    %v3472 = vcvt.f32.s32 %v3470
    %v3473 = vshll.u32 %v3472, 16
    %v3474 = vadd.s32 %v3473, %v3471
    %v3475 = vand.u32 %v3462, 65535
    %v3476 = vshrl.u32 %v3462, 16
    %v3477 = vcvt.s32.f32 %v3475
    %v3478 = vcvt.s32.f32 %v3476
    %3479 = vadd.xlane.f32.xlu0 %v3477
    %v3480 = vpop.xlane.xlu0 %3479
    %3481 = vadd.xlane.f32.xlu0 %v3478
    %v3482 = vpop.xlane.xlu0 %3481
    %v3483 = vcvt.f32.s32 %v3480
    %v3484 = vcvt.f32.s32 %v3482
    %v3485 = vshll.u32 %v3484, 16
    %v3486 = vadd.s32 %v3485, %v3483
    %v3487 = vrot.slane %v3474, 4
    %v3488 = vadd.s32 %v3474, %v3487
    %v3489 = vrot.slane %v3488, 2
    %v3490 = vadd.s32 %v3488, %v3489
    %v3491 = vrot.slane %v3490, 1
    %v3492 = vadd.s32 %v3490, %v3491
    %v3493 = vrot.slane %v3486, 4
    %v3494 = vadd.s32 %v3486, %v3493
    %v3495 = vrot.slane %v3494, 2
    %v3496 = vadd.s32 %v3494, %v3495
    %v3497 = vrot.slane %v3496, 1
    %v3498 = vadd.s32 %v3496, %v3497
    %v3499 = vlaneseq
    %v3500 = vshrl.u32 %v3499, 7
    %v3501 = vsub.s32 0, %v3500
    %v3502 = vrot.slane %v3447, %v3501
    %v3503 = vlaneseq
    %v3504 = vshrl.u32 %v3503, 7
    %v3505 = vsub.s32 0, %v3504
    %v3506 = vrot.slane %v3448, %v3505
    %vm3507 = vcmp.ge.s32.totalorder %v1684, %v3502
    %vm3508 = vcmp.ge.s32.totalorder %v1686, %v3506
    %v3509 = vsel %vm3507, 1, 0
    %v3510 = vsel %vm3508, 1, 0
    %v3511 = vand.u32 %v3509, 65535
    %v3512 = vshrl.u32 %v3509, 16
    %v3513 = vcvt.s32.f32 %v3511
    %v3514 = vcvt.s32.f32 %v3512
    %3515 = vadd.xlane.f32.xlu0 %v3513
    %v3516 = vpop.xlane.xlu0 %3515
    %3517 = vadd.xlane.f32.xlu0 %v3514
    %v3518 = vpop.xlane.xlu0 %3517
    %v3519 = vcvt.f32.s32 %v3516
    %v3520 = vcvt.f32.s32 %v3518
    %v3521 = vshll.u32 %v3520, 16
    %v3522 = vadd.s32 %v3521, %v3519
    %v3523 = vand.u32 %v3510, 65535
    %v3524 = vshrl.u32 %v3510, 16
    %v3525 = vcvt.s32.f32 %v3523
    %v3526 = vcvt.s32.f32 %v3524
    %3527 = vadd.xlane.f32.xlu0 %v3525
    %v3528 = vpop.xlane.xlu0 %3527
    %3529 = vadd.xlane.f32.xlu0 %v3526
    %v3530 = vpop.xlane.xlu0 %3529
    %v3531 = vcvt.f32.s32 %v3528
    %v3532 = vcvt.f32.s32 %v3530
    %v3533 = vshll.u32 %v3532, 16
    %v3534 = vadd.s32 %v3533, %v3531
    %v3535 = vrot.slane %v3522, 4
    %v3536 = vadd.s32 %v3522, %v3535
    %v3537 = vrot.slane %v3536, 2
    %v3538 = vadd.s32 %v3536, %v3537
    %v3539 = vrot.slane %v3538, 1
    %v3540 = vadd.s32 %v3538, %v3539
    %v3541 = vrot.slane %v3534, 4
    %v3542 = vadd.s32 %v3534, %v3541
    %v3543 = vrot.slane %v3542, 2
    %v3544 = vadd.s32 %v3542, %v3543
    %v3545 = vrot.slane %v3544, 1
    %v3546 = vadd.s32 %v3544, %v3545
    %v3547 = vlaneseq
    %v3548 = vshrl.u32 %v3547, 7
    %v3549 = vsub.s32 0, %v3548
    %v3550 = vrot.slane %v3449, %v3549
    %v3551 = vlaneseq
    %v3552 = vshrl.u32 %v3551, 7
    %v3553 = vsub.s32 0, %v3552
    %v3554 = vrot.slane %v3450, %v3553
    %vm3555 = vcmp.ge.s32.totalorder %v1684, %v3550
    %vm3556 = vcmp.ge.s32.totalorder %v1686, %v3554
    %v3557 = vsel %vm3555, 1, 0
    %v3558 = vsel %vm3556, 1, 0
    %v3559 = vand.u32 %v3557, 65535
    %v3560 = vshrl.u32 %v3557, 16
    %v3561 = vcvt.s32.f32 %v3559
    %v3562 = vcvt.s32.f32 %v3560
    %3563 = vadd.xlane.f32.xlu0 %v3561
    %v3564 = vpop.xlane.xlu0 %3563
    %3565 = vadd.xlane.f32.xlu0 %v3562
    %v3566 = vpop.xlane.xlu0 %3565
    %v3567 = vcvt.f32.s32 %v3564
    %v3568 = vcvt.f32.s32 %v3566
    %v3569 = vshll.u32 %v3568, 16
    %v3570 = vadd.s32 %v3569, %v3567
    %v3571 = vand.u32 %v3558, 65535
    %v3572 = vshrl.u32 %v3558, 16
    %v3573 = vcvt.s32.f32 %v3571
    %v3574 = vcvt.s32.f32 %v3572
    %3575 = vadd.xlane.f32.xlu0 %v3573
    %v3576 = vpop.xlane.xlu0 %3575
    %3577 = vadd.xlane.f32.xlu0 %v3574
    %v3578 = vpop.xlane.xlu0 %3577
    %v3579 = vcvt.f32.s32 %v3576
    %v3580 = vcvt.f32.s32 %v3578
    %v3581 = vshll.u32 %v3580, 16
    %v3582 = vadd.s32 %v3581, %v3579
    %v3583 = vrot.slane %v3570, 4
    %v3584 = vadd.s32 %v3570, %v3583
    %v3585 = vrot.slane %v3584, 2
    %v3586 = vadd.s32 %v3584, %v3585
    %v3587 = vrot.slane %v3586, 1
    %v3588 = vadd.s32 %v3586, %v3587
    %v3589 = vrot.slane %v3582, 4
    %v3590 = vadd.s32 %v3582, %v3589
    %v3591 = vrot.slane %v3590, 2
    %v3592 = vadd.s32 %v3590, %v3591
    %v3593 = vrot.slane %v3592, 1
    %v3594 = vadd.s32 %v3592, %v3593
    %vm3595 = vcmp.ge.s32.totalorder %v3588, %v1690
    %vm3596 = vcmp.ge.s32.totalorder %v3594, %v1692
    %vm3597 = vcmp.ge.s32.totalorder %v3540, %v1690
    %vm3598 = vcmp.ge.s32.totalorder %v3546, %v1692
    %vm3599 = vcmp.ge.s32.totalorder %v3492, %v1690
    %vm3600 = vcmp.ge.s32.totalorder %v3498, %v1692
    %v3601 = vsel %vm3599, %v3445, %v3443
    %v3602 = vsel %vm3600, %v3446, %v3444
    %v3603 = vsel %vm3597, %v3447, %v3601
    %v3604 = vsel %vm3598, %v3448, %v3602
    %v3605 = vsel %vm3595, %v3449, %v3603
    %v3606 = vsel %vm3596, %v3450, %v3604
    %v3607 = vor.u32 %v3605, 32
    %v3608 = vor.u32 %v3606, 32
    %v3609 = vor.u32 %v3605, 64
    %v3610 = vor.u32 %v3606, 64
    %v3611 = vor.u32 %v3605, 96
    %v3612 = vor.u32 %v3606, 96
    %v3613 = vlaneseq
    %v3614 = vshrl.u32 %v3613, 7
    %v3615 = vsub.s32 0, %v3614
    %v3616 = vrot.slane %v3607, %v3615
    %v3617 = vlaneseq
    %v3618 = vshrl.u32 %v3617, 7
    %v3619 = vsub.s32 0, %v3618
    %v3620 = vrot.slane %v3608, %v3619
    %vm3621 = vcmp.ge.s32.totalorder %v1684, %v3616
    %vm3622 = vcmp.ge.s32.totalorder %v1686, %v3620
    %v3623 = vsel %vm3621, 1, 0
    %v3624 = vsel %vm3622, 1, 0
    %v3625 = vand.u32 %v3623, 65535
    %v3626 = vshrl.u32 %v3623, 16
    %v3627 = vcvt.s32.f32 %v3625
    %v3628 = vcvt.s32.f32 %v3626
    %3629 = vadd.xlane.f32.xlu0 %v3627
    %v3630 = vpop.xlane.xlu0 %3629
    %3631 = vadd.xlane.f32.xlu0 %v3628
    %v3632 = vpop.xlane.xlu0 %3631
    %v3633 = vcvt.f32.s32 %v3630
    %v3634 = vcvt.f32.s32 %v3632
    %v3635 = vshll.u32 %v3634, 16
    %v3636 = vadd.s32 %v3635, %v3633
    %v3637 = vand.u32 %v3624, 65535
    %v3638 = vshrl.u32 %v3624, 16
    %v3639 = vcvt.s32.f32 %v3637
    %v3640 = vcvt.s32.f32 %v3638
    %3641 = vadd.xlane.f32.xlu0 %v3639
    %v3642 = vpop.xlane.xlu0 %3641
    %3643 = vadd.xlane.f32.xlu0 %v3640
    %v3644 = vpop.xlane.xlu0 %3643
    %v3645 = vcvt.f32.s32 %v3642
    %v3646 = vcvt.f32.s32 %v3644
    %v3647 = vshll.u32 %v3646, 16
    %v3648 = vadd.s32 %v3647, %v3645
    %v3649 = vrot.slane %v3636, 4
    %v3650 = vadd.s32 %v3636, %v3649
    %v3651 = vrot.slane %v3650, 2
    %v3652 = vadd.s32 %v3650, %v3651
    %v3653 = vrot.slane %v3652, 1
    %v3654 = vadd.s32 %v3652, %v3653
    %v3655 = vrot.slane %v3648, 4
    %v3656 = vadd.s32 %v3648, %v3655
    %v3657 = vrot.slane %v3656, 2
    %v3658 = vadd.s32 %v3656, %v3657
    %v3659 = vrot.slane %v3658, 1
    %v3660 = vadd.s32 %v3658, %v3659
    %v3661 = vlaneseq
    %v3662 = vshrl.u32 %v3661, 7
    %v3663 = vsub.s32 0, %v3662
    %v3664 = vrot.slane %v3609, %v3663
    %v3665 = vlaneseq
    %v3666 = vshrl.u32 %v3665, 7
    %v3667 = vsub.s32 0, %v3666
    %v3668 = vrot.slane %v3610, %v3667
    %vm3669 = vcmp.ge.s32.totalorder %v1684, %v3664
    %vm3670 = vcmp.ge.s32.totalorder %v1686, %v3668
    %v3671 = vsel %vm3669, 1, 0
    %v3672 = vsel %vm3670, 1, 0
    %v3673 = vand.u32 %v3671, 65535
    %v3674 = vshrl.u32 %v3671, 16
    %v3675 = vcvt.s32.f32 %v3673
    %v3676 = vcvt.s32.f32 %v3674
    %3677 = vadd.xlane.f32.xlu0 %v3675
    %v3678 = vpop.xlane.xlu0 %3677
    %3679 = vadd.xlane.f32.xlu0 %v3676
    %v3680 = vpop.xlane.xlu0 %3679
    %v3681 = vcvt.f32.s32 %v3678
    %v3682 = vcvt.f32.s32 %v3680
    %v3683 = vshll.u32 %v3682, 16
    %v3684 = vadd.s32 %v3683, %v3681
    %v3685 = vand.u32 %v3672, 65535
    %v3686 = vshrl.u32 %v3672, 16
    %v3687 = vcvt.s32.f32 %v3685
    %v3688 = vcvt.s32.f32 %v3686
    %3689 = vadd.xlane.f32.xlu0 %v3687
    %v3690 = vpop.xlane.xlu0 %3689
    %3691 = vadd.xlane.f32.xlu0 %v3688
    %v3692 = vpop.xlane.xlu0 %3691
    %v3693 = vcvt.f32.s32 %v3690
    %v3694 = vcvt.f32.s32 %v3692
    %v3695 = vshll.u32 %v3694, 16
    %v3696 = vadd.s32 %v3695, %v3693
    %v3697 = vrot.slane %v3684, 4
    %v3698 = vadd.s32 %v3684, %v3697
    %v3699 = vrot.slane %v3698, 2
    %v3700 = vadd.s32 %v3698, %v3699
    %v3701 = vrot.slane %v3700, 1
    %v3702 = vadd.s32 %v3700, %v3701
    %v3703 = vrot.slane %v3696, 4
    %v3704 = vadd.s32 %v3696, %v3703
    %v3705 = vrot.slane %v3704, 2
    %v3706 = vadd.s32 %v3704, %v3705
    %v3707 = vrot.slane %v3706, 1
    %v3708 = vadd.s32 %v3706, %v3707
    %v3709 = vlaneseq
    %v3710 = vshrl.u32 %v3709, 7
    %v3711 = vsub.s32 0, %v3710
    %v3712 = vrot.slane %v3611, %v3711
    %v3713 = vlaneseq
    %v3714 = vshrl.u32 %v3713, 7
    %v3715 = vsub.s32 0, %v3714
    %v3716 = vrot.slane %v3612, %v3715
    %vm3717 = vcmp.ge.s32.totalorder %v1684, %v3712
    %vm3718 = vcmp.ge.s32.totalorder %v1686, %v3716
    %v3719 = vsel %vm3717, 1, 0
    %v3720 = vsel %vm3718, 1, 0
    %v3721 = vand.u32 %v3719, 65535
    %v3722 = vshrl.u32 %v3719, 16
    %v3723 = vcvt.s32.f32 %v3721
    %v3724 = vcvt.s32.f32 %v3722
    %3725 = vadd.xlane.f32.xlu0 %v3723
    %v3726 = vpop.xlane.xlu0 %3725
    %3727 = vadd.xlane.f32.xlu0 %v3724
    %v3728 = vpop.xlane.xlu0 %3727
    %v3729 = vcvt.f32.s32 %v3726
    %v3730 = vcvt.f32.s32 %v3728
    %v3731 = vshll.u32 %v3730, 16
    %v3732 = vadd.s32 %v3731, %v3729
    %v3733 = vand.u32 %v3720, 65535
    %v3734 = vshrl.u32 %v3720, 16
    %v3735 = vcvt.s32.f32 %v3733
    %v3736 = vcvt.s32.f32 %v3734
    %3737 = vadd.xlane.f32.xlu0 %v3735
    %v3738 = vpop.xlane.xlu0 %3737
    %3739 = vadd.xlane.f32.xlu0 %v3736
    %v3740 = vpop.xlane.xlu0 %3739
    %v3741 = vcvt.f32.s32 %v3738
    %v3742 = vcvt.f32.s32 %v3740
    %v3743 = vshll.u32 %v3742, 16
    %v3744 = vadd.s32 %v3743, %v3741
    %v3745 = vrot.slane %v3732, 4
    %v3746 = vadd.s32 %v3732, %v3745
    %v3747 = vrot.slane %v3746, 2
    %v3748 = vadd.s32 %v3746, %v3747
    %v3749 = vrot.slane %v3748, 1
    %v3750 = vadd.s32 %v3748, %v3749
    %v3751 = vrot.slane %v3744, 4
    %v3752 = vadd.s32 %v3744, %v3751
    %v3753 = vrot.slane %v3752, 2
    %v3754 = vadd.s32 %v3752, %v3753
    %v3755 = vrot.slane %v3754, 1
    %v3756 = vadd.s32 %v3754, %v3755
    %vm3757 = vcmp.ge.s32.totalorder %v3750, %v1690
    %vm3758 = vcmp.ge.s32.totalorder %v3756, %v1692
    %vm3759 = vcmp.ge.s32.totalorder %v3702, %v1690
    %vm3760 = vcmp.ge.s32.totalorder %v3708, %v1692
    %vm3761 = vcmp.ge.s32.totalorder %v3654, %v1690
    %vm3762 = vcmp.ge.s32.totalorder %v3660, %v1692
    %v3763 = vsel %vm3761, %v3607, %v3605
    %v3764 = vsel %vm3762, %v3608, %v3606
    %v3765 = vsel %vm3759, %v3609, %v3763
    %v3766 = vsel %vm3760, %v3610, %v3764
    %v3767 = vsel %vm3757, %v3611, %v3765
    %v3768 = vsel %vm3758, %v3612, %v3766
    %v3769 = vor.u32 %v3767, 8
    %v3770 = vor.u32 %v3768, 8
    %v3771 = vor.u32 %v3767, 16
    %v3772 = vor.u32 %v3768, 16
    %v3773 = vor.u32 %v3767, 24
    %v3774 = vor.u32 %v3768, 24
    %v3775 = vlaneseq
    %v3776 = vshrl.u32 %v3775, 7
    %v3777 = vsub.s32 0, %v3776
    %v3778 = vrot.slane %v3769, %v3777
    %v3779 = vlaneseq
    %v3780 = vshrl.u32 %v3779, 7
    %v3781 = vsub.s32 0, %v3780
    %v3782 = vrot.slane %v3770, %v3781
    %vm3783 = vcmp.ge.s32.totalorder %v1684, %v3778
    %vm3784 = vcmp.ge.s32.totalorder %v1686, %v3782
    %v3785 = vsel %vm3783, 1, 0
    %v3786 = vsel %vm3784, 1, 0
    %v3787 = vand.u32 %v3785, 65535
    %v3788 = vshrl.u32 %v3785, 16
    %v3789 = vcvt.s32.f32 %v3787
    %v3790 = vcvt.s32.f32 %v3788
    %3791 = vadd.xlane.f32.xlu0 %v3789
    %v3792 = vpop.xlane.xlu0 %3791
    %3793 = vadd.xlane.f32.xlu0 %v3790
    %v3794 = vpop.xlane.xlu0 %3793
    %v3795 = vcvt.f32.s32 %v3792
    %v3796 = vcvt.f32.s32 %v3794
    %v3797 = vshll.u32 %v3796, 16
    %v3798 = vadd.s32 %v3797, %v3795
    %v3799 = vand.u32 %v3786, 65535
    %v3800 = vshrl.u32 %v3786, 16
    %v3801 = vcvt.s32.f32 %v3799
    %v3802 = vcvt.s32.f32 %v3800
    %3803 = vadd.xlane.f32.xlu0 %v3801
    %v3804 = vpop.xlane.xlu0 %3803
    %3805 = vadd.xlane.f32.xlu0 %v3802
    %v3806 = vpop.xlane.xlu0 %3805
    %v3807 = vcvt.f32.s32 %v3804
    %v3808 = vcvt.f32.s32 %v3806
    %v3809 = vshll.u32 %v3808, 16
    %v3810 = vadd.s32 %v3809, %v3807
    %v3811 = vrot.slane %v3798, 4
    %v3812 = vadd.s32 %v3798, %v3811
    %v3813 = vrot.slane %v3812, 2
    %v3814 = vadd.s32 %v3812, %v3813
    %v3815 = vrot.slane %v3814, 1
    %v3816 = vadd.s32 %v3814, %v3815
    %v3817 = vrot.slane %v3810, 4
    %v3818 = vadd.s32 %v3810, %v3817
    %v3819 = vrot.slane %v3818, 2
    %v3820 = vadd.s32 %v3818, %v3819
    %v3821 = vrot.slane %v3820, 1
    %v3822 = vadd.s32 %v3820, %v3821
    %v3823 = vlaneseq
    %v3824 = vshrl.u32 %v3823, 7
    %v3825 = vsub.s32 0, %v3824
    %v3826 = vrot.slane %v3771, %v3825
    %v3827 = vlaneseq
    %v3828 = vshrl.u32 %v3827, 7
    %v3829 = vsub.s32 0, %v3828
    %v3830 = vrot.slane %v3772, %v3829
    %vm3831 = vcmp.ge.s32.totalorder %v1684, %v3826
    %vm3832 = vcmp.ge.s32.totalorder %v1686, %v3830
    %v3833 = vsel %vm3831, 1, 0
    %v3834 = vsel %vm3832, 1, 0
    %v3835 = vand.u32 %v3833, 65535
    %v3836 = vshrl.u32 %v3833, 16
    %v3837 = vcvt.s32.f32 %v3835
    %v3838 = vcvt.s32.f32 %v3836
    %3839 = vadd.xlane.f32.xlu0 %v3837
    %v3840 = vpop.xlane.xlu0 %3839
    %3841 = vadd.xlane.f32.xlu0 %v3838
    %v3842 = vpop.xlane.xlu0 %3841
    %v3843 = vcvt.f32.s32 %v3840
    %v3844 = vcvt.f32.s32 %v3842
    %v3845 = vshll.u32 %v3844, 16
    %v3846 = vadd.s32 %v3845, %v3843
    %v3847 = vand.u32 %v3834, 65535
    %v3848 = vshrl.u32 %v3834, 16
    %v3849 = vcvt.s32.f32 %v3847
    %v3850 = vcvt.s32.f32 %v3848
    %3851 = vadd.xlane.f32.xlu0 %v3849
    %v3852 = vpop.xlane.xlu0 %3851
    %3853 = vadd.xlane.f32.xlu0 %v3850
    %v3854 = vpop.xlane.xlu0 %3853
    %v3855 = vcvt.f32.s32 %v3852
    %v3856 = vcvt.f32.s32 %v3854
    %v3857 = vshll.u32 %v3856, 16
    %v3858 = vadd.s32 %v3857, %v3855
    %v3859 = vrot.slane %v3846, 4
    %v3860 = vadd.s32 %v3846, %v3859
    %v3861 = vrot.slane %v3860, 2
    %v3862 = vadd.s32 %v3860, %v3861
    %v3863 = vrot.slane %v3862, 1
    %v3864 = vadd.s32 %v3862, %v3863
    %v3865 = vrot.slane %v3858, 4
    %v3866 = vadd.s32 %v3858, %v3865
    %v3867 = vrot.slane %v3866, 2
    %v3868 = vadd.s32 %v3866, %v3867
    %v3869 = vrot.slane %v3868, 1
    %v3870 = vadd.s32 %v3868, %v3869
    %v3871 = vlaneseq
    %v3872 = vshrl.u32 %v3871, 7
    %v3873 = vsub.s32 0, %v3872
    %v3874 = vrot.slane %v3773, %v3873
    %v3875 = vlaneseq
    %v3876 = vshrl.u32 %v3875, 7
    %v3877 = vsub.s32 0, %v3876
    %v3878 = vrot.slane %v3774, %v3877
    %vm3879 = vcmp.ge.s32.totalorder %v1684, %v3874
    %vm3880 = vcmp.ge.s32.totalorder %v1686, %v3878
    %v3881 = vsel %vm3879, 1, 0
    %v3882 = vsel %vm3880, 1, 0
    %v3883 = vand.u32 %v3881, 65535
    %v3884 = vshrl.u32 %v3881, 16
    %v3885 = vcvt.s32.f32 %v3883
    %v3886 = vcvt.s32.f32 %v3884
    %3887 = vadd.xlane.f32.xlu0 %v3885
    %v3888 = vpop.xlane.xlu0 %3887
    %3889 = vadd.xlane.f32.xlu0 %v3886
    %v3890 = vpop.xlane.xlu0 %3889
    %v3891 = vcvt.f32.s32 %v3888
    %v3892 = vcvt.f32.s32 %v3890
    %v3893 = vshll.u32 %v3892, 16
    %v3894 = vadd.s32 %v3893, %v3891
    %v3895 = vand.u32 %v3882, 65535
    %v3896 = vshrl.u32 %v3882, 16
    %v3897 = vcvt.s32.f32 %v3895
    %v3898 = vcvt.s32.f32 %v3896
    %3899 = vadd.xlane.f32.xlu0 %v3897
    %v3900 = vpop.xlane.xlu0 %3899
    %3901 = vadd.xlane.f32.xlu0 %v3898
    %v3902 = vpop.xlane.xlu0 %3901
    %v3903 = vcvt.f32.s32 %v3900
    %v3904 = vcvt.f32.s32 %v3902
    %v3905 = vshll.u32 %v3904, 16
    %v3906 = vadd.s32 %v3905, %v3903
    %v3907 = vrot.slane %v3894, 4
    %v3908 = vadd.s32 %v3894, %v3907
    %v3909 = vrot.slane %v3908, 2
    %v3910 = vadd.s32 %v3908, %v3909
    %v3911 = vrot.slane %v3910, 1
    %v3912 = vadd.s32 %v3910, %v3911
    %v3913 = vrot.slane %v3906, 4
    %v3914 = vadd.s32 %v3906, %v3913
    %v3915 = vrot.slane %v3914, 2
    %v3916 = vadd.s32 %v3914, %v3915
    %v3917 = vrot.slane %v3916, 1
    %v3918 = vadd.s32 %v3916, %v3917
    %vm3919 = vcmp.ge.s32.totalorder %v3912, %v1690
    %vm3920 = vcmp.ge.s32.totalorder %v3918, %v1692
    %vm3921 = vcmp.ge.s32.totalorder %v3864, %v1690
    %vm3922 = vcmp.ge.s32.totalorder %v3870, %v1692
    %vm3923 = vcmp.ge.s32.totalorder %v3816, %v1690
    %vm3924 = vcmp.ge.s32.totalorder %v3822, %v1692
    %v3925 = vsel %vm3923, %v3769, %v3767
    %v3926 = vsel %vm3924, %v3770, %v3768
    %v3927 = vsel %vm3921, %v3771, %v3925
    %v3928 = vsel %vm3922, %v3772, %v3926
    %v3929 = vsel %vm3919, %v3773, %v3927
    %v3930 = vsel %vm3920, %v3774, %v3928
    %v3931 = vor.u32 %v3929, 2
    %v3932 = vor.u32 %v3930, 2
    %v3933 = vor.u32 %v3929, 4
    %v3934 = vor.u32 %v3930, 4
    %v3935 = vor.u32 %v3929, 6
    %v3936 = vor.u32 %v3930, 6
    %v3937 = vlaneseq
    %v3938 = vshrl.u32 %v3937, 7
    %v3939 = vsub.s32 0, %v3938
    %v3940 = vrot.slane %v3931, %v3939
    %v3941 = vlaneseq
    %v3942 = vshrl.u32 %v3941, 7
    %v3943 = vsub.s32 0, %v3942
    %v3944 = vrot.slane %v3932, %v3943
    %vm3945 = vcmp.ge.s32.totalorder %v1684, %v3940
    %vm3946 = vcmp.ge.s32.totalorder %v1686, %v3944
    %v3947 = vsel %vm3945, 1, 0
    %v3948 = vsel %vm3946, 1, 0
    %v3949 = vand.u32 %v3947, 65535
    %v3950 = vshrl.u32 %v3947, 16
    %v3951 = vcvt.s32.f32 %v3949
    %v3952 = vcvt.s32.f32 %v3950
    %3953 = vadd.xlane.f32.xlu0 %v3951
    %v3954 = vpop.xlane.xlu0 %3953
    %3955 = vadd.xlane.f32.xlu0 %v3952
    %v3956 = vpop.xlane.xlu0 %3955
    %v3957 = vcvt.f32.s32 %v3954
    %v3958 = vcvt.f32.s32 %v3956
    %v3959 = vshll.u32 %v3958, 16
    %v3960 = vadd.s32 %v3959, %v3957
    %v3961 = vand.u32 %v3948, 65535
    %v3962 = vshrl.u32 %v3948, 16
    %v3963 = vcvt.s32.f32 %v3961
    %v3964 = vcvt.s32.f32 %v3962
    %3965 = vadd.xlane.f32.xlu0 %v3963
    %v3966 = vpop.xlane.xlu0 %3965
    %3967 = vadd.xlane.f32.xlu0 %v3964
    %v3968 = vpop.xlane.xlu0 %3967
    %v3969 = vcvt.f32.s32 %v3966
    %v3970 = vcvt.f32.s32 %v3968
    %v3971 = vshll.u32 %v3970, 16
    %v3972 = vadd.s32 %v3971, %v3969
    %v3973 = vrot.slane %v3960, 4
    %v3974 = vadd.s32 %v3960, %v3973
    %v3975 = vrot.slane %v3974, 2
    %v3976 = vadd.s32 %v3974, %v3975
    %v3977 = vrot.slane %v3976, 1
    %v3978 = vadd.s32 %v3976, %v3977
    %v3979 = vrot.slane %v3972, 4
    %v3980 = vadd.s32 %v3972, %v3979
    %v3981 = vrot.slane %v3980, 2
    %v3982 = vadd.s32 %v3980, %v3981
    %v3983 = vrot.slane %v3982, 1
    %v3984 = vadd.s32 %v3982, %v3983
    %v3985 = vlaneseq
    %v3986 = vshrl.u32 %v3985, 7
    %v3987 = vsub.s32 0, %v3986
    %v3988 = vrot.slane %v3933, %v3987
    %v3989 = vlaneseq
    %v3990 = vshrl.u32 %v3989, 7
    %v3991 = vsub.s32 0, %v3990
    %v3992 = vrot.slane %v3934, %v3991
    %vm3993 = vcmp.ge.s32.totalorder %v1684, %v3988
    %vm3994 = vcmp.ge.s32.totalorder %v1686, %v3992
    %v3995 = vsel %vm3993, 1, 0
    %v3996 = vsel %vm3994, 1, 0
    %v3997 = vand.u32 %v3995, 65535
    %v3998 = vshrl.u32 %v3995, 16
    %v3999 = vcvt.s32.f32 %v3997
    %v4000 = vcvt.s32.f32 %v3998
    %4001 = vadd.xlane.f32.xlu0 %v3999
    %v4002 = vpop.xlane.xlu0 %4001
    %4003 = vadd.xlane.f32.xlu0 %v4000
    %v4004 = vpop.xlane.xlu0 %4003
    %v4005 = vcvt.f32.s32 %v4002
    %v4006 = vcvt.f32.s32 %v4004
    %v4007 = vshll.u32 %v4006, 16
    %v4008 = vadd.s32 %v4007, %v4005
    %v4009 = vand.u32 %v3996, 65535
    %v4010 = vshrl.u32 %v3996, 16
    %v4011 = vcvt.s32.f32 %v4009
    %v4012 = vcvt.s32.f32 %v4010
    %4013 = vadd.xlane.f32.xlu0 %v4011
    %v4014 = vpop.xlane.xlu0 %4013
    %4015 = vadd.xlane.f32.xlu0 %v4012
    %v4016 = vpop.xlane.xlu0 %4015
    %v4017 = vcvt.f32.s32 %v4014
    %v4018 = vcvt.f32.s32 %v4016
    %v4019 = vshll.u32 %v4018, 16
    %v4020 = vadd.s32 %v4019, %v4017
    %v4021 = vrot.slane %v4008, 4
    %v4022 = vadd.s32 %v4008, %v4021
    %v4023 = vrot.slane %v4022, 2
    %v4024 = vadd.s32 %v4022, %v4023
    %v4025 = vrot.slane %v4024, 1
    %v4026 = vadd.s32 %v4024, %v4025
    %v4027 = vrot.slane %v4020, 4
    %v4028 = vadd.s32 %v4020, %v4027
    %v4029 = vrot.slane %v4028, 2
    %v4030 = vadd.s32 %v4028, %v4029
    %v4031 = vrot.slane %v4030, 1
    %v4032 = vadd.s32 %v4030, %v4031
    %v4033 = vlaneseq
    %v4034 = vshrl.u32 %v4033, 7
    %v4035 = vsub.s32 0, %v4034
    %v4036 = vrot.slane %v3935, %v4035
    %v4037 = vlaneseq
    %v4038 = vshrl.u32 %v4037, 7
    %v4039 = vsub.s32 0, %v4038
    %v4040 = vrot.slane %v3936, %v4039
    %vm4041 = vcmp.ge.s32.totalorder %v1684, %v4036
    %vm4042 = vcmp.ge.s32.totalorder %v1686, %v4040
    %v4043 = vsel %vm4041, 1, 0
    %v4044 = vsel %vm4042, 1, 0
    %v4045 = vand.u32 %v4043, 65535
    %v4046 = vshrl.u32 %v4043, 16
    %v4047 = vcvt.s32.f32 %v4045
    %v4048 = vcvt.s32.f32 %v4046
    %4049 = vadd.xlane.f32.xlu0 %v4047
    %v4050 = vpop.xlane.xlu0 %4049
    %4051 = vadd.xlane.f32.xlu0 %v4048
    %v4052 = vpop.xlane.xlu0 %4051
    %v4053 = vcvt.f32.s32 %v4050
    %v4054 = vcvt.f32.s32 %v4052
    %v4055 = vshll.u32 %v4054, 16
    %v4056 = vadd.s32 %v4055, %v4053
    %v4057 = vand.u32 %v4044, 65535
    %v4058 = vshrl.u32 %v4044, 16
    %v4059 = vcvt.s32.f32 %v4057
    %v4060 = vcvt.s32.f32 %v4058
    %4061 = vadd.xlane.f32.xlu0 %v4059
    %v4062 = vpop.xlane.xlu0 %4061
    %4063 = vadd.xlane.f32.xlu0 %v4060
    %v4064 = vpop.xlane.xlu0 %4063
    %v4065 = vcvt.f32.s32 %v4062
    %v4066 = vcvt.f32.s32 %v4064
    %v4067 = vshll.u32 %v4066, 16
    %v4068 = vadd.s32 %v4067, %v4065
    %v4069 = vrot.slane %v4056, 4
    %v4070 = vadd.s32 %v4056, %v4069
    %v4071 = vrot.slane %v4070, 2
    %v4072 = vadd.s32 %v4070, %v4071
    %v4073 = vrot.slane %v4072, 1
    %v4074 = vadd.s32 %v4072, %v4073
    %v4075 = vrot.slane %v4068, 4
    %v4076 = vadd.s32 %v4068, %v4075
    %v4077 = vrot.slane %v4076, 2
    %v4078 = vadd.s32 %v4076, %v4077
    %v4079 = vrot.slane %v4078, 1
    %v4080 = vadd.s32 %v4078, %v4079
    %vm4081 = vcmp.ge.s32.totalorder %v4074, %v1690
    %vm4082 = vcmp.ge.s32.totalorder %v4080, %v1692
    %vm4083 = vcmp.ge.s32.totalorder %v4026, %v1690
    %vm4084 = vcmp.ge.s32.totalorder %v4032, %v1692
    %vm4085 = vcmp.ge.s32.totalorder %v3978, %v1690
    %vm4086 = vcmp.ge.s32.totalorder %v3984, %v1692
    %v4087 = vsel %vm4085, %v3931, %v3929
    %v4088 = vsel %vm4086, %v3932, %v3930
    %v4089 = vsel %vm4083, %v3933, %v4087
    %v4090 = vsel %vm4084, %v3934, %v4088
    %v4091 = vsel %vm4081, %v3935, %v4089
    %v4092 = vsel %vm4082, %v3936, %v4090
    %v4093 = vor.u32 %v4091, 1
    %v4094 = vor.u32 %v4092, 1
    %v4095 = vlaneseq
    %v4096 = vshrl.u32 %v4095, 7
    %v4097 = vsub.s32 0, %v4096
    %v4098 = vrot.slane %v4093, %v4097
    %v4099 = vlaneseq
    %v4100 = vshrl.u32 %v4099, 7
    %v4101 = vsub.s32 0, %v4100
    %v4102 = vrot.slane %v4094, %v4101
    %vm4103 = vcmp.ge.s32.totalorder %v1684, %v4098
    %vm4104 = vcmp.ge.s32.totalorder %v1686, %v4102
    %v4105 = vsel %vm4103, 1, 0
    %v4106 = vsel %vm4104, 1, 0
    %v4107 = vand.u32 %v4105, 65535
    %v4108 = vshrl.u32 %v4105, 16
    %v4109 = vcvt.s32.f32 %v4107
    %v4110 = vcvt.s32.f32 %v4108
    %4111 = vadd.xlane.f32.xlu0 %v4109
    %v4112 = vpop.xlane.xlu0 %4111
    %4113 = vadd.xlane.f32.xlu0 %v4110
    %v4114 = vpop.xlane.xlu0 %4113
    %v4115 = vcvt.f32.s32 %v4112
    %v4116 = vcvt.f32.s32 %v4114
    %v4117 = vshll.u32 %v4116, 16
    %v4118 = vadd.s32 %v4117, %v4115
    %v4119 = vand.u32 %v4106, 65535
    %v4120 = vshrl.u32 %v4106, 16
    %v4121 = vcvt.s32.f32 %v4119
    %v4122 = vcvt.s32.f32 %v4120
    %4123 = vadd.xlane.f32.xlu0 %v4121
    %v4124 = vpop.xlane.xlu0 %4123
    %4125 = vadd.xlane.f32.xlu0 %v4122
    %v4126 = vpop.xlane.xlu0 %4125
    %v4127 = vcvt.f32.s32 %v4124
    %v4128 = vcvt.f32.s32 %v4126
    %v4129 = vshll.u32 %v4128, 16
    %v4130 = vadd.s32 %v4129, %v4127
    %v4131 = vrot.slane %v4118, 4
    %v4132 = vadd.s32 %v4118, %v4131
    %v4133 = vrot.slane %v4132, 2
    %v4134 = vadd.s32 %v4132, %v4133
    %v4135 = vrot.slane %v4134, 1
    %v4136 = vadd.s32 %v4134, %v4135
    %v4137 = vrot.slane %v4130, 4
    %v4138 = vadd.s32 %v4130, %v4137
    %v4139 = vrot.slane %v4138, 2
    %v4140 = vadd.s32 %v4138, %v4139
    %v4141 = vrot.slane %v4140, 1
    %v4142 = vadd.s32 %v4140, %v4141
    %vm4143 = vcmp.ge.s32.totalorder %v4136, %v1690
    %vm4144 = vcmp.ge.s32.totalorder %v4142, %v1692
    %v4145 = vsel %vm4143, %v4093, %v4091
    %v4146 = vsel %vm4144, %v4094, %v4092
    %v4149 = vlaneseq
    %v4150 = vshrl.u32 %v4149, 7
    %v4151 = vsub.s32 0, %v4150
    %v4152 = vrot.slane %v4145, %v4151
    %v4153 = vlaneseq
    %v4154 = vshrl.u32 %v4153, 7
    %v4155 = vsub.s32 0, %v4154
    %v4156 = vrot.slane %v4146, %v4155
    %vm4157 = vcmp.gt.f32.partialorder %v1679, %v4152
    %vm4158 = vcmp.gt.f32.partialorder %v1680, %v4156
    %v4159 = vsel %vm4157, 1, 0
    %v4160 = vsel %vm4158, 1, 0
    %v4161 = vcvt.s32.f32 %v4159
    %v4162 = vcvt.s32.f32 %v4160
    %4163 = vadd.xlane.f32.xlu0 %v4161
    %v4164 = vpop.xlane.xlu0 %4163
    %4165 = vadd.xlane.f32.xlu0 %v4162
    %v4166 = vpop.xlane.xlu0 %4165
    %v4167 = vrot.slane %v4164, 4
    %v4168 = vadd.f32 %v4164, %v4167
    %v4169 = vrot.slane %v4168, 2
    %v4170 = vadd.f32 %v4168, %v4169
    %v4171 = vrot.slane %v4170, 1
    %v4172 = vadd.f32 %v4170, %v4171
    %v4173 = vrot.slane %v4166, 4
    %v4174 = vadd.f32 %v4166, %v4173
    %v4175 = vrot.slane %v4174, 2
    %v4176 = vadd.f32 %v4174, %v4175
    %v4177 = vrot.slane %v4176, 1
    %v4178 = vadd.f32 %v4176, %v4177
    %v4179 = vsel %vm4157, %v1679, 0.0
    %v4180 = vsel %vm4158, %v1680, 0.0
    %4181 = vadd.xlane.f32.xlu0 %v4179
    %v4182 = vpop.xlane.xlu0 %4181
    %4183 = vadd.xlane.f32.xlu0 %v4180
    %v4184 = vpop.xlane.xlu0 %4183
    %v4185 = vrot.slane %v4182, 4
    %v4186 = vadd.f32 %v4182, %v4185
    %v4187 = vrot.slane %v4186, 2
    %v4188 = vadd.f32 %v4186, %v4187
    %v4189 = vrot.slane %v4188, 1
    %v4190 = vadd.f32 %v4188, %v4189
    %v4191 = vrot.slane %v4184, 4
    %v4192 = vadd.f32 %v4184, %v4191
    %v4193 = vrot.slane %v4192, 2
    %v4194 = vadd.f32 %v4192, %v4193
    %v4195 = vrot.slane %v4194, 1
    %v4196 = vadd.f32 %v4194, %v4195
    %v4197 = vcvt.s32.f32 %v1690
    %v4198 = vcvt.s32.f32 %v1692
    %v4199 = vsub.f32 %v4197, %v4172
    %v4200 = vsub.f32 %v4198, %v4178
    %v4201 = vmul.f32 %v4199, %v4145
    %v4202 = vmul.f32 %v4200, %v4146
    %v4203 = vadd.f32 %v4190, %v4201
    %v4204 = vadd.f32 %v4196, %v4202
    %vm4205 = vcmp.gt.s32.totalorder %v1690, 0
    %vm4206 = vcmp.gt.s32.totalorder %v1692, 0
    %v4207 = vsel %vm4205, %v4203, 0.0
    %v4208 = vsel %vm4206, %v4204, 0.0
    %v4211 = vlaneseq
    %v4212 = vshrl.u32 %v4211, 7
    %v4213 = vsub.s32 0, %v4212
    %v4214 = vrot.slane %v95, %v4213
    %v4215 = vlaneseq
    %v4216 = vshrl.u32 %v4215, 7
    %v4217 = vsub.s32 1, %v4216
    %v4218 = vrot.slane %v95, %v4217
    %v4219 = vlaneseq
    %v4220 = vshrl.u32 %v4219, 7
    %v4221 = vsub.s32 2, %v4220
    %v4222 = vrot.slane %v95, %v4221
    %v4223 = vlaneseq
    %v4224 = vshrl.u32 %v4223, 7
    %v4225 = vsub.s32 3, %v4224
    %v4226 = vrot.slane %v95, %v4225
    %v4227 = vlaneseq
    %v4228 = vshrl.u32 %v4227, 7
    %v4229 = vsub.s32 4, %v4228
    %v4230 = vrot.slane %v95, %v4229
    %v4231 = vlaneseq
    %v4232 = vshrl.u32 %v4231, 7
    %v4233 = vsub.s32 5, %v4232
    %v4234 = vrot.slane %v95, %v4233
    %v4235 = vlaneseq
    %v4236 = vshrl.u32 %v4235, 7
    %v4237 = vsub.s32 6, %v4236
    %v4238 = vrot.slane %v95, %v4237
    %v4239 = vlaneseq
    %v4240 = vshrl.u32 %v4239, 7
    %v4241 = vsub.s32 7, %v4240
    %v4242 = vrot.slane %v95, %v4241
    %v4243 = vlaneseq
    %v4244 = vshrl.u32 %v4243, 7
    %v4245 = vsub.s32 0, %v4244
    %v4246 = vrot.slane %v96, %v4245
    %v4247 = vlaneseq
    %v4248 = vshrl.u32 %v4247, 7
    %v4249 = vsub.s32 1, %v4248
    %v4250 = vrot.slane %v96, %v4249
    %v4251 = vlaneseq
    %v4252 = vshrl.u32 %v4251, 7
    %v4253 = vsub.s32 2, %v4252
    %v4254 = vrot.slane %v96, %v4253
    %v4255 = vlaneseq
    %v4256 = vshrl.u32 %v4255, 7
    %v4257 = vsub.s32 3, %v4256
    %v4258 = vrot.slane %v96, %v4257
    %v4259 = vlaneseq
    %v4260 = vshrl.u32 %v4259, 7
    %v4261 = vsub.s32 4, %v4260
    %v4262 = vrot.slane %v96, %v4261
    %v4263 = vlaneseq
    %v4264 = vshrl.u32 %v4263, 7
    %v4265 = vsub.s32 5, %v4264
    %v4266 = vrot.slane %v96, %v4265
    %v4267 = vlaneseq
    %v4268 = vshrl.u32 %v4267, 7
    %v4269 = vsub.s32 6, %v4268
    %v4270 = vrot.slane %v96, %v4269
    %v4271 = vlaneseq
    %v4272 = vshrl.u32 %v4271, 7
    %v4273 = vsub.s32 7, %v4272
    %v4274 = vrot.slane %v96, %v4273
    %v4291 = vmul.f32 %v1455, %v4214
    %v4292 = vmul.f32 %v1456, %v4218
    %v4293 = vmul.f32 %v1457, %v4222
    %v4294 = vmul.f32 %v1458, %v4226
    %v4295 = vmul.f32 %v1459, %v4230
    %v4296 = vmul.f32 %v1460, %v4234
    %v4297 = vmul.f32 %v1461, %v4238
    %v4298 = vmul.f32 %v1462, %v4242
    %v4299 = vmul.f32 %v1463, %v4246
    %v4300 = vmul.f32 %v1464, %v4250
    %v4301 = vmul.f32 %v1465, %v4254
    %v4302 = vmul.f32 %v1466, %v4258
    %v4303 = vmul.f32 %v1467, %v4262
    %v4304 = vmul.f32 %v1468, %v4266
    %v4305 = vmul.f32 %v1469, %v4270
    %v4306 = vmul.f32 %v1470, %v4274
    %v4307 = vsel %vm161, %v4291, 0.0
    %v4308 = vsel %vm161, %v4292, 0.0
    %v4309 = vadd.f32 %v4307, %v4308
    %v4310 = vsel %vm161, %v4293, 0.0
    %v4311 = vadd.f32 %v4309, %v4310
    %v4312 = vsel %vm161, %v4294, 0.0
    %v4313 = vadd.f32 %v4311, %v4312
    %v4314 = vsel %vm161, %v4295, 0.0
    %v4315 = vadd.f32 %v4313, %v4314
    %v4316 = vsel %vm161, %v4296, 0.0
    %v4317 = vadd.f32 %v4315, %v4316
    %v4318 = vsel %vm161, %v4297, 0.0
    %v4319 = vadd.f32 %v4317, %v4318
    %v4320 = vsel %vm161, %v4298, 0.0
    %v4321 = vadd.f32 %v4319, %v4320
    %4322 = vadd.xlane.f32.xlu0 %v4321
    %v4323 = vpop.xlane.xlu0 %4322
    %v4324 = vsel %vm161, %v4299, 0.0
    %v4325 = vsel %vm161, %v4300, 0.0
    %v4326 = vadd.f32 %v4324, %v4325
    %v4327 = vsel %vm161, %v4301, 0.0
    %v4328 = vadd.f32 %v4326, %v4327
    %v4329 = vsel %vm161, %v4302, 0.0
    %v4330 = vadd.f32 %v4328, %v4329
    %v4331 = vsel %vm161, %v4303, 0.0
    %v4332 = vadd.f32 %v4330, %v4331
    %v4333 = vsel %vm161, %v4304, 0.0
    %v4334 = vadd.f32 %v4332, %v4333
    %v4335 = vsel %vm161, %v4305, 0.0
    %v4336 = vadd.f32 %v4334, %v4335
    %v4337 = vsel %vm161, %v4306, 0.0
    %v4338 = vadd.f32 %v4336, %v4337
    %4339 = vadd.xlane.f32.xlu0 %v4338
    %v4340 = vpop.xlane.xlu0 %4339
    %v4341 = vadd.f32 %v4323, %v4207
    %v4342 = vadd.f32 %v4340, %v4208
    %v4343 = vadd.f32 %v955, %v4341
    %v4344 = vadd.f32 %v972, %v4342
    %vm4345 = vcmp.gt.f32.partialorder %v216, 0.0
    %vm4346 = vcmp.gt.f32.partialorder %v217, 0.0
    %v4347 = vsel %vm4345, 1, 0
    %v4348 = vsel %vm4346, 1, 0
    %v4349 = vcvt.s32.f32 %v4347
    %v4350 = vcvt.s32.f32 %v4348
    %v4351 = vmul.f32 %v4343, %v4349
    %v4352 = vmul.f32 %v4344, %v4350
    %v4353 = vmax.f32 %v216, 1e-06
    %v4354 = vmax.f32 %v217, 1e-06
    %v4355 = vrcp.pop %v4353
    %v4356 = vmul.f32 %v4351, %v4355
    %v4357 = vrcp.pop %v4354
    %v4358 = vmul.f32 %v4352, %v4357
    %4359 = vst [vmem:[#allocation7] sm:$0x1] %v4356
    %4360 = vst [vmem:[#allocation7 + $0x1] sm:$0x1] %v4358
    // Predicated region
    $region30: #{tpu_custom_call.1} parent=1 // pred_check
      _
    $region31: #{tpu_custom_call.1} parent=1 // pred_check_branch
      %4362 = sbr.rel (0) target = $region33
    $region32: #{tpu_custom_call.1} parent=1 // pred_region
      %s4364 = ssub.s32 32, 32
      %4365 = vsyncadd [#allocation4], %s4364
      %s4366 = sshll.u32 [#allocation7], 4
      %s4367 = int_to_ptr.vmem [resolvable:$true] %s4366
      %4372 = dma.vmem_to_hbm [thread:$0]  %s4367, 32, %s5, [#allocation4], 16, 16, 1
    $region33: #{tpu_custom_call.1} parent=1 // pred_fallthru
      _
    // Predicated region
    $region34: #{tpu_custom_call.1} parent=1 // pred_check
      _
    $region35: #{tpu_custom_call.1} parent=1 // pred_check_branch
      %4374 = sbr.rel (0) target = $region37
    $region36: #{tpu_custom_call.1} parent=1 // pred_region
      %4375 = dma.done [#allocation4], 32
    $region37: #{tpu_custom_call.1} parent=1 // pred_fallthru
      _
    %4376 = vsyncpa [#allocation3], 1
    %4377 = vsyncpa [#allocation6], 1
    %4378 = vsyncpa [#allocation4], 1

</llo_original>
